<compile_context>
chip_gen: v6e
topology: v6e:2x2x1
jax: 0.10.0
libtpu: 0.0.40
codegen_flags: <defaults>
</compile_context>

<pallas_src>
import jax
import jax.numpy as jnp
from jax.experimental import pallas as pl
from jax.experimental.pallas import tpu as pltpu


def gap_linear_kernel(x_ref, wt_ref, b_ref, o_ref, acc_ref):
    """One (batch-tile, K-tile) grid step of the fused avg-pool + Linear.

    x_ref  : (TB, TK)   flattened features (C-major, HW-minor), f32 or bf16
    wt_ref : (TK, OUT)  Linear weight^T slice, 1/HW pool scale pre-folded
    b_ref  : (1, OUT)   bias, f32
    o_ref  : (TB, OUT)  logits, f32
    acc_ref: (TB, OUT)  f32 accumulator scratch, persists across the K axis
    """
    k = pl.program_id(1)

    @pl.when(k == 0)
    def _():
        acc_ref[...] = jnp.zeros_like(acc_ref)

    # Reduction runs on the MXU (not a cross-lane XLU sum); f32 accumulation.
    acc_ref[...] += jnp.dot(x_ref[...], wt_ref[...],
                            preferred_element_type=jnp.float32)

    @pl.when(k == pl.num_programs(1) - 1)
    def _():
        o_ref[...] = (acc_ref[...] + b_ref[...]).astype(o_ref.dtype)


def _round_up(x, m):
    return ((x + m - 1) // m) * m


def _vmem_capacity_bytes():
    """Physical VMEM of the local chip; conservative fallback if query fails."""
    try:
        cap = int(getattr(pltpu.get_tpu_info(), "vmem_capacity_bytes"))
        if cap > 0:
            return cap
    except Exception:
        pass
    return 64 * 1024 * 1024  # v7x physical size == smallest across v5e/v6e/v7x


# Cap on the lane-padded (tk, OUT->128 lanes) weight block, per buffer.
_WT_BLOCK_PAD_CAP_BYTES = 4 * 1024 * 1024


def _choose_tiles(B, K, x_itemsize, w_itemsize, out_features, slab_budget_bytes):
    """Pick (tb, tk): batch tile and reduction (C*HW) tile.

    * feature block (tb, tk): tb % 8 == 0 (or tb == B), tk % 128 == 0 and
      K % tk == 0 (or tk == K); double-buffered slab fits slab_budget_bytes.
    * tk is additionally bounded so the lane-padded weight block stays small
      and so a tb >= 8 tile always fits the budget (robust for any H*W).
    """
    lane = 128
    # --- reduction tile ---
    tk_cap = _WT_BLOCK_PAD_CAP_BYTES // (_round_up(out_features, lane) * w_itemsize)
    tk_cap = min(tk_cap, slab_budget_bytes // (2 * 8 * x_itemsize))
    tk = max(lane, min(K, tk_cap))
    tk = (tk // lane) * lane
    while tk > lane and K % tk != 0:
        tk -= lane
    if K % tk != 0:
        # C*HW not a multiple of 128 (cannot happen for C=512); whole axis.
        tk = K
    # --- batch tile ---
    tb = slab_budget_bytes // (2 * tk * x_itemsize)
    tb = max(8, (tb // 8) * 8)
    if tb >= B:
        tb = B
        if B >= 16:
            # Keep >= 2 batch steps: pipeline depth + v7x second TensorCore.
            tb = max(8, (((B + 1) // 2) // 8) * 8)
    return tb, min(tk, K)


def _vmem_limit_bytes(tb, tk, out_features, x_isz, w_isz, capacity):
    def padded(r, c, isz):
        # (sublane, lane) VMEM padding; 16-row round also covers bf16 packing.
        return _round_up(r, 16) * _round_up(c, 128) * isz

    need = (2 * padded(tb, tk, x_isz)               # double-buffered features
            + 2 * padded(tk, out_features, w_isz)   # double-buffered weights
            + 2 * padded(1, out_features, 4)        # bias
            + 2 * padded(tb, out_features, 4)       # output blocks
            + padded(tb, out_features, 4))          # f32 accumulator scratch
    limit = max(need + (8 << 20), 32 << 20)         # headroom for compiler scratch
    return int(min(limit, (capacity * 3) // 4))


def net_forward(feats_nchw, weight, bias):
    """feats_nchw: (B, 512, H, W) features entering the avg-pool stage (f32 or
    bf16).  weight: (2, 512), bias: (2,).  Returns (B, 2) f32 logits, matching
    Net.forward semantics from the pool onward."""
    B, C, H, W = feats_nchw.shape
    HW = H * W
    K = C * HW
    out_features = weight.shape[0]

    # Free contiguous flatten (C-major, HW-minor) — no HBM transpose.
    x = feats_nchw.reshape(B, K)
    # Fold the global-average-pool into the Linear weight:
    #   W_big[c*HW + s, o] = weight[o, c] / HW
    # so GAP + Linear become one lane-dense MXU matmul over K = C*HW.
    wt = (jnp.repeat(weight.astype(jnp.float32).T, HW, axis=0)
          * jnp.float32(1.0 / HW)).astype(x.dtype)            # (K, OUT)
    b = bias.reshape(1, out_features).astype(jnp.float32)     # (1, OUT)

    capacity = _vmem_capacity_bytes()
    slab_budget = min(capacity // 3, 48 * 1024 * 1024)        # per-chip budget
    x_isz = jnp.dtype(x.dtype).itemsize
    w_isz = jnp.dtype(wt.dtype).itemsize
    tb, tk = _choose_tiles(B, K, x_isz, w_isz, out_features, slab_budget)
    grid = (pl.cdiv(B, tb), pl.cdiv(K, tk))

    return pl.pallas_call(
        gap_linear_kernel,
        out_shape=jax.ShapeDtypeStruct((B, out_features), jnp.float32),
        grid_spec=pltpu.PrefetchScalarGridSpec(
            num_scalar_prefetch=0,
            grid=grid,
            in_specs=[
                # Lane-dense feature block, pipelined over both grid axes.
                pl.BlockSpec((tb, tk), lambda i, k: (i, k)),
                # Weight slice along K (raw bytes tiny; padding bounded by tk cap).
                pl.BlockSpec((tk, out_features), lambda i, k: (k, 0)),
                # Bias: constant block index -> VMEM-resident across the grid.
                pl.BlockSpec((1, out_features), lambda i, k: (0, 0)),
            ],
            out_specs=pl.BlockSpec((tb, out_features), lambda i, k: (i, 0)),
            scratch_shapes=[pltpu.VMEM((tb, out_features), jnp.float32)],
        ),
        compiler_params=pltpu.CompilerParams(
            dimension_semantics=("parallel", "arbitrary"),
            vmem_limit_bytes=_vmem_limit_bytes(
                tb, tk, out_features, x_isz, w_isz, capacity)),
    )(x, wt, b)


def init_linear_params(key, in_features=512, out_features=2):
    """Deterministic init matching nn.Linear default: U(-1/sqrt(in), 1/sqrt(in))."""
    kw, kb = jax.random.split(key)
    bound = 1.0 / (in_features ** 0.5)
    weight = jax.random.uniform(kw, (out_features, in_features),
                                minval=-bound, maxval=bound, dtype=jnp.float32)
    bias = jax.random.uniform(kb, (out_features,),
                              minval=-bound, maxval=bound, dtype=jnp.float32)
    return weight, bias


if __name__ == "__main__":
    key = jax.random.PRNGKey(0)
    k_feat, k_param = jax.random.split(key)

    # Feature map entering the ResNet-18 avg-pool stage (true tail shape is
    # (B, 512, 7, 7)); channel count must be 512 to match Linear(512, 2).
    B, C, H, W = 2, 512, 7, 7
    feats = jax.random.normal(k_feat, (B, C, H, W), dtype=jnp.float32)
    weight, bias = init_linear_params(k_param, in_features=C, out_features=2)

    out = net_forward(feats, weight, bias)
    out = jax.block_until_ready(out)

    # Pure-JAX reference (avg-pool + flatten + linear), mirroring Net.forward.
    ref = jnp.mean(feats, axis=(2, 3)) @ weight.T + bias
    assert out.shape == (B, 2)
    assert jnp.allclose(out, ref, rtol=5e-3, atol=5e-3), "mismatch vs reference"

    print("KERNEL_OK")
</pallas_src>

<mosaic_0001>
module attributes {stable_mosaic.version = 11 : i64} {
  func.func @gap_linear_kernel(%arg0: i32, %arg1: i32, %arg2: memref<2x6272xf32, #tpu.memory_space<vmem>>, %arg3: memref<6272x2xf32, #tpu.memory_space<vmem>>, %arg4: memref<1x2xf32, #tpu.memory_space<vmem>>, %arg5: memref<2x2xf32, #tpu.memory_space<vmem>>, %arg6: memref<2x2xf32, #tpu.memory_space<vmem>>) attributes {dimension_semantics = [#tpu.dimension_semantics<parallel>, #tpu.dimension_semantics<arbitrary>], iteration_bounds = array<i64: 1, 4>, scalar_prefetch = 0 : i64, scratch_operands = 1 : i64, tpu.core_type = #tpu.core_type<tc>, window_params = [{transform_indices = @transform_0, window_bounds = array<i64: 2, 6272>}, {transform_indices = @transform_1, window_bounds = array<i64: 6272, 2>}, {pipeline_mode = #tpu.pipeline_mode<synchronous>, transform_indices = @transform_2, window_bounds = array<i64: 1, 2>}, {transform_indices = @transform_3, window_bounds = array<i64: 2, 2>}]} {
    %c0_i32 = arith.constant 0 : i32
    %0 = arith.cmpi eq, %arg1, %c0_i32 : i32
    %1 = arith.extui %0 : i1 to i32
    %c0_i32_0 = arith.constant 0 : i32
    %2 = arith.cmpi ne, %1, %c0_i32_0 : i32
    scf.if %2 {
      %cst_9 = arith.constant 0.000000e+00 : f32
      %12 = vector.broadcast %cst_9 : f32 to vector<2x2xf32>
      %c0_10 = arith.constant 0 : index
      %c0_11 = arith.constant 0 : index
      %13 = vector.load %arg6[%c0_10, %c0_11] : memref<2x2xf32, #tpu.memory_space<vmem>>, vector<2x2xf32>
      tpu.vector_store %arg6[%c0_10, %c0_11], %12 {strides = array<i32>} : memref<2x2xf32, #tpu.memory_space<vmem>>, vector<2x2xf32>,
    } else {
    }
    %c0 = arith.constant 0 : index
    %c0_1 = arith.constant 0 : index
    %3 = vector.load %arg6[%c0, %c0_1] : memref<2x2xf32, #tpu.memory_space<vmem>>, vector<2x2xf32>
    %c0_2 = arith.constant 0 : index
    %c0_3 = arith.constant 0 : index
    %4 = vector.load %arg2[%c0_2, %c0_3] : memref<2x6272xf32, #tpu.memory_space<vmem>>, vector<2x6272xf32>
    %c0_4 = arith.constant 0 : index
    %c0_5 = arith.constant 0 : index
    %5 = vector.load %arg3[%c0_4, %c0_5] : memref<6272x2xf32, #tpu.memory_space<vmem>>, vector<6272x2xf32>
    %cst = arith.constant dense<0.000000e+00> : vector<2x2xf32>
    %6 = tpu.matmul %4, %5, %cst {dimension_numbers = #tpu.dot_dimension_numbers<[1], [0], [0], [1], [0, 0, 1, 1], [], []>} : vector<2x6272xf32>, vector<6272x2xf32>, vector<2x2xf32> -> vector<2x2xf32>
    %7 = arith.addf %3, %6 : vector<2x2xf32>
    %c0_6 = arith.constant 0 : index
    %c0_7 = arith.constant 0 : index
    %8 = vector.load %arg6[%c0_6, %c0_7] : memref<2x2xf32, #tpu.memory_space<vmem>>, vector<2x2xf32>
    tpu.vector_store %arg6[%c0_6, %c0_7], %7 {strides = array<i32>} : memref<2x2xf32, #tpu.memory_space<vmem>>, vector<2x2xf32>,
    %c3_i32 = arith.constant 3 : i32
    %9 = arith.cmpi eq, %arg1, %c3_i32 : i32
    %10 = arith.extui %9 : i1 to i32
    %c0_i32_8 = arith.constant 0 : i32
    %11 = arith.cmpi ne, %10, %c0_i32_8 : i32
    scf.if %11 {
      %c0_9 = arith.constant 0 : index
      %c0_10 = arith.constant 0 : index
      %12 = vector.load %arg6[%c0_9, %c0_10] : memref<2x2xf32, #tpu.memory_space<vmem>>, vector<2x2xf32>
      %c0_11 = arith.constant 0 : index
      %c0_12 = arith.constant 0 : index
      %13 = vector.load %arg4[%c0_11, %c0_12] : memref<1x2xf32, #tpu.memory_space<vmem>>, vector<1x2xf32>
      %14 = vector.broadcast %13 : vector<1x2xf32> to vector<2x2xf32>
      %15 = arith.addf %12, %14 : vector<2x2xf32>
      %c0_13 = arith.constant 0 : index
      %c0_14 = arith.constant 0 : index
      %16 = vector.load %arg5[%c0_13, %c0_14] : memref<2x2xf32, #tpu.memory_space<vmem>>, vector<2x2xf32>
      tpu.vector_store %arg5[%c0_13, %c0_14], %15 {strides = array<i32>} : memref<2x2xf32, #tpu.memory_space<vmem>>, vector<2x2xf32>,
    } else {
    }
    return
  }
  func.func @transform_0(%arg0: i32, %arg1: i32) -> (i32, i32) {
    %c0_i32 = arith.constant 0 : i32
    return %arg0, %arg1 : i32, i32
  }
  func.func @transform_1(%arg0: i32, %arg1: i32) -> (i32, i32) {
    %c0_i32 = arith.constant 0 : i32
    %c0_i32_0 = arith.constant 0 : i32
    return %arg1, %c0_i32 : i32, i32
  }
  func.func @transform_2(%arg0: i32, %arg1: i32) -> (i32, i32) {
    %c0_i32 = arith.constant 0 : i32
    %c0_i32_0 = arith.constant 0 : i32
    %c0_i32_1 = arith.constant 0 : i32
    return %c0_i32, %c0_i32_0 : i32, i32
  }
  func.func @transform_3(%arg0: i32, %arg1: i32) -> (i32, i32) {
    %c0_i32 = arith.constant 0 : i32
    %c0_i32_0 = arith.constant 0 : i32
    return %arg0, %c0_i32 : i32, i32
  }
}

</mosaic_0001>

<llo_original>
// kernel: tpu_custom_call.1
$region0: #{tpu_custom_call.1}
  #allocation0 [shape = 'u32[]', space=smem, size = 0x4, offset = 0x4, fixed_abs, tag = 'smem constant byte address 0x4 - core index']
  #allocation1 [shape = 'u32[144,128]{1,0:T(1,128)}', space=vmem, size = 0x12000, scoped, tag = 'internal scratch']
  #allocation2 [shape = 'f32[2,2]{1,0:T(2,128)}', space=vmem, size = 0x400, scoped, tag = 'scratch operand']
  %s0 = inlined_call_operand.vmem [shape: f32[2,25088], index: 0, kind: input, shape index: {}]
  %s1 = inlined_call_operand.vmem [shape: f32[25088,2], index: 1, kind: input, shape index: {}]
  %s2 = inlined_call_operand.vmem [shape: f32[1,2], index: 2, kind: input, shape index: {}]
  %s3 = inlined_call_operand.hbm [shape: f32[2,2], index: 3, kind: output, shape index: {}]
  %s4 = sld [smem:[#allocation0]]
  $region53: #{tpu_custom_call.1} parent=0
    _
  %s6 = ssub.s32 1, %s4
  %s7 = scalar_select 0, %s6, %s4
  $region1: #{tpu_custom_call.1} parent=0
    #allocation3 [shape = 'u8[1024]{0}', space=vmem, size = 0x400, scoped, tag = 'output window, operand 0, single buffered']
    #allocation4 [shape = 's32[2]{0}', space=sflag, size = 0x8, scoped, tag = 'scoped memory for tpu_custom_call.1']
    %8 = vsyncpa [#allocation4], 0
    loop: start=0, step=1, limit=6
    $region2: #{tpu_custom_call.1} parent=1 // loop_pre_header
      _
    $region3: #{tpu_custom_call.1} parent=1 // loop_header
      %s10 = sphi 0, %s14
      %p11 = scmp.ge.s32.totalorder %s10, 6
      %s17 = sphi 0, %s29
      %s18 = sphi 0, %s25
      %s19 = sphi 0, %s17
      %s20 = sphi 0, %s18
      %s21 = sphi 0, %s19
      %s22 = sphi 0, %s20
      %s34 = sphi 0, %s36
      %s37 = sphi 0, %s34
      %s38 = sphi 0, %s37
      %s54 = sphi 0, %s38
      %s60 = sphi 0, %s62
      %s63 = sphi 0, %s60
      %s64 = sphi 0, %s63
      %s80 = sphi 0, %s64
      %s84 = sphi 0, %s84
      %s86 = sphi 0, %s84
      %s87 = sphi 0, %s86
      %s101 = sphi 0, %s87
      %s107 = sphi 0, %s109
      %s110 = sphi 0, %s107
      %s111 = sphi 0, %s110
      %s127 = sphi 0, %s111
    $region4: #{tpu_custom_call.1} parent=1 // loop_header_branch
      %13 = sbr.rel (%p11) target = $region8
    $region5: #{tpu_custom_call.1} parent=1 // loop_body
      %s15 = ssub.s32 %s10, 1
      %s16 = ssub.s32 %s10, 2
      %s23 = sadd.s32 1, %s18
      %p24 = scmp.ge.s32.totalorder %s23, 4
      %s25 = scalar_select %p24, 0, %s23
      %s26 = sadd.s32 1, %s17
      %s27 = scalar_select %p24, %s26, %s17
      %p28 = scmp.ge.s32.totalorder %s27, 1
      %s29 = scalar_select %p28, 0, %s27
      %s30 = ssub.s32 %s17, %s29
      %s31 = ssub.s32 %s18, %s25
      %s32 = sor.u32 %s30, %s31
      %p33 = scmp.eq.s32.totalorder %s32, 0
      %s35 = sadd.s32 %s34, 1
      %s36 = scalar_select %p33, %s34, %s35
      %p39 = pneg %p33
      %p40 = scmp.eq.s32.totalorder %s10, 3
      %p41 = por %p39, %p40
      %p42 = scmp.ne.s32.totalorder %s34, %s37
      %p43 = scmp.eq.s32.totalorder %s10, 0
      %p44 = por %p42, %p43
      %p45 = scmp.ne.s32.totalorder %s34, %s37
      %p46 = scmp.eq.s32.totalorder %s15, 3
      %p47 = por %p45, %p46
      %p48 = scmp.ne.s32.totalorder %s37, %s38
      %p49 = scmp.eq.s32.totalorder %s15, 0
      %p50 = por %p48, %p49
      %p51 = scmp.ne.s32.totalorder %s37, %s38
      %p52 = scmp.eq.s32.totalorder %s16, 3
      %p53 = por %p51, %p52
      %p55 = scmp.ne.s32.totalorder %s38, %s54
      %p56 = scmp.eq.s32.totalorder %s16, 0
      %p57 = por %p55, %p56
      %s58 = ssub.s32 %s18, %s25
      %p59 = scmp.eq.s32.totalorder %s58, 0
      %s61 = sadd.s32 %s60, 1
      %s62 = scalar_select %p59, %s60, %s61
      %p65 = pneg %p59
      %p66 = scmp.eq.s32.totalorder %s10, 3
      %p67 = por %p65, %p66
      %p68 = scmp.ne.s32.totalorder %s60, %s63
      %p69 = scmp.eq.s32.totalorder %s10, 0
      %p70 = por %p68, %p69
      %p71 = scmp.ne.s32.totalorder %s60, %s63
      %p72 = scmp.eq.s32.totalorder %s15, 3
      %p73 = por %p71, %p72
      %p74 = scmp.ne.s32.totalorder %s63, %s64
      %p75 = scmp.eq.s32.totalorder %s15, 0
      %p76 = por %p74, %p75
      %p77 = scmp.ne.s32.totalorder %s63, %s64
      %p78 = scmp.eq.s32.totalorder %s16, 3
      %p79 = por %p77, %p78
      %p81 = scmp.ne.s32.totalorder %s64, %s80
      %p82 = scmp.eq.s32.totalorder %s16, 0
      %p83 = por %p81, %p82
      %s85 = sadd.s32 %s84, 1
      %p88 = scmp.eq.s32.totalorder %s10, 3
      %p89 = scmp.ne.s32.totalorder %s84, %s86
      %p90 = scmp.eq.s32.totalorder %s10, 0
      %p91 = por %p89, %p90
      %p92 = scmp.ne.s32.totalorder %s84, %s86
      %p93 = scmp.eq.s32.totalorder %s15, 3
      %p94 = por %p92, %p93
      %p95 = scmp.ne.s32.totalorder %s86, %s87
      %p96 = scmp.eq.s32.totalorder %s15, 0
      %p97 = por %p95, %p96
      %p98 = scmp.ne.s32.totalorder %s86, %s87
      %p99 = scmp.eq.s32.totalorder %s16, 3
      %p100 = por %p98, %p99
      %p102 = scmp.ne.s32.totalorder %s87, %s101
      %p103 = scmp.eq.s32.totalorder %s16, 0
      %p104 = por %p102, %p103
      %s105 = ssub.s32 %s17, %s29
      %p106 = scmp.eq.s32.totalorder %s105, 0
      %s108 = sadd.s32 %s107, 1
      %s109 = scalar_select %p106, %s107, %s108
      %p112 = pneg %p106
      %p113 = scmp.eq.s32.totalorder %s10, 3
      %p114 = por %p112, %p113
      %p115 = scmp.ne.s32.totalorder %s107, %s110
      %p116 = scmp.eq.s32.totalorder %s10, 0
      %p117 = por %p115, %p116
      %p118 = scmp.ne.s32.totalorder %s107, %s110
      %p119 = scmp.eq.s32.totalorder %s15, 3
      %p120 = por %p118, %p119
      %p121 = scmp.ne.s32.totalorder %s110, %s111
      %p122 = scmp.eq.s32.totalorder %s15, 0
      %p123 = por %p121, %p122
      %p124 = scmp.ne.s32.totalorder %s110, %s111
      %p125 = scmp.eq.s32.totalorder %s16, 3
      %p126 = por %p124, %p125
      %p128 = scmp.ne.s32.totalorder %s111, %s127
      %p129 = scmp.eq.s32.totalorder %s16, 0
      %p130 = por %p128, %p129
      %p131 = scmp.le.s32.totalorder 1, %s10
      %p132 = scmp.lt.s32.totalorder %s10, 5
      %p133 = pnand %p131, %p132
      %p134 = pneg %p133
      // Predicated region
      $region9: #{tpu_custom_call.1} parent=5 // pred_check
        _
      $region10: #{tpu_custom_call.1} parent=5 // pred_check_branch
        %136 = sbr.rel (%p133) target = $region12
      $region11: #{tpu_custom_call.1} parent=5 // pred_region
        %s137 = ssub.s32 %s10, 1
        // Predicated region
        $region13: #{tpu_custom_call.1} parent=11 // pred_check
          %p138 = pneg %p97
        $region14: #{tpu_custom_call.1} parent=11 // pred_check_branch
          %140 = sbr.rel (%p138) target = $region16
        $region15: #{tpu_custom_call.1} parent=11 // pred_region
          _
        $region16: #{tpu_custom_call.1} parent=11 // pred_fallthru
          _
      $region12: #{tpu_custom_call.1} parent=5 // pred_fallthru
        _
      %p141 = scmp.lt.s32.totalorder %s10, 4
      // Predicated region
      $region17: #{tpu_custom_call.1} parent=5 // pred_check
        %p142 = pneg %p141
      $region18: #{tpu_custom_call.1} parent=5 // pred_check_branch
        %144 = sbr.rel (%p142) target = $region20
      $region19: #{tpu_custom_call.1} parent=5 // pred_region
        // Predicated region
        $region21: #{tpu_custom_call.1} parent=19 // pred_check
          %p145 = pneg %p44
        $region22: #{tpu_custom_call.1} parent=19 // pred_check_branch
          %147 = sbr.rel (%p145) target = $region24
        $region23: #{tpu_custom_call.1} parent=19 // pred_region
          %s148 = smul.u32 49, %s18
          %p149 = scmp.lt.s32.totalorder %s17, 0
          %s150 = scalar_select %p149, %s17, 0
          %p151 = scmp.lt.s32.totalorder %s148, 195
          %s152 = scalar_select %p151, %s148, 195
          %s153 = smul.addr %s150, 196
          %s154 = sadd.s32 %s152, %s153
          %s155 = smul.addr %s154, 2
          %s156 = scalar_lea.vmem %s0, %s155
          %s157 = smul.u32 49, %s18
        $region24: #{tpu_custom_call.1} parent=19 // pred_fallthru
          _
        // Predicated region
        $region25: #{tpu_custom_call.1} parent=19 // pred_check
          %p158 = pneg %p70
        $region26: #{tpu_custom_call.1} parent=19 // pred_check_branch
          %160 = sbr.rel (%p158) target = $region28
        $region27: #{tpu_custom_call.1} parent=19 // pred_region
          %s161 = smul.u32 784, %s18
          %p162 = scmp.lt.s32.totalorder %s161, 3135
          %s163 = scalar_select %p162, %s161, 3135
          %s164 = smul.addr %s163, 8
          %s165 = scalar_lea.vmem %s1, %s164
          %s166 = smul.u32 784, %s18
        $region28: #{tpu_custom_call.1} parent=19 // pred_fallthru
          _
      $region20: #{tpu_custom_call.1} parent=5 // pred_fallthru
        _
      %p167 = scmp.le.s32.totalorder 1, %s10
      %p168 = scmp.lt.s32.totalorder %s10, 5
      %p169 = pnand %p167, %p168
      %p170 = pneg %p169
      // Predicated region
      $region29: #{tpu_custom_call.1} parent=5 // pred_check
        _
      $region30: #{tpu_custom_call.1} parent=5 // pred_check_branch
        %172 = sbr.rel (%p169) target = $region32
      $region31: #{tpu_custom_call.1} parent=5 // pred_region
        %s173 = ssub.s32 %s10, 1
        %s174 = smul.u32 49, %s20
        %p175 = scmp.lt.s32.totalorder %s19, 0
        %s176 = scalar_select %p175, %s19, 0
        %p177 = scmp.lt.s32.totalorder %s174, 195
        %s178 = scalar_select %p177, %s174, 195
        %s179 = smul.addr %s176, 196
        %s180 = sadd.s32 %s178, %s179
        %s181 = smul.addr %s180, 2
        %s182 = scalar_lea.vmem %s0, %s181
        %p183 = pneg %p50
        %p184 = pneg %p47
        %s185 = smul.u32 784, %s20
        %p186 = scmp.lt.s32.totalorder %s185, 3135
        %s187 = scalar_select %p186, %s185, 3135
        %s188 = smul.addr %s187, 8
        %s189 = scalar_lea.vmem %s1, %s188
        %p190 = pneg %p76
        %p191 = pneg %p73
        %p192 = pneg %p97
        %p193 = pneg %p94
        %p194 = pneg %p123
        %p195 = pneg %p120
        %s196 = smul.u32 49, %s20
        %p197 = scmp.lt.s32.totalorder %s19, 0
        %s198 = scalar_select %p197, %s19, 0
        %p199 = scmp.lt.s32.totalorder %s196, 195
        %s200 = scalar_select %p199, %s196, 195
        %s201 = smul.addr %s198, 196
        %s202 = sadd.s32 %s200, %s201
        %s203 = smul.addr %s202, 2
        %s204 = scalar_lea.vmem %s0, %s203
        %s205 = smul.u32 49, %s20
        %s206 = smul.u32 784, %s20
        %p207 = scmp.lt.s32.totalorder %s206, 3135
        %s208 = scalar_select %p207, %s206, 3135
        %s209 = smul.addr %s208, 8
        %s210 = scalar_lea.vmem %s1, %s209
        %s211 = smul.u32 784, %s20
        %p212 = scmp.eq.s32.totalorder %s20, 0
        // Predicated region
        $region33: #{tpu_custom_call.1} parent=31 // pred_check
          %p213 = pneg %p212
        $region34: #{tpu_custom_call.1} parent=31 // pred_check_branch
          %215 = sbr.rel (%p213) target = $region36
        $region35: #{tpu_custom_call.1} parent=31 // pred_region
          %vm216 = vcmask 9216
          %217 = vst.msk [vmem:[#allocation2] sm:$0x3] %vm216, 0.0
        $region36: #{tpu_custom_call.1} parent=31 // pred_fallthru
          _
        %v218 = vld [vmem:[#allocation2] sm:$0x3]
        %v219 = vld [vmem:[%s204] sm:$0xff]
        %v220 = vld [vmem:[%s204 + $0x8] sm:$0xff]
        %v221 = vld [vmem:[%s204 + $0x10] sm:$0xff]
        %v222 = vld [vmem:[%s204 + $0x18] sm:$0xff]
        %v223 = vld [vmem:[%s204 + $0x20] sm:$0xff]
        %v224 = vld [vmem:[%s204 + $0x28] sm:$0xff]
        %v225 = vld [vmem:[%s204 + $0x30] sm:$0xff]
        %v226 = vld [vmem:[%s204 + $0x38] sm:$0xff]
        %v227 = vld [vmem:[%s204 + $0x40] sm:$0xff]
        %v228 = vld [vmem:[%s204 + $0x48] sm:$0xff]
        %v229 = vld [vmem:[%s204 + $0x50] sm:$0xff]
        %v230 = vld [vmem:[%s204 + $0x58] sm:$0xff]
        %v231 = vld [vmem:[%s204 + $0x60] sm:$0x3]
        %v232 = vld [vmem:[%s210] sm:$0xff]
        %v233 = vld [vmem:[%s210 + $0x8] sm:$0xff]
        %v234 = vld [vmem:[%s210 + $0x10] sm:$0xff]
        %v235 = vld [vmem:[%s210 + $0x18] sm:$0xff]
        %v236 = vld [vmem:[%s210 + $0x20] sm:$0xff]
        %v237 = vld [vmem:[%s210 + $0x28] sm:$0xff]
        %v238 = vld [vmem:[%s210 + $0x30] sm:$0xff]
        %v239 = vld [vmem:[%s210 + $0x38] sm:$0xff]
        %v240 = vld [vmem:[%s210 + $0x40] sm:$0xff]
        %v241 = vld [vmem:[%s210 + $0x48] sm:$0xff]
        %v242 = vld [vmem:[%s210 + $0x50] sm:$0xff]
        %v243 = vld [vmem:[%s210 + $0x58] sm:$0xff]
        %v244 = vld [vmem:[%s210 + $0x60] sm:$0xff]
        %v245 = vld [vmem:[%s210 + $0x68] sm:$0xff]
        %v246 = vld [vmem:[%s210 + $0x70] sm:$0xff]
        %v247 = vld [vmem:[%s210 + $0x78] sm:$0xff]
        %v248 = vld [vmem:[%s210 + $0x80] sm:$0xff]
        %v249 = vld [vmem:[%s210 + $0x88] sm:$0xff]
        %v250 = vld [vmem:[%s210 + $0x90] sm:$0xff]
        %v251 = vld [vmem:[%s210 + $0x98] sm:$0xff]
        %v252 = vld [vmem:[%s210 + $0xa0] sm:$0xff]
        %v253 = vld [vmem:[%s210 + $0xa8] sm:$0xff]
        %v254 = vld [vmem:[%s210 + $0xb0] sm:$0xff]
        %v255 = vld [vmem:[%s210 + $0xb8] sm:$0xff]
        %v256 = vld [vmem:[%s210 + $0xc0] sm:$0xff]
        %v257 = vld [vmem:[%s210 + $0xc8] sm:$0xff]
        %v258 = vld [vmem:[%s210 + $0xd0] sm:$0xff]
        %v259 = vld [vmem:[%s210 + $0xd8] sm:$0xff]
        %v260 = vld [vmem:[%s210 + $0xe0] sm:$0xff]
        %v261 = vld [vmem:[%s210 + $0xe8] sm:$0xff]
        %v262 = vld [vmem:[%s210 + $0xf0] sm:$0xff]
        %v263 = vld [vmem:[%s210 + $0xf8] sm:$0xff]
        %v264 = vld [vmem:[%s210 + $0x100] sm:$0xff]
        %v265 = vld [vmem:[%s210 + $0x108] sm:$0xff]
        %v266 = vld [vmem:[%s210 + $0x110] sm:$0xff]
        %v267 = vld [vmem:[%s210 + $0x118] sm:$0xff]
        %v268 = vld [vmem:[%s210 + $0x120] sm:$0xff]
        %v269 = vld [vmem:[%s210 + $0x128] sm:$0xff]
        %v270 = vld [vmem:[%s210 + $0x130] sm:$0xff]
        %v271 = vld [vmem:[%s210 + $0x138] sm:$0xff]
        %v272 = vld [vmem:[%s210 + $0x140] sm:$0xff]
        %v273 = vld [vmem:[%s210 + $0x148] sm:$0xff]
        %v274 = vld [vmem:[%s210 + $0x150] sm:$0xff]
        %v275 = vld [vmem:[%s210 + $0x158] sm:$0xff]
        %v276 = vld [vmem:[%s210 + $0x160] sm:$0xff]
        %v277 = vld [vmem:[%s210 + $0x168] sm:$0xff]
        %v278 = vld [vmem:[%s210 + $0x170] sm:$0xff]
        %v279 = vld [vmem:[%s210 + $0x178] sm:$0xff]
        %v280 = vld [vmem:[%s210 + $0x180] sm:$0xff]
        %v281 = vld [vmem:[%s210 + $0x188] sm:$0xff]
        %v282 = vld [vmem:[%s210 + $0x190] sm:$0xff]
        %v283 = vld [vmem:[%s210 + $0x198] sm:$0xff]
        %v284 = vld [vmem:[%s210 + $0x1a0] sm:$0xff]
        %v285 = vld [vmem:[%s210 + $0x1a8] sm:$0xff]
        %v286 = vld [vmem:[%s210 + $0x1b0] sm:$0xff]
        %v287 = vld [vmem:[%s210 + $0x1b8] sm:$0xff]
        %v288 = vld [vmem:[%s210 + $0x1c0] sm:$0xff]
        %v289 = vld [vmem:[%s210 + $0x1c8] sm:$0xff]
        %v290 = vld [vmem:[%s210 + $0x1d0] sm:$0xff]
        %v291 = vld [vmem:[%s210 + $0x1d8] sm:$0xff]
        %v292 = vld [vmem:[%s210 + $0x1e0] sm:$0xff]
        %v293 = vld [vmem:[%s210 + $0x1e8] sm:$0xff]
        %v294 = vld [vmem:[%s210 + $0x1f0] sm:$0xff]
        %v295 = vld [vmem:[%s210 + $0x1f8] sm:$0xff]
        %v296 = vld [vmem:[%s210 + $0x200] sm:$0xff]
        %v297 = vld [vmem:[%s210 + $0x208] sm:$0xff]
        %v298 = vld [vmem:[%s210 + $0x210] sm:$0xff]
        %v299 = vld [vmem:[%s210 + $0x218] sm:$0xff]
        %v300 = vld [vmem:[%s210 + $0x220] sm:$0xff]
        %v301 = vld [vmem:[%s210 + $0x228] sm:$0xff]
        %v302 = vld [vmem:[%s210 + $0x230] sm:$0xff]
        %v303 = vld [vmem:[%s210 + $0x238] sm:$0xff]
        %v304 = vld [vmem:[%s210 + $0x240] sm:$0xff]
        %v305 = vld [vmem:[%s210 + $0x248] sm:$0xff]
        %v306 = vld [vmem:[%s210 + $0x250] sm:$0xff]
        %v307 = vld [vmem:[%s210 + $0x258] sm:$0xff]
        %v308 = vld [vmem:[%s210 + $0x260] sm:$0xff]
        %v309 = vld [vmem:[%s210 + $0x268] sm:$0xff]
        %v310 = vld [vmem:[%s210 + $0x270] sm:$0xff]
        %v311 = vld [vmem:[%s210 + $0x278] sm:$0xff]
        %v312 = vld [vmem:[%s210 + $0x280] sm:$0xff]
        %v313 = vld [vmem:[%s210 + $0x288] sm:$0xff]
        %v314 = vld [vmem:[%s210 + $0x290] sm:$0xff]
        %v315 = vld [vmem:[%s210 + $0x298] sm:$0xff]
        %v316 = vld [vmem:[%s210 + $0x2a0] sm:$0xff]
        %v317 = vld [vmem:[%s210 + $0x2a8] sm:$0xff]
        %v318 = vld [vmem:[%s210 + $0x2b0] sm:$0xff]
        %v319 = vld [vmem:[%s210 + $0x2b8] sm:$0xff]
        %v320 = vld [vmem:[%s210 + $0x2c0] sm:$0xff]
        %v321 = vld [vmem:[%s210 + $0x2c8] sm:$0xff]
        %v322 = vld [vmem:[%s210 + $0x2d0] sm:$0xff]
        %v323 = vld [vmem:[%s210 + $0x2d8] sm:$0xff]
        %v324 = vld [vmem:[%s210 + $0x2e0] sm:$0xff]
        %v325 = vld [vmem:[%s210 + $0x2e8] sm:$0xff]
        %v326 = vld [vmem:[%s210 + $0x2f0] sm:$0xff]
        %v327 = vld [vmem:[%s210 + $0x2f8] sm:$0xff]
        %v328 = vld [vmem:[%s210 + $0x300] sm:$0xff]
        %v329 = vld [vmem:[%s210 + $0x308] sm:$0xff]
        %v330 = vld [vmem:[%s210 + $0x310] sm:$0xff]
        %v331 = vld [vmem:[%s210 + $0x318] sm:$0xff]
        %v332 = vld [vmem:[%s210 + $0x320] sm:$0xff]
        %v333 = vld [vmem:[%s210 + $0x328] sm:$0xff]
        %v334 = vld [vmem:[%s210 + $0x330] sm:$0xff]
        %v335 = vld [vmem:[%s210 + $0x338] sm:$0xff]
        %v336 = vld [vmem:[%s210 + $0x340] sm:$0xff]
        %v337 = vld [vmem:[%s210 + $0x348] sm:$0xff]
        %v338 = vld [vmem:[%s210 + $0x350] sm:$0xff]
        %v339 = vld [vmem:[%s210 + $0x358] sm:$0xff]
        %v340 = vld [vmem:[%s210 + $0x360] sm:$0xff]
        %v341 = vld [vmem:[%s210 + $0x368] sm:$0xff]
        %v342 = vld [vmem:[%s210 + $0x370] sm:$0xff]
        %v343 = vld [vmem:[%s210 + $0x378] sm:$0xff]
        %v344 = vld [vmem:[%s210 + $0x380] sm:$0xff]
        %v345 = vld [vmem:[%s210 + $0x388] sm:$0xff]
        %v346 = vld [vmem:[%s210 + $0x390] sm:$0xff]
        %v347 = vld [vmem:[%s210 + $0x398] sm:$0xff]
        %v348 = vld [vmem:[%s210 + $0x3a0] sm:$0xff]
        %v349 = vld [vmem:[%s210 + $0x3a8] sm:$0xff]
        %v350 = vld [vmem:[%s210 + $0x3b0] sm:$0xff]
        %v351 = vld [vmem:[%s210 + $0x3b8] sm:$0xff]
        %v352 = vld [vmem:[%s210 + $0x3c0] sm:$0xff]
        %v353 = vld [vmem:[%s210 + $0x3c8] sm:$0xff]
        %v354 = vld [vmem:[%s210 + $0x3d0] sm:$0xff]
        %v355 = vld [vmem:[%s210 + $0x3d8] sm:$0xff]
        %v356 = vld [vmem:[%s210 + $0x3e0] sm:$0xff]
        %v357 = vld [vmem:[%s210 + $0x3e8] sm:$0xff]
        %v358 = vld [vmem:[%s210 + $0x3f0] sm:$0xff]
        %v359 = vld [vmem:[%s210 + $0x3f8] sm:$0xff]
        %v360 = vld [vmem:[%s210 + $0x400] sm:$0xff]
        %v361 = vld [vmem:[%s210 + $0x408] sm:$0xff]
        %v362 = vld [vmem:[%s210 + $0x410] sm:$0xff]
        %v363 = vld [vmem:[%s210 + $0x418] sm:$0xff]
        %v364 = vld [vmem:[%s210 + $0x420] sm:$0xff]
        %v365 = vld [vmem:[%s210 + $0x428] sm:$0xff]
        %v366 = vld [vmem:[%s210 + $0x430] sm:$0xff]
        %v367 = vld [vmem:[%s210 + $0x438] sm:$0xff]
        %v368 = vld [vmem:[%s210 + $0x440] sm:$0xff]
        %v369 = vld [vmem:[%s210 + $0x448] sm:$0xff]
        %v370 = vld [vmem:[%s210 + $0x450] sm:$0xff]
        %v371 = vld [vmem:[%s210 + $0x458] sm:$0xff]
        %v372 = vld [vmem:[%s210 + $0x460] sm:$0xff]
        %v373 = vld [vmem:[%s210 + $0x468] sm:$0xff]
        %v374 = vld [vmem:[%s210 + $0x470] sm:$0xff]
        %v375 = vld [vmem:[%s210 + $0x478] sm:$0xff]
        %v376 = vld [vmem:[%s210 + $0x480] sm:$0xff]
        %v377 = vld [vmem:[%s210 + $0x488] sm:$0xff]
        %v378 = vld [vmem:[%s210 + $0x490] sm:$0xff]
        %v379 = vld [vmem:[%s210 + $0x498] sm:$0xff]
        %v380 = vld [vmem:[%s210 + $0x4a0] sm:$0xff]
        %v381 = vld [vmem:[%s210 + $0x4a8] sm:$0xff]
        %v382 = vld [vmem:[%s210 + $0x4b0] sm:$0xff]
        %v383 = vld [vmem:[%s210 + $0x4b8] sm:$0xff]
        %v384 = vld [vmem:[%s210 + $0x4c0] sm:$0xff]
        %v385 = vld [vmem:[%s210 + $0x4c8] sm:$0xff]
        %v386 = vld [vmem:[%s210 + $0x4d0] sm:$0xff]
        %v387 = vld [vmem:[%s210 + $0x4d8] sm:$0xff]
        %v388 = vld [vmem:[%s210 + $0x4e0] sm:$0xff]
        %v389 = vld [vmem:[%s210 + $0x4e8] sm:$0xff]
        %v390 = vld [vmem:[%s210 + $0x4f0] sm:$0xff]
        %v391 = vld [vmem:[%s210 + $0x4f8] sm:$0xff]
        %v392 = vld [vmem:[%s210 + $0x500] sm:$0xff]
        %v393 = vld [vmem:[%s210 + $0x508] sm:$0xff]
        %v394 = vld [vmem:[%s210 + $0x510] sm:$0xff]
        %v395 = vld [vmem:[%s210 + $0x518] sm:$0xff]
        %v396 = vld [vmem:[%s210 + $0x520] sm:$0xff]
        %v397 = vld [vmem:[%s210 + $0x528] sm:$0xff]
        %v398 = vld [vmem:[%s210 + $0x530] sm:$0xff]
        %v399 = vld [vmem:[%s210 + $0x538] sm:$0xff]
        %v400 = vld [vmem:[%s210 + $0x540] sm:$0xff]
        %v401 = vld [vmem:[%s210 + $0x548] sm:$0xff]
        %v402 = vld [vmem:[%s210 + $0x550] sm:$0xff]
        %v403 = vld [vmem:[%s210 + $0x558] sm:$0xff]
        %v404 = vld [vmem:[%s210 + $0x560] sm:$0xff]
        %v405 = vld [vmem:[%s210 + $0x568] sm:$0xff]
        %v406 = vld [vmem:[%s210 + $0x570] sm:$0xff]
        %v407 = vld [vmem:[%s210 + $0x578] sm:$0xff]
        %v408 = vld [vmem:[%s210 + $0x580] sm:$0xff]
        %v409 = vld [vmem:[%s210 + $0x588] sm:$0xff]
        %v410 = vld [vmem:[%s210 + $0x590] sm:$0xff]
        %v411 = vld [vmem:[%s210 + $0x598] sm:$0xff]
        %v412 = vld [vmem:[%s210 + $0x5a0] sm:$0xff]
        %v413 = vld [vmem:[%s210 + $0x5a8] sm:$0xff]
        %v414 = vld [vmem:[%s210 + $0x5b0] sm:$0xff]
        %v415 = vld [vmem:[%s210 + $0x5b8] sm:$0xff]
        %v416 = vld [vmem:[%s210 + $0x5c0] sm:$0xff]
        %v417 = vld [vmem:[%s210 + $0x5c8] sm:$0xff]
        %v418 = vld [vmem:[%s210 + $0x5d0] sm:$0xff]
        %v419 = vld [vmem:[%s210 + $0x5d8] sm:$0xff]
        %v420 = vld [vmem:[%s210 + $0x5e0] sm:$0xff]
        %v421 = vld [vmem:[%s210 + $0x5e8] sm:$0xff]
        %v422 = vld [vmem:[%s210 + $0x5f0] sm:$0xff]
        %v423 = vld [vmem:[%s210 + $0x5f8] sm:$0xff]
        %v424 = vld [vmem:[%s210 + $0x600] sm:$0xff]
        %v425 = vld [vmem:[%s210 + $0x608] sm:$0xff]
        %v426 = vld [vmem:[%s210 + $0x610] sm:$0xff]
        %v427 = vld [vmem:[%s210 + $0x618] sm:$0xff]
        %v428 = vld [vmem:[%s210 + $0x620] sm:$0xff]
        %v429 = vld [vmem:[%s210 + $0x628] sm:$0xff]
        %v430 = vld [vmem:[%s210 + $0x630] sm:$0xff]
        %v431 = vld [vmem:[%s210 + $0x638] sm:$0xff]
        %v432 = vld [vmem:[%s210 + $0x640] sm:$0xff]
        %v433 = vld [vmem:[%s210 + $0x648] sm:$0xff]
        %v434 = vld [vmem:[%s210 + $0x650] sm:$0xff]
        %v435 = vld [vmem:[%s210 + $0x658] sm:$0xff]
        %v436 = vld [vmem:[%s210 + $0x660] sm:$0xff]
        %v437 = vld [vmem:[%s210 + $0x668] sm:$0xff]
        %v438 = vld [vmem:[%s210 + $0x670] sm:$0xff]
        %v439 = vld [vmem:[%s210 + $0x678] sm:$0xff]
        %v440 = vld [vmem:[%s210 + $0x680] sm:$0xff]
        %v441 = vld [vmem:[%s210 + $0x688] sm:$0xff]
        %v442 = vld [vmem:[%s210 + $0x690] sm:$0xff]
        %v443 = vld [vmem:[%s210 + $0x698] sm:$0xff]
        %v444 = vld [vmem:[%s210 + $0x6a0] sm:$0xff]
        %v445 = vld [vmem:[%s210 + $0x6a8] sm:$0xff]
        %v446 = vld [vmem:[%s210 + $0x6b0] sm:$0xff]
        %v447 = vld [vmem:[%s210 + $0x6b8] sm:$0xff]
        %v448 = vld [vmem:[%s210 + $0x6c0] sm:$0xff]
        %v449 = vld [vmem:[%s210 + $0x6c8] sm:$0xff]
        %v450 = vld [vmem:[%s210 + $0x6d0] sm:$0xff]
        %v451 = vld [vmem:[%s210 + $0x6d8] sm:$0xff]
        %v452 = vld [vmem:[%s210 + $0x6e0] sm:$0xff]
        %v453 = vld [vmem:[%s210 + $0x6e8] sm:$0xff]
        %v454 = vld [vmem:[%s210 + $0x6f0] sm:$0xff]
        %v455 = vld [vmem:[%s210 + $0x6f8] sm:$0xff]
        %v456 = vld [vmem:[%s210 + $0x700] sm:$0xff]
        %v457 = vld [vmem:[%s210 + $0x708] sm:$0xff]
        %v458 = vld [vmem:[%s210 + $0x710] sm:$0xff]
        %v459 = vld [vmem:[%s210 + $0x718] sm:$0xff]
        %v460 = vld [vmem:[%s210 + $0x720] sm:$0xff]
        %v461 = vld [vmem:[%s210 + $0x728] sm:$0xff]
        %v462 = vld [vmem:[%s210 + $0x730] sm:$0xff]
        %v463 = vld [vmem:[%s210 + $0x738] sm:$0xff]
        %v464 = vld [vmem:[%s210 + $0x740] sm:$0xff]
        %v465 = vld [vmem:[%s210 + $0x748] sm:$0xff]
        %v466 = vld [vmem:[%s210 + $0x750] sm:$0xff]
        %v467 = vld [vmem:[%s210 + $0x758] sm:$0xff]
        %v468 = vld [vmem:[%s210 + $0x760] sm:$0xff]
        %v469 = vld [vmem:[%s210 + $0x768] sm:$0xff]
        %v470 = vld [vmem:[%s210 + $0x770] sm:$0xff]
        %v471 = vld [vmem:[%s210 + $0x778] sm:$0xff]
        %v472 = vld [vmem:[%s210 + $0x780] sm:$0xff]
        %v473 = vld [vmem:[%s210 + $0x788] sm:$0xff]
        %v474 = vld [vmem:[%s210 + $0x790] sm:$0xff]
        %v475 = vld [vmem:[%s210 + $0x798] sm:$0xff]
        %v476 = vld [vmem:[%s210 + $0x7a0] sm:$0xff]
        %v477 = vld [vmem:[%s210 + $0x7a8] sm:$0xff]
        %v478 = vld [vmem:[%s210 + $0x7b0] sm:$0xff]
        %v479 = vld [vmem:[%s210 + $0x7b8] sm:$0xff]
        %v480 = vld [vmem:[%s210 + $0x7c0] sm:$0xff]
        %v481 = vld [vmem:[%s210 + $0x7c8] sm:$0xff]
        %v482 = vld [vmem:[%s210 + $0x7d0] sm:$0xff]
        %v483 = vld [vmem:[%s210 + $0x7d8] sm:$0xff]
        %v484 = vld [vmem:[%s210 + $0x7e0] sm:$0xff]
        %v485 = vld [vmem:[%s210 + $0x7e8] sm:$0xff]
        %v486 = vld [vmem:[%s210 + $0x7f0] sm:$0xff]
        %v487 = vld [vmem:[%s210 + $0x7f8] sm:$0xff]
        %v488 = vld [vmem:[%s210 + $0x800] sm:$0xff]
        %v489 = vld [vmem:[%s210 + $0x808] sm:$0xff]
        %v490 = vld [vmem:[%s210 + $0x810] sm:$0xff]
        %v491 = vld [vmem:[%s210 + $0x818] sm:$0xff]
        %v492 = vld [vmem:[%s210 + $0x820] sm:$0xff]
        %v493 = vld [vmem:[%s210 + $0x828] sm:$0xff]
        %v494 = vld [vmem:[%s210 + $0x830] sm:$0xff]
        %v495 = vld [vmem:[%s210 + $0x838] sm:$0xff]
        %v496 = vld [vmem:[%s210 + $0x840] sm:$0xff]
        %v497 = vld [vmem:[%s210 + $0x848] sm:$0xff]
        %v498 = vld [vmem:[%s210 + $0x850] sm:$0xff]
        %v499 = vld [vmem:[%s210 + $0x858] sm:$0xff]
        %v500 = vld [vmem:[%s210 + $0x860] sm:$0xff]
        %v501 = vld [vmem:[%s210 + $0x868] sm:$0xff]
        %v502 = vld [vmem:[%s210 + $0x870] sm:$0xff]
        %v503 = vld [vmem:[%s210 + $0x878] sm:$0xff]
        %v504 = vld [vmem:[%s210 + $0x880] sm:$0xff]
        %v505 = vld [vmem:[%s210 + $0x888] sm:$0xff]
        %v506 = vld [vmem:[%s210 + $0x890] sm:$0xff]
        %v507 = vld [vmem:[%s210 + $0x898] sm:$0xff]
        %v508 = vld [vmem:[%s210 + $0x8a0] sm:$0xff]
        %v509 = vld [vmem:[%s210 + $0x8a8] sm:$0xff]
        %v510 = vld [vmem:[%s210 + $0x8b0] sm:$0xff]
        %v511 = vld [vmem:[%s210 + $0x8b8] sm:$0xff]
        %v512 = vld [vmem:[%s210 + $0x8c0] sm:$0xff]
        %v513 = vld [vmem:[%s210 + $0x8c8] sm:$0xff]
        %v514 = vld [vmem:[%s210 + $0x8d0] sm:$0xff]
        %v515 = vld [vmem:[%s210 + $0x8d8] sm:$0xff]
        %v516 = vld [vmem:[%s210 + $0x8e0] sm:$0xff]
        %v517 = vld [vmem:[%s210 + $0x8e8] sm:$0xff]
        %v518 = vld [vmem:[%s210 + $0x8f0] sm:$0xff]
        %v519 = vld [vmem:[%s210 + $0x8f8] sm:$0xff]
        %v520 = vld [vmem:[%s210 + $0x900] sm:$0xff]
        %v521 = vld [vmem:[%s210 + $0x908] sm:$0xff]
        %v522 = vld [vmem:[%s210 + $0x910] sm:$0xff]
        %v523 = vld [vmem:[%s210 + $0x918] sm:$0xff]
        %v524 = vld [vmem:[%s210 + $0x920] sm:$0xff]
        %v525 = vld [vmem:[%s210 + $0x928] sm:$0xff]
        %v526 = vld [vmem:[%s210 + $0x930] sm:$0xff]
        %v527 = vld [vmem:[%s210 + $0x938] sm:$0xff]
        %v528 = vld [vmem:[%s210 + $0x940] sm:$0xff]
        %v529 = vld [vmem:[%s210 + $0x948] sm:$0xff]
        %v530 = vld [vmem:[%s210 + $0x950] sm:$0xff]
        %v531 = vld [vmem:[%s210 + $0x958] sm:$0xff]
        %v532 = vld [vmem:[%s210 + $0x960] sm:$0xff]
        %v533 = vld [vmem:[%s210 + $0x968] sm:$0xff]
        %v534 = vld [vmem:[%s210 + $0x970] sm:$0xff]
        %v535 = vld [vmem:[%s210 + $0x978] sm:$0xff]
        %v536 = vld [vmem:[%s210 + $0x980] sm:$0xff]
        %v537 = vld [vmem:[%s210 + $0x988] sm:$0xff]
        %v538 = vld [vmem:[%s210 + $0x990] sm:$0xff]
        %v539 = vld [vmem:[%s210 + $0x998] sm:$0xff]
        %v540 = vld [vmem:[%s210 + $0x9a0] sm:$0xff]
        %v541 = vld [vmem:[%s210 + $0x9a8] sm:$0xff]
        %v542 = vld [vmem:[%s210 + $0x9b0] sm:$0xff]
        %v543 = vld [vmem:[%s210 + $0x9b8] sm:$0xff]
        %v544 = vld [vmem:[%s210 + $0x9c0] sm:$0xff]
        %v545 = vld [vmem:[%s210 + $0x9c8] sm:$0xff]
        %v546 = vld [vmem:[%s210 + $0x9d0] sm:$0xff]
        %v547 = vld [vmem:[%s210 + $0x9d8] sm:$0xff]
        %v548 = vld [vmem:[%s210 + $0x9e0] sm:$0xff]
        %v549 = vld [vmem:[%s210 + $0x9e8] sm:$0xff]
        %v550 = vld [vmem:[%s210 + $0x9f0] sm:$0xff]
        %v551 = vld [vmem:[%s210 + $0x9f8] sm:$0xff]
        %v552 = vld [vmem:[%s210 + $0xa00] sm:$0xff]
        %v553 = vld [vmem:[%s210 + $0xa08] sm:$0xff]
        %v554 = vld [vmem:[%s210 + $0xa10] sm:$0xff]
        %v555 = vld [vmem:[%s210 + $0xa18] sm:$0xff]
        %v556 = vld [vmem:[%s210 + $0xa20] sm:$0xff]
        %v557 = vld [vmem:[%s210 + $0xa28] sm:$0xff]
        %v558 = vld [vmem:[%s210 + $0xa30] sm:$0xff]
        %v559 = vld [vmem:[%s210 + $0xa38] sm:$0xff]
        %v560 = vld [vmem:[%s210 + $0xa40] sm:$0xff]
        %v561 = vld [vmem:[%s210 + $0xa48] sm:$0xff]
        %v562 = vld [vmem:[%s210 + $0xa50] sm:$0xff]
        %v563 = vld [vmem:[%s210 + $0xa58] sm:$0xff]
        %v564 = vld [vmem:[%s210 + $0xa60] sm:$0xff]
        %v565 = vld [vmem:[%s210 + $0xa68] sm:$0xff]
        %v566 = vld [vmem:[%s210 + $0xa70] sm:$0xff]
        %v567 = vld [vmem:[%s210 + $0xa78] sm:$0xff]
        %v568 = vld [vmem:[%s210 + $0xa80] sm:$0xff]
        %v569 = vld [vmem:[%s210 + $0xa88] sm:$0xff]
        %v570 = vld [vmem:[%s210 + $0xa90] sm:$0xff]
        %v571 = vld [vmem:[%s210 + $0xa98] sm:$0xff]
        %v572 = vld [vmem:[%s210 + $0xaa0] sm:$0xff]
        %v573 = vld [vmem:[%s210 + $0xaa8] sm:$0xff]
        %v574 = vld [vmem:[%s210 + $0xab0] sm:$0xff]
        %v575 = vld [vmem:[%s210 + $0xab8] sm:$0xff]
        %v576 = vld [vmem:[%s210 + $0xac0] sm:$0xff]
        %v577 = vld [vmem:[%s210 + $0xac8] sm:$0xff]
        %v578 = vld [vmem:[%s210 + $0xad0] sm:$0xff]
        %v579 = vld [vmem:[%s210 + $0xad8] sm:$0xff]
        %v580 = vld [vmem:[%s210 + $0xae0] sm:$0xff]
        %v581 = vld [vmem:[%s210 + $0xae8] sm:$0xff]
        %v582 = vld [vmem:[%s210 + $0xaf0] sm:$0xff]
        %v583 = vld [vmem:[%s210 + $0xaf8] sm:$0xff]
        %v584 = vld [vmem:[%s210 + $0xb00] sm:$0xff]
        %v585 = vld [vmem:[%s210 + $0xb08] sm:$0xff]
        %v586 = vld [vmem:[%s210 + $0xb10] sm:$0xff]
        %v587 = vld [vmem:[%s210 + $0xb18] sm:$0xff]
        %v588 = vld [vmem:[%s210 + $0xb20] sm:$0xff]
        %v589 = vld [vmem:[%s210 + $0xb28] sm:$0xff]
        %v590 = vld [vmem:[%s210 + $0xb30] sm:$0xff]
        %v591 = vld [vmem:[%s210 + $0xb38] sm:$0xff]
        %v592 = vld [vmem:[%s210 + $0xb40] sm:$0xff]
        %v593 = vld [vmem:[%s210 + $0xb48] sm:$0xff]
        %v594 = vld [vmem:[%s210 + $0xb50] sm:$0xff]
        %v595 = vld [vmem:[%s210 + $0xb58] sm:$0xff]
        %v596 = vld [vmem:[%s210 + $0xb60] sm:$0xff]
        %v597 = vld [vmem:[%s210 + $0xb68] sm:$0xff]
        %v598 = vld [vmem:[%s210 + $0xb70] sm:$0xff]
        %v599 = vld [vmem:[%s210 + $0xb78] sm:$0xff]
        %v600 = vld [vmem:[%s210 + $0xb80] sm:$0xff]
        %v601 = vld [vmem:[%s210 + $0xb88] sm:$0xff]
        %v602 = vld [vmem:[%s210 + $0xb90] sm:$0xff]
        %v603 = vld [vmem:[%s210 + $0xb98] sm:$0xff]
        %v604 = vld [vmem:[%s210 + $0xba0] sm:$0xff]
        %v605 = vld [vmem:[%s210 + $0xba8] sm:$0xff]
        %v606 = vld [vmem:[%s210 + $0xbb0] sm:$0xff]
        %v607 = vld [vmem:[%s210 + $0xbb8] sm:$0xff]
        %v608 = vld [vmem:[%s210 + $0xbc0] sm:$0xff]
        %v609 = vld [vmem:[%s210 + $0xbc8] sm:$0xff]
        %v610 = vld [vmem:[%s210 + $0xbd0] sm:$0xff]
        %v611 = vld [vmem:[%s210 + $0xbd8] sm:$0xff]
        %v612 = vld [vmem:[%s210 + $0xbe0] sm:$0xff]
        %v613 = vld [vmem:[%s210 + $0xbe8] sm:$0xff]
        %v614 = vld [vmem:[%s210 + $0xbf0] sm:$0xff]
        %v615 = vld [vmem:[%s210 + $0xbf8] sm:$0xff]
        %v616 = vld [vmem:[%s210 + $0xc00] sm:$0xff]
        %v617 = vld [vmem:[%s210 + $0xc08] sm:$0xff]
        %v618 = vld [vmem:[%s210 + $0xc10] sm:$0xff]
        %v619 = vld [vmem:[%s210 + $0xc18] sm:$0xff]
        %v620 = vld [vmem:[%s210 + $0xc20] sm:$0xff]
        %v621 = vld [vmem:[%s210 + $0xc28] sm:$0xff]
        %v622 = vld [vmem:[%s210 + $0xc30] sm:$0xff]
        %v623 = vld [vmem:[%s210 + $0xc38] sm:$0xff]
        %v624 = vld [vmem:[%s210 + $0xc40] sm:$0xff]
        %v625 = vld [vmem:[%s210 + $0xc48] sm:$0xff]
        %v626 = vld [vmem:[%s210 + $0xc50] sm:$0xff]
        %v627 = vld [vmem:[%s210 + $0xc58] sm:$0xff]
        %v628 = vld [vmem:[%s210 + $0xc60] sm:$0xff]
        %v629 = vld [vmem:[%s210 + $0xc68] sm:$0xff]
        %v630 = vld [vmem:[%s210 + $0xc70] sm:$0xff]
        %v631 = vld [vmem:[%s210 + $0xc78] sm:$0xff]
        %v632 = vld [vmem:[%s210 + $0xc80] sm:$0xff]
        %v633 = vld [vmem:[%s210 + $0xc88] sm:$0xff]
        %v634 = vld [vmem:[%s210 + $0xc90] sm:$0xff]
        %v635 = vld [vmem:[%s210 + $0xc98] sm:$0xff]
        %v636 = vld [vmem:[%s210 + $0xca0] sm:$0xff]
        %v637 = vld [vmem:[%s210 + $0xca8] sm:$0xff]
        %v638 = vld [vmem:[%s210 + $0xcb0] sm:$0xff]
        %v639 = vld [vmem:[%s210 + $0xcb8] sm:$0xff]
        %v640 = vld [vmem:[%s210 + $0xcc0] sm:$0xff]
        %v641 = vld [vmem:[%s210 + $0xcc8] sm:$0xff]
        %v642 = vld [vmem:[%s210 + $0xcd0] sm:$0xff]
        %v643 = vld [vmem:[%s210 + $0xcd8] sm:$0xff]
        %v644 = vld [vmem:[%s210 + $0xce0] sm:$0xff]
        %v645 = vld [vmem:[%s210 + $0xce8] sm:$0xff]
        %v646 = vld [vmem:[%s210 + $0xcf0] sm:$0xff]
        %v647 = vld [vmem:[%s210 + $0xcf8] sm:$0xff]
        %v648 = vld [vmem:[%s210 + $0xd00] sm:$0xff]
        %v649 = vld [vmem:[%s210 + $0xd08] sm:$0xff]
        %v650 = vld [vmem:[%s210 + $0xd10] sm:$0xff]
        %v651 = vld [vmem:[%s210 + $0xd18] sm:$0xff]
        %v652 = vld [vmem:[%s210 + $0xd20] sm:$0xff]
        %v653 = vld [vmem:[%s210 + $0xd28] sm:$0xff]
        %v654 = vld [vmem:[%s210 + $0xd30] sm:$0xff]
        %v655 = vld [vmem:[%s210 + $0xd38] sm:$0xff]
        %v656 = vld [vmem:[%s210 + $0xd40] sm:$0xff]
        %v657 = vld [vmem:[%s210 + $0xd48] sm:$0xff]
        %v658 = vld [vmem:[%s210 + $0xd50] sm:$0xff]
        %v659 = vld [vmem:[%s210 + $0xd58] sm:$0xff]
        %v660 = vld [vmem:[%s210 + $0xd60] sm:$0xff]
        %v661 = vld [vmem:[%s210 + $0xd68] sm:$0xff]
        %v662 = vld [vmem:[%s210 + $0xd70] sm:$0xff]
        %v663 = vld [vmem:[%s210 + $0xd78] sm:$0xff]
        %v664 = vld [vmem:[%s210 + $0xd80] sm:$0xff]
        %v665 = vld [vmem:[%s210 + $0xd88] sm:$0xff]
        %v666 = vld [vmem:[%s210 + $0xd90] sm:$0xff]
        %v667 = vld [vmem:[%s210 + $0xd98] sm:$0xff]
        %v668 = vld [vmem:[%s210 + $0xda0] sm:$0xff]
        %v669 = vld [vmem:[%s210 + $0xda8] sm:$0xff]
        %v670 = vld [vmem:[%s210 + $0xdb0] sm:$0xff]
        %v671 = vld [vmem:[%s210 + $0xdb8] sm:$0xff]
        %v672 = vld [vmem:[%s210 + $0xdc0] sm:$0xff]
        %v673 = vld [vmem:[%s210 + $0xdc8] sm:$0xff]
        %v674 = vld [vmem:[%s210 + $0xdd0] sm:$0xff]
        %v675 = vld [vmem:[%s210 + $0xdd8] sm:$0xff]
        %v676 = vld [vmem:[%s210 + $0xde0] sm:$0xff]
        %v677 = vld [vmem:[%s210 + $0xde8] sm:$0xff]
        %v678 = vld [vmem:[%s210 + $0xdf0] sm:$0xff]
        %v679 = vld [vmem:[%s210 + $0xdf8] sm:$0xff]
        %v680 = vld [vmem:[%s210 + $0xe00] sm:$0xff]
        %v681 = vld [vmem:[%s210 + $0xe08] sm:$0xff]
        %v682 = vld [vmem:[%s210 + $0xe10] sm:$0xff]
        %v683 = vld [vmem:[%s210 + $0xe18] sm:$0xff]
        %v684 = vld [vmem:[%s210 + $0xe20] sm:$0xff]
        %v685 = vld [vmem:[%s210 + $0xe28] sm:$0xff]
        %v686 = vld [vmem:[%s210 + $0xe30] sm:$0xff]
        %v687 = vld [vmem:[%s210 + $0xe38] sm:$0xff]
        %v688 = vld [vmem:[%s210 + $0xe40] sm:$0xff]
        %v689 = vld [vmem:[%s210 + $0xe48] sm:$0xff]
        %v690 = vld [vmem:[%s210 + $0xe50] sm:$0xff]
        %v691 = vld [vmem:[%s210 + $0xe58] sm:$0xff]
        %v692 = vld [vmem:[%s210 + $0xe60] sm:$0xff]
        %v693 = vld [vmem:[%s210 + $0xe68] sm:$0xff]
        %v694 = vld [vmem:[%s210 + $0xe70] sm:$0xff]
        %v695 = vld [vmem:[%s210 + $0xe78] sm:$0xff]
        %v696 = vld [vmem:[%s210 + $0xe80] sm:$0xff]
        %v697 = vld [vmem:[%s210 + $0xe88] sm:$0xff]
        %v698 = vld [vmem:[%s210 + $0xe90] sm:$0xff]
        %v699 = vld [vmem:[%s210 + $0xe98] sm:$0xff]
        %v700 = vld [vmem:[%s210 + $0xea0] sm:$0xff]
        %v701 = vld [vmem:[%s210 + $0xea8] sm:$0xff]
        %v702 = vld [vmem:[%s210 + $0xeb0] sm:$0xff]
        %v703 = vld [vmem:[%s210 + $0xeb8] sm:$0xff]
        %v704 = vld [vmem:[%s210 + $0xec0] sm:$0xff]
        %v705 = vld [vmem:[%s210 + $0xec8] sm:$0xff]
        %v706 = vld [vmem:[%s210 + $0xed0] sm:$0xff]
        %v707 = vld [vmem:[%s210 + $0xed8] sm:$0xff]
        %v708 = vld [vmem:[%s210 + $0xee0] sm:$0xff]
        %v709 = vld [vmem:[%s210 + $0xee8] sm:$0xff]
        %v710 = vld [vmem:[%s210 + $0xef0] sm:$0xff]
        %v711 = vld [vmem:[%s210 + $0xef8] sm:$0xff]
        %v712 = vld [vmem:[%s210 + $0xf00] sm:$0xff]
        %v713 = vld [vmem:[%s210 + $0xf08] sm:$0xff]
        %v714 = vld [vmem:[%s210 + $0xf10] sm:$0xff]
        %v715 = vld [vmem:[%s210 + $0xf18] sm:$0xff]
        %v716 = vld [vmem:[%s210 + $0xf20] sm:$0xff]
        %v717 = vld [vmem:[%s210 + $0xf28] sm:$0xff]
        %v718 = vld [vmem:[%s210 + $0xf30] sm:$0xff]
        %v719 = vld [vmem:[%s210 + $0xf38] sm:$0xff]
        %v720 = vld [vmem:[%s210 + $0xf40] sm:$0xff]
        %v721 = vld [vmem:[%s210 + $0xf48] sm:$0xff]
        %v722 = vld [vmem:[%s210 + $0xf50] sm:$0xff]
        %v723 = vld [vmem:[%s210 + $0xf58] sm:$0xff]
        %v724 = vld [vmem:[%s210 + $0xf60] sm:$0xff]
        %v725 = vld [vmem:[%s210 + $0xf68] sm:$0xff]
        %v726 = vld [vmem:[%s210 + $0xf70] sm:$0xff]
        %v727 = vld [vmem:[%s210 + $0xf78] sm:$0xff]
        %v728 = vld [vmem:[%s210 + $0xf80] sm:$0xff]
        %v729 = vld [vmem:[%s210 + $0xf88] sm:$0xff]
        %v730 = vld [vmem:[%s210 + $0xf90] sm:$0xff]
        %v731 = vld [vmem:[%s210 + $0xf98] sm:$0xff]
        %v732 = vld [vmem:[%s210 + $0xfa0] sm:$0xff]
        %v733 = vld [vmem:[%s210 + $0xfa8] sm:$0xff]
        %v734 = vld [vmem:[%s210 + $0xfb0] sm:$0xff]
        %v735 = vld [vmem:[%s210 + $0xfb8] sm:$0xff]
        %v736 = vld [vmem:[%s210 + $0xfc0] sm:$0xff]
        %v737 = vld [vmem:[%s210 + $0xfc8] sm:$0xff]
        %v738 = vld [vmem:[%s210 + $0xfd0] sm:$0xff]
        %v739 = vld [vmem:[%s210 + $0xfd8] sm:$0xff]
        %v740 = vld [vmem:[%s210 + $0xfe0] sm:$0xff]
        %v741 = vld [vmem:[%s210 + $0xfe8] sm:$0xff]
        %v742 = vld [vmem:[%s210 + $0xff0] sm:$0xff]
        %v743 = vld [vmem:[%s210 + $0xff8] sm:$0xff]
        %v744 = vld [vmem:[%s210 + $0x1000] sm:$0xff]
        %v745 = vld [vmem:[%s210 + $0x1008] sm:$0xff]
        %v746 = vld [vmem:[%s210 + $0x1010] sm:$0xff]
        %v747 = vld [vmem:[%s210 + $0x1018] sm:$0xff]
        %v748 = vld [vmem:[%s210 + $0x1020] sm:$0xff]
        %v749 = vld [vmem:[%s210 + $0x1028] sm:$0xff]
        %v750 = vld [vmem:[%s210 + $0x1030] sm:$0xff]
        %v751 = vld [vmem:[%s210 + $0x1038] sm:$0xff]
        %v752 = vld [vmem:[%s210 + $0x1040] sm:$0xff]
        %v753 = vld [vmem:[%s210 + $0x1048] sm:$0xff]
        %v754 = vld [vmem:[%s210 + $0x1050] sm:$0xff]
        %v755 = vld [vmem:[%s210 + $0x1058] sm:$0xff]
        %v756 = vld [vmem:[%s210 + $0x1060] sm:$0xff]
        %v757 = vld [vmem:[%s210 + $0x1068] sm:$0xff]
        %v758 = vld [vmem:[%s210 + $0x1070] sm:$0xff]
        %v759 = vld [vmem:[%s210 + $0x1078] sm:$0xff]
        %v760 = vld [vmem:[%s210 + $0x1080] sm:$0xff]
        %v761 = vld [vmem:[%s210 + $0x1088] sm:$0xff]
        %v762 = vld [vmem:[%s210 + $0x1090] sm:$0xff]
        %v763 = vld [vmem:[%s210 + $0x1098] sm:$0xff]
        %v764 = vld [vmem:[%s210 + $0x10a0] sm:$0xff]
        %v765 = vld [vmem:[%s210 + $0x10a8] sm:$0xff]
        %v766 = vld [vmem:[%s210 + $0x10b0] sm:$0xff]
        %v767 = vld [vmem:[%s210 + $0x10b8] sm:$0xff]
        %v768 = vld [vmem:[%s210 + $0x10c0] sm:$0xff]
        %v769 = vld [vmem:[%s210 + $0x10c8] sm:$0xff]
        %v770 = vld [vmem:[%s210 + $0x10d0] sm:$0xff]
        %v771 = vld [vmem:[%s210 + $0x10d8] sm:$0xff]
        %v772 = vld [vmem:[%s210 + $0x10e0] sm:$0xff]
        %v773 = vld [vmem:[%s210 + $0x10e8] sm:$0xff]
        %v774 = vld [vmem:[%s210 + $0x10f0] sm:$0xff]
        %v775 = vld [vmem:[%s210 + $0x10f8] sm:$0xff]
        %v776 = vld [vmem:[%s210 + $0x1100] sm:$0xff]
        %v777 = vld [vmem:[%s210 + $0x1108] sm:$0xff]
        %v778 = vld [vmem:[%s210 + $0x1110] sm:$0xff]
        %v779 = vld [vmem:[%s210 + $0x1118] sm:$0xff]
        %v780 = vld [vmem:[%s210 + $0x1120] sm:$0xff]
        %v781 = vld [vmem:[%s210 + $0x1128] sm:$0xff]
        %v782 = vld [vmem:[%s210 + $0x1130] sm:$0xff]
        %v783 = vld [vmem:[%s210 + $0x1138] sm:$0xff]
        %v784 = vld [vmem:[%s210 + $0x1140] sm:$0xff]
        %v785 = vld [vmem:[%s210 + $0x1148] sm:$0xff]
        %v786 = vld [vmem:[%s210 + $0x1150] sm:$0xff]
        %v787 = vld [vmem:[%s210 + $0x1158] sm:$0xff]
        %v788 = vld [vmem:[%s210 + $0x1160] sm:$0xff]
        %v789 = vld [vmem:[%s210 + $0x1168] sm:$0xff]
        %v790 = vld [vmem:[%s210 + $0x1170] sm:$0xff]
        %v791 = vld [vmem:[%s210 + $0x1178] sm:$0xff]
        %v792 = vld [vmem:[%s210 + $0x1180] sm:$0xff]
        %v793 = vld [vmem:[%s210 + $0x1188] sm:$0xff]
        %v794 = vld [vmem:[%s210 + $0x1190] sm:$0xff]
        %v795 = vld [vmem:[%s210 + $0x1198] sm:$0xff]
        %v796 = vld [vmem:[%s210 + $0x11a0] sm:$0xff]
        %v797 = vld [vmem:[%s210 + $0x11a8] sm:$0xff]
        %v798 = vld [vmem:[%s210 + $0x11b0] sm:$0xff]
        %v799 = vld [vmem:[%s210 + $0x11b8] sm:$0xff]
        %v800 = vld [vmem:[%s210 + $0x11c0] sm:$0xff]
        %v801 = vld [vmem:[%s210 + $0x11c8] sm:$0xff]
        %v802 = vld [vmem:[%s210 + $0x11d0] sm:$0xff]
        %v803 = vld [vmem:[%s210 + $0x11d8] sm:$0xff]
        %v804 = vld [vmem:[%s210 + $0x11e0] sm:$0xff]
        %v805 = vld [vmem:[%s210 + $0x11e8] sm:$0xff]
        %v806 = vld [vmem:[%s210 + $0x11f0] sm:$0xff]
        %v807 = vld [vmem:[%s210 + $0x11f8] sm:$0xff]
        %v808 = vld [vmem:[%s210 + $0x1200] sm:$0xff]
        %v809 = vld [vmem:[%s210 + $0x1208] sm:$0xff]
        %v810 = vld [vmem:[%s210 + $0x1210] sm:$0xff]
        %v811 = vld [vmem:[%s210 + $0x1218] sm:$0xff]
        %v812 = vld [vmem:[%s210 + $0x1220] sm:$0xff]
        %v813 = vld [vmem:[%s210 + $0x1228] sm:$0xff]
        %v814 = vld [vmem:[%s210 + $0x1230] sm:$0xff]
        %v815 = vld [vmem:[%s210 + $0x1238] sm:$0xff]
        %v816 = vld [vmem:[%s210 + $0x1240] sm:$0xff]
        %v817 = vld [vmem:[%s210 + $0x1248] sm:$0xff]
        %v818 = vld [vmem:[%s210 + $0x1250] sm:$0xff]
        %v819 = vld [vmem:[%s210 + $0x1258] sm:$0xff]
        %v820 = vld [vmem:[%s210 + $0x1260] sm:$0xff]
        %v821 = vld [vmem:[%s210 + $0x1268] sm:$0xff]
        %v822 = vld [vmem:[%s210 + $0x1270] sm:$0xff]
        %v823 = vld [vmem:[%s210 + $0x1278] sm:$0xff]
        %v824 = vld [vmem:[%s210 + $0x1280] sm:$0xff]
        %v825 = vld [vmem:[%s210 + $0x1288] sm:$0xff]
        %v826 = vld [vmem:[%s210 + $0x1290] sm:$0xff]
        %v827 = vld [vmem:[%s210 + $0x1298] sm:$0xff]
        %v828 = vld [vmem:[%s210 + $0x12a0] sm:$0xff]
        %v829 = vld [vmem:[%s210 + $0x12a8] sm:$0xff]
        %v830 = vld [vmem:[%s210 + $0x12b0] sm:$0xff]
        %v831 = vld [vmem:[%s210 + $0x12b8] sm:$0xff]
        %v832 = vld [vmem:[%s210 + $0x12c0] sm:$0xff]
        %v833 = vld [vmem:[%s210 + $0x12c8] sm:$0xff]
        %v834 = vld [vmem:[%s210 + $0x12d0] sm:$0xff]
        %v835 = vld [vmem:[%s210 + $0x12d8] sm:$0xff]
        %v836 = vld [vmem:[%s210 + $0x12e0] sm:$0xff]
        %v837 = vld [vmem:[%s210 + $0x12e8] sm:$0xff]
        %v838 = vld [vmem:[%s210 + $0x12f0] sm:$0xff]
        %v839 = vld [vmem:[%s210 + $0x12f8] sm:$0xff]
        %v840 = vld [vmem:[%s210 + $0x1300] sm:$0xff]
        %v841 = vld [vmem:[%s210 + $0x1308] sm:$0xff]
        %v842 = vld [vmem:[%s210 + $0x1310] sm:$0xff]
        %v843 = vld [vmem:[%s210 + $0x1318] sm:$0xff]
        %v844 = vld [vmem:[%s210 + $0x1320] sm:$0xff]
        %v845 = vld [vmem:[%s210 + $0x1328] sm:$0xff]
        %v846 = vld [vmem:[%s210 + $0x1330] sm:$0xff]
        %v847 = vld [vmem:[%s210 + $0x1338] sm:$0xff]
        %v848 = vld [vmem:[%s210 + $0x1340] sm:$0xff]
        %v849 = vld [vmem:[%s210 + $0x1348] sm:$0xff]
        %v850 = vld [vmem:[%s210 + $0x1350] sm:$0xff]
        %v851 = vld [vmem:[%s210 + $0x1358] sm:$0xff]
        %v852 = vld [vmem:[%s210 + $0x1360] sm:$0xff]
        %v853 = vld [vmem:[%s210 + $0x1368] sm:$0xff]
        %v854 = vld [vmem:[%s210 + $0x1370] sm:$0xff]
        %v855 = vld [vmem:[%s210 + $0x1378] sm:$0xff]
        %v856 = vld [vmem:[%s210 + $0x1380] sm:$0xff]
        %v857 = vld [vmem:[%s210 + $0x1388] sm:$0xff]
        %v858 = vld [vmem:[%s210 + $0x1390] sm:$0xff]
        %v859 = vld [vmem:[%s210 + $0x1398] sm:$0xff]
        %v860 = vld [vmem:[%s210 + $0x13a0] sm:$0xff]
        %v861 = vld [vmem:[%s210 + $0x13a8] sm:$0xff]
        %v862 = vld [vmem:[%s210 + $0x13b0] sm:$0xff]
        %v863 = vld [vmem:[%s210 + $0x13b8] sm:$0xff]
        %v864 = vld [vmem:[%s210 + $0x13c0] sm:$0xff]
        %v865 = vld [vmem:[%s210 + $0x13c8] sm:$0xff]
        %v866 = vld [vmem:[%s210 + $0x13d0] sm:$0xff]
        %v867 = vld [vmem:[%s210 + $0x13d8] sm:$0xff]
        %v868 = vld [vmem:[%s210 + $0x13e0] sm:$0xff]
        %v869 = vld [vmem:[%s210 + $0x13e8] sm:$0xff]
        %v870 = vld [vmem:[%s210 + $0x13f0] sm:$0xff]
        %v871 = vld [vmem:[%s210 + $0x13f8] sm:$0xff]
        %v872 = vld [vmem:[%s210 + $0x1400] sm:$0xff]
        %v873 = vld [vmem:[%s210 + $0x1408] sm:$0xff]
        %v874 = vld [vmem:[%s210 + $0x1410] sm:$0xff]
        %v875 = vld [vmem:[%s210 + $0x1418] sm:$0xff]
        %v876 = vld [vmem:[%s210 + $0x1420] sm:$0xff]
        %v877 = vld [vmem:[%s210 + $0x1428] sm:$0xff]
        %v878 = vld [vmem:[%s210 + $0x1430] sm:$0xff]
        %v879 = vld [vmem:[%s210 + $0x1438] sm:$0xff]
        %v880 = vld [vmem:[%s210 + $0x1440] sm:$0xff]
        %v881 = vld [vmem:[%s210 + $0x1448] sm:$0xff]
        %v882 = vld [vmem:[%s210 + $0x1450] sm:$0xff]
        %v883 = vld [vmem:[%s210 + $0x1458] sm:$0xff]
        %v884 = vld [vmem:[%s210 + $0x1460] sm:$0xff]
        %v885 = vld [vmem:[%s210 + $0x1468] sm:$0xff]
        %v886 = vld [vmem:[%s210 + $0x1470] sm:$0xff]
        %v887 = vld [vmem:[%s210 + $0x1478] sm:$0xff]
        %v888 = vld [vmem:[%s210 + $0x1480] sm:$0xff]
        %v889 = vld [vmem:[%s210 + $0x1488] sm:$0xff]
        %v890 = vld [vmem:[%s210 + $0x1490] sm:$0xff]
        %v891 = vld [vmem:[%s210 + $0x1498] sm:$0xff]
        %v892 = vld [vmem:[%s210 + $0x14a0] sm:$0xff]
        %v893 = vld [vmem:[%s210 + $0x14a8] sm:$0xff]
        %v894 = vld [vmem:[%s210 + $0x14b0] sm:$0xff]
        %v895 = vld [vmem:[%s210 + $0x14b8] sm:$0xff]
        %v896 = vld [vmem:[%s210 + $0x14c0] sm:$0xff]
        %v897 = vld [vmem:[%s210 + $0x14c8] sm:$0xff]
        %v898 = vld [vmem:[%s210 + $0x14d0] sm:$0xff]
        %v899 = vld [vmem:[%s210 + $0x14d8] sm:$0xff]
        %v900 = vld [vmem:[%s210 + $0x14e0] sm:$0xff]
        %v901 = vld [vmem:[%s210 + $0x14e8] sm:$0xff]
        %v902 = vld [vmem:[%s210 + $0x14f0] sm:$0xff]
        %v903 = vld [vmem:[%s210 + $0x14f8] sm:$0xff]
        %v904 = vld [vmem:[%s210 + $0x1500] sm:$0xff]
        %v905 = vld [vmem:[%s210 + $0x1508] sm:$0xff]
        %v906 = vld [vmem:[%s210 + $0x1510] sm:$0xff]
        %v907 = vld [vmem:[%s210 + $0x1518] sm:$0xff]
        %v908 = vld [vmem:[%s210 + $0x1520] sm:$0xff]
        %v909 = vld [vmem:[%s210 + $0x1528] sm:$0xff]
        %v910 = vld [vmem:[%s210 + $0x1530] sm:$0xff]
        %v911 = vld [vmem:[%s210 + $0x1538] sm:$0xff]
        %v912 = vld [vmem:[%s210 + $0x1540] sm:$0xff]
        %v913 = vld [vmem:[%s210 + $0x1548] sm:$0xff]
        %v914 = vld [vmem:[%s210 + $0x1550] sm:$0xff]
        %v915 = vld [vmem:[%s210 + $0x1558] sm:$0xff]
        %v916 = vld [vmem:[%s210 + $0x1560] sm:$0xff]
        %v917 = vld [vmem:[%s210 + $0x1568] sm:$0xff]
        %v918 = vld [vmem:[%s210 + $0x1570] sm:$0xff]
        %v919 = vld [vmem:[%s210 + $0x1578] sm:$0xff]
        %v920 = vld [vmem:[%s210 + $0x1580] sm:$0xff]
        %v921 = vld [vmem:[%s210 + $0x1588] sm:$0xff]
        %v922 = vld [vmem:[%s210 + $0x1590] sm:$0xff]
        %v923 = vld [vmem:[%s210 + $0x1598] sm:$0xff]
        %v924 = vld [vmem:[%s210 + $0x15a0] sm:$0xff]
        %v925 = vld [vmem:[%s210 + $0x15a8] sm:$0xff]
        %v926 = vld [vmem:[%s210 + $0x15b0] sm:$0xff]
        %v927 = vld [vmem:[%s210 + $0x15b8] sm:$0xff]
        %v928 = vld [vmem:[%s210 + $0x15c0] sm:$0xff]
        %v929 = vld [vmem:[%s210 + $0x15c8] sm:$0xff]
        %v930 = vld [vmem:[%s210 + $0x15d0] sm:$0xff]
        %v931 = vld [vmem:[%s210 + $0x15d8] sm:$0xff]
        %v932 = vld [vmem:[%s210 + $0x15e0] sm:$0xff]
        %v933 = vld [vmem:[%s210 + $0x15e8] sm:$0xff]
        %v934 = vld [vmem:[%s210 + $0x15f0] sm:$0xff]
        %v935 = vld [vmem:[%s210 + $0x15f8] sm:$0xff]
        %v936 = vld [vmem:[%s210 + $0x1600] sm:$0xff]
        %v937 = vld [vmem:[%s210 + $0x1608] sm:$0xff]
        %v938 = vld [vmem:[%s210 + $0x1610] sm:$0xff]
        %v939 = vld [vmem:[%s210 + $0x1618] sm:$0xff]
        %v940 = vld [vmem:[%s210 + $0x1620] sm:$0xff]
        %v941 = vld [vmem:[%s210 + $0x1628] sm:$0xff]
        %v942 = vld [vmem:[%s210 + $0x1630] sm:$0xff]
        %v943 = vld [vmem:[%s210 + $0x1638] sm:$0xff]
        %v944 = vld [vmem:[%s210 + $0x1640] sm:$0xff]
        %v945 = vld [vmem:[%s210 + $0x1648] sm:$0xff]
        %v946 = vld [vmem:[%s210 + $0x1650] sm:$0xff]
        %v947 = vld [vmem:[%s210 + $0x1658] sm:$0xff]
        %v948 = vld [vmem:[%s210 + $0x1660] sm:$0xff]
        %v949 = vld [vmem:[%s210 + $0x1668] sm:$0xff]
        %v950 = vld [vmem:[%s210 + $0x1670] sm:$0xff]
        %v951 = vld [vmem:[%s210 + $0x1678] sm:$0xff]
        %v952 = vld [vmem:[%s210 + $0x1680] sm:$0xff]
        %v953 = vld [vmem:[%s210 + $0x1688] sm:$0xff]
        %v954 = vld [vmem:[%s210 + $0x1690] sm:$0xff]
        %v955 = vld [vmem:[%s210 + $0x1698] sm:$0xff]
        %v956 = vld [vmem:[%s210 + $0x16a0] sm:$0xff]
        %v957 = vld [vmem:[%s210 + $0x16a8] sm:$0xff]
        %v958 = vld [vmem:[%s210 + $0x16b0] sm:$0xff]
        %v959 = vld [vmem:[%s210 + $0x16b8] sm:$0xff]
        %v960 = vld [vmem:[%s210 + $0x16c0] sm:$0xff]
        %v961 = vld [vmem:[%s210 + $0x16c8] sm:$0xff]
        %v962 = vld [vmem:[%s210 + $0x16d0] sm:$0xff]
        %v963 = vld [vmem:[%s210 + $0x16d8] sm:$0xff]
        %v964 = vld [vmem:[%s210 + $0x16e0] sm:$0xff]
        %v965 = vld [vmem:[%s210 + $0x16e8] sm:$0xff]
        %v966 = vld [vmem:[%s210 + $0x16f0] sm:$0xff]
        %v967 = vld [vmem:[%s210 + $0x16f8] sm:$0xff]
        %v968 = vld [vmem:[%s210 + $0x1700] sm:$0xff]
        %v969 = vld [vmem:[%s210 + $0x1708] sm:$0xff]
        %v970 = vld [vmem:[%s210 + $0x1710] sm:$0xff]
        %v971 = vld [vmem:[%s210 + $0x1718] sm:$0xff]
        %v972 = vld [vmem:[%s210 + $0x1720] sm:$0xff]
        %v973 = vld [vmem:[%s210 + $0x1728] sm:$0xff]
        %v974 = vld [vmem:[%s210 + $0x1730] sm:$0xff]
        %v975 = vld [vmem:[%s210 + $0x1738] sm:$0xff]
        %v976 = vld [vmem:[%s210 + $0x1740] sm:$0xff]
        %v977 = vld [vmem:[%s210 + $0x1748] sm:$0xff]
        %v978 = vld [vmem:[%s210 + $0x1750] sm:$0xff]
        %v979 = vld [vmem:[%s210 + $0x1758] sm:$0xff]
        %v980 = vld [vmem:[%s210 + $0x1760] sm:$0xff]
        %v981 = vld [vmem:[%s210 + $0x1768] sm:$0xff]
        %v982 = vld [vmem:[%s210 + $0x1770] sm:$0xff]
        %v983 = vld [vmem:[%s210 + $0x1778] sm:$0xff]
        %v984 = vld [vmem:[%s210 + $0x1780] sm:$0xff]
        %v985 = vld [vmem:[%s210 + $0x1788] sm:$0xff]
        %v986 = vld [vmem:[%s210 + $0x1790] sm:$0xff]
        %v987 = vld [vmem:[%s210 + $0x1798] sm:$0xff]
        %v988 = vld [vmem:[%s210 + $0x17a0] sm:$0xff]
        %v989 = vld [vmem:[%s210 + $0x17a8] sm:$0xff]
        %v990 = vld [vmem:[%s210 + $0x17b0] sm:$0xff]
        %v991 = vld [vmem:[%s210 + $0x17b8] sm:$0xff]
        %v992 = vld [vmem:[%s210 + $0x17c0] sm:$0xff]
        %v993 = vld [vmem:[%s210 + $0x17c8] sm:$0xff]
        %v994 = vld [vmem:[%s210 + $0x17d0] sm:$0xff]
        %v995 = vld [vmem:[%s210 + $0x17d8] sm:$0xff]
        %v996 = vld [vmem:[%s210 + $0x17e0] sm:$0xff]
        %v997 = vld [vmem:[%s210 + $0x17e8] sm:$0xff]
        %v998 = vld [vmem:[%s210 + $0x17f0] sm:$0xff]
        %v999 = vld [vmem:[%s210 + $0x17f8] sm:$0xff]
        %v1000 = vld [vmem:[%s210 + $0x1800] sm:$0xff]
        %v1001 = vld [vmem:[%s210 + $0x1808] sm:$0xff]
        %v1002 = vld [vmem:[%s210 + $0x1810] sm:$0xff]
        %v1003 = vld [vmem:[%s210 + $0x1818] sm:$0xff]
        %v1004 = vld [vmem:[%s210 + $0x1820] sm:$0xff]
        %v1005 = vld [vmem:[%s210 + $0x1828] sm:$0xff]
        %v1006 = vld [vmem:[%s210 + $0x1830] sm:$0xff]
        %v1007 = vld [vmem:[%s210 + $0x1838] sm:$0xff]
        %v1008 = vld [vmem:[%s210 + $0x1840] sm:$0xff]
        %v1009 = vld [vmem:[%s210 + $0x1848] sm:$0xff]
        %v1010 = vld [vmem:[%s210 + $0x1850] sm:$0xff]
        %v1011 = vld [vmem:[%s210 + $0x1858] sm:$0xff]
        %v1012 = vld [vmem:[%s210 + $0x1860] sm:$0xff]
        %v1013 = vld [vmem:[%s210 + $0x1868] sm:$0xff]
        %v1014 = vld [vmem:[%s210 + $0x1870] sm:$0xff]
        %v1015 = vld [vmem:[%s210 + $0x1878] sm:$0xff]
        %v1029 = vcombine.high %v219, %v219
        %v1031 = vunpack.c.l.s4 1983009808
        %v1032 = vunpack.c.0.s8 %v1031
        %v1033 = vlaneseq
        %v1034 = vshrl.u32 %v1033, 7
        %v1035 = vsub.s32 %v1032, %v1034
        %v1036 = vrot.slane %v219, %v1035
        %v1038 = vunpack.c.l.s4 1983009808
        %v1039 = vunpack.c.0.s8 %v1038
        %v1040 = vlaneseq
        %v1041 = vshrl.u32 %v1040, 7
        %v1042 = vsub.s32 %v1039, %v1041
        %v1043 = vrot.slane %v1029, %v1042
        %v1044 = vcombine.high %v1036, %v1036
        %v1045 = vcombine.high %v1043, %v1043
        %v1046 = vcombine.high %v220, %v220
        %v1048 = vunpack.c.l.s4 1983009808
        %v1049 = vunpack.c.0.s8 %v1048
        %v1050 = vlaneseq
        %v1051 = vshrl.u32 %v1050, 7
        %v1052 = vsub.s32 %v1049, %v1051
        %v1053 = vrot.slane %v220, %v1052
        %v1055 = vunpack.c.l.s4 1983009808
        %v1056 = vunpack.c.0.s8 %v1055
        %v1057 = vlaneseq
        %v1058 = vshrl.u32 %v1057, 7
        %v1059 = vsub.s32 %v1056, %v1058
        %v1060 = vrot.slane %v1046, %v1059
        %v1061 = vcombine.high %v1053, %v1053
        %v1062 = vcombine.high %v1060, %v1060
        %v1063 = vcombine.high %v221, %v221
        %v1065 = vunpack.c.l.s4 1983009808
        %v1066 = vunpack.c.0.s8 %v1065
        %v1067 = vlaneseq
        %v1068 = vshrl.u32 %v1067, 7
        %v1069 = vsub.s32 %v1066, %v1068
        %v1070 = vrot.slane %v221, %v1069
        %v1072 = vunpack.c.l.s4 1983009808
        %v1073 = vunpack.c.0.s8 %v1072
        %v1074 = vlaneseq
        %v1075 = vshrl.u32 %v1074, 7
        %v1076 = vsub.s32 %v1073, %v1075
        %v1077 = vrot.slane %v1063, %v1076
        %v1078 = vcombine.high %v1070, %v1070
        %v1079 = vcombine.high %v1077, %v1077
        %v1080 = vcombine.high %v222, %v222
        %v1082 = vunpack.c.l.s4 1983009808
        %v1083 = vunpack.c.0.s8 %v1082
        %v1084 = vlaneseq
        %v1085 = vshrl.u32 %v1084, 7
        %v1086 = vsub.s32 %v1083, %v1085
        %v1087 = vrot.slane %v222, %v1086
        %v1089 = vunpack.c.l.s4 1983009808
        %v1090 = vunpack.c.0.s8 %v1089
        %v1091 = vlaneseq
        %v1092 = vshrl.u32 %v1091, 7
        %v1093 = vsub.s32 %v1090, %v1092
        %v1094 = vrot.slane %v1080, %v1093
        %v1095 = vcombine.high %v1087, %v1087
        %v1096 = vcombine.high %v1094, %v1094
        %v1097 = vcombine.high %v223, %v223
        %v1099 = vunpack.c.l.s4 1983009808
        %v1100 = vunpack.c.0.s8 %v1099
        %v1101 = vlaneseq
        %v1102 = vshrl.u32 %v1101, 7
        %v1103 = vsub.s32 %v1100, %v1102
        %v1104 = vrot.slane %v223, %v1103
        %v1106 = vunpack.c.l.s4 1983009808
        %v1107 = vunpack.c.0.s8 %v1106
        %v1108 = vlaneseq
        %v1109 = vshrl.u32 %v1108, 7
        %v1110 = vsub.s32 %v1107, %v1109
        %v1111 = vrot.slane %v1097, %v1110
        %v1112 = vcombine.high %v1104, %v1104
        %v1113 = vcombine.high %v1111, %v1111
        %v1114 = vcombine.high %v224, %v224
        %v1116 = vunpack.c.l.s4 1983009808
        %v1117 = vunpack.c.0.s8 %v1116
        %v1118 = vlaneseq
        %v1119 = vshrl.u32 %v1118, 7
        %v1120 = vsub.s32 %v1117, %v1119
        %v1121 = vrot.slane %v224, %v1120
        %v1123 = vunpack.c.l.s4 1983009808
        %v1124 = vunpack.c.0.s8 %v1123
        %v1125 = vlaneseq
        %v1126 = vshrl.u32 %v1125, 7
        %v1127 = vsub.s32 %v1124, %v1126
        %v1128 = vrot.slane %v1114, %v1127
        %v1129 = vcombine.high %v1121, %v1121
        %v1130 = vcombine.high %v1128, %v1128
        %v1131 = vcombine.high %v225, %v225
        %v1133 = vunpack.c.l.s4 1983009808
        %v1134 = vunpack.c.0.s8 %v1133
        %v1135 = vlaneseq
        %v1136 = vshrl.u32 %v1135, 7
        %v1137 = vsub.s32 %v1134, %v1136
        %v1138 = vrot.slane %v225, %v1137
        %v1140 = vunpack.c.l.s4 1983009808
        %v1141 = vunpack.c.0.s8 %v1140
        %v1142 = vlaneseq
        %v1143 = vshrl.u32 %v1142, 7
        %v1144 = vsub.s32 %v1141, %v1143
        %v1145 = vrot.slane %v1131, %v1144
        %v1146 = vcombine.high %v1138, %v1138
        %v1147 = vcombine.high %v1145, %v1145
        %v1148 = vcombine.high %v226, %v226
        %v1150 = vunpack.c.l.s4 1983009808
        %v1151 = vunpack.c.0.s8 %v1150
        %v1152 = vlaneseq
        %v1153 = vshrl.u32 %v1152, 7
        %v1154 = vsub.s32 %v1151, %v1153
        %v1155 = vrot.slane %v226, %v1154
        %v1157 = vunpack.c.l.s4 1983009808
        %v1158 = vunpack.c.0.s8 %v1157
        %v1159 = vlaneseq
        %v1160 = vshrl.u32 %v1159, 7
        %v1161 = vsub.s32 %v1158, %v1160
        %v1162 = vrot.slane %v1148, %v1161
        %v1163 = vcombine.high %v1155, %v1155
        %v1164 = vcombine.high %v1162, %v1162
        %v1165 = vcombine.high %v227, %v227
        %v1167 = vunpack.c.l.s4 1983009808
        %v1168 = vunpack.c.0.s8 %v1167
        %v1169 = vlaneseq
        %v1170 = vshrl.u32 %v1169, 7
        %v1171 = vsub.s32 %v1168, %v1170
        %v1172 = vrot.slane %v227, %v1171
        %v1174 = vunpack.c.l.s4 1983009808
        %v1175 = vunpack.c.0.s8 %v1174
        %v1176 = vlaneseq
        %v1177 = vshrl.u32 %v1176, 7
        %v1178 = vsub.s32 %v1175, %v1177
        %v1179 = vrot.slane %v1165, %v1178
        %v1180 = vcombine.high %v1172, %v1172
        %v1181 = vcombine.high %v1179, %v1179
        %v1182 = vcombine.high %v228, %v228
        %v1184 = vunpack.c.l.s4 1983009808
        %v1185 = vunpack.c.0.s8 %v1184
        %v1186 = vlaneseq
        %v1187 = vshrl.u32 %v1186, 7
        %v1188 = vsub.s32 %v1185, %v1187
        %v1189 = vrot.slane %v228, %v1188
        %v1191 = vunpack.c.l.s4 1983009808
        %v1192 = vunpack.c.0.s8 %v1191
        %v1193 = vlaneseq
        %v1194 = vshrl.u32 %v1193, 7
        %v1195 = vsub.s32 %v1192, %v1194
        %v1196 = vrot.slane %v1182, %v1195
        %v1197 = vcombine.high %v1189, %v1189
        %v1198 = vcombine.high %v1196, %v1196
        %v1199 = vcombine.high %v229, %v229
        %v1201 = vunpack.c.l.s4 1983009808
        %v1202 = vunpack.c.0.s8 %v1201
        %v1203 = vlaneseq
        %v1204 = vshrl.u32 %v1203, 7
        %v1205 = vsub.s32 %v1202, %v1204
        %v1206 = vrot.slane %v229, %v1205
        %v1208 = vunpack.c.l.s4 1983009808
        %v1209 = vunpack.c.0.s8 %v1208
        %v1210 = vlaneseq
        %v1211 = vshrl.u32 %v1210, 7
        %v1212 = vsub.s32 %v1209, %v1211
        %v1213 = vrot.slane %v1199, %v1212
        %v1214 = vcombine.high %v1206, %v1206
        %v1215 = vcombine.high %v1213, %v1213
        %v1216 = vcombine.high %v230, %v230
        %v1218 = vunpack.c.l.s4 1983009808
        %v1219 = vunpack.c.0.s8 %v1218
        %v1220 = vlaneseq
        %v1221 = vshrl.u32 %v1220, 7
        %v1222 = vsub.s32 %v1219, %v1221
        %v1223 = vrot.slane %v230, %v1222
        %v1225 = vunpack.c.l.s4 1983009808
        %v1226 = vunpack.c.0.s8 %v1225
        %v1227 = vlaneseq
        %v1228 = vshrl.u32 %v1227, 7
        %v1229 = vsub.s32 %v1226, %v1228
        %v1230 = vrot.slane %v1216, %v1229
        %v1231 = vcombine.high %v1223, %v1223
        %v1232 = vcombine.high %v1230, %v1230
        %v1234 = vunpack.c.l.s4 1983009808
        %v1235 = vunpack.c.0.s8 %v1234
        %v1236 = vlaneseq
        %v1237 = vshrl.u32 %v1236, 7
        %v1238 = vsub.s32 %v1235, %v1237
        %v1239 = vrot.slane %v231, %v1238
        %1289 = vmatprep.subr.mxu0 0.0
        %1290 = vmatpush1.msra.mxu0 %v247
        %1291 = vmatprep.subr.mxu0 0.0
        %1292 = vmatpush1.msra.mxu0 %v246
        %1293 = vmatprep.subr.mxu0 0.0
        %1294 = vmatpush1.msra.mxu0 %v245
        %1295 = vmatprep.subr.mxu0 0.0
        %1296 = vmatpush1.msra.mxu0 %v244
        %1297 = vmatprep.subr.mxu0 0.0
        %1298 = vmatpush1.msra.mxu0 %v243
        %1299 = vmatprep.subr.mxu0 0.0
        %1300 = vmatpush1.msra.mxu0 %v242
        %1301 = vmatprep.subr.mxu0 0.0
        %1302 = vmatpush1.msra.mxu0 %v241
        %1303 = vmatprep.subr.mxu0 0.0
        %1304 = vmatpush1.msra.mxu0 %v240
        %1305 = vmatprep.subr.mxu0 0.0
        %1306 = vmatpush1.msra.mxu0 %v239
        %1307 = vmatprep.subr.mxu0 0.0
        %1308 = vmatpush1.msra.mxu0 %v238
        %1309 = vmatprep.subr.mxu0 0.0
        %1310 = vmatpush1.msra.mxu0 %v237
        %1311 = vmatprep.subr.mxu0 0.0
        %1312 = vmatpush1.msra.mxu0 %v236
        %1313 = vmatprep.subr.mxu0 0.0
        %1314 = vmatpush1.msra.mxu0 %v235
        %1315 = vmatprep.subr.mxu0 0.0
        %1316 = vmatpush1.msra.mxu0 %v234
        %1317 = vmatprep.subr.mxu0 0.0
        %1318 = vmatpush1.msra.mxu0 %v233
        %1319 = vmatprep.subr.mxu0 0.0
        %1320 = vmatpush1.msra.mxu0 %v232
        %1321 = vmatprep.subr.mxu0 0.0
        %1322 = vmatpush2.msra.mxu0 %v263
        %1323 = vmatprep.subr.mxu0 0.0
        %1324 = vmatpush2.msra.mxu0 %v262
        %1325 = vmatprep.subr.mxu0 0.0
        %1326 = vmatpush2.msra.mxu0 %v261
        %1327 = vmatprep.subr.mxu0 0.0
        %1328 = vmatpush2.msra.mxu0 %v260
        %1329 = vmatprep.subr.mxu0 0.0
        %1330 = vmatpush2.msra.mxu0 %v259
        %1331 = vmatprep.subr.mxu0 0.0
        %1332 = vmatpush2.msra.mxu0 %v258
        %1333 = vmatprep.subr.mxu0 0.0
        %1334 = vmatpush2.msra.mxu0 %v257
        %1335 = vmatprep.subr.mxu0 0.0
        %1336 = vmatpush2.msra.mxu0 %v256
        %1337 = vmatprep.subr.mxu0 0.0
        %1338 = vmatpush2.msra.mxu0 %v255
        %1339 = vmatprep.subr.mxu0 0.0
        %1340 = vmatpush2.msra.mxu0 %v254
        %1341 = vmatprep.subr.mxu0 0.0
        %1342 = vmatpush2.msra.mxu0 %v253
        %1343 = vmatprep.subr.mxu0 0.0
        %1344 = vmatpush2.msra.mxu0 %v252
        %1345 = vmatprep.subr.mxu0 0.0
        %1346 = vmatpush2.msra.mxu0 %v251
        %1347 = vmatprep.subr.mxu0 0.0
        %1348 = vmatpush2.msra.mxu0 %v250
        %1349 = vmatprep.subr.mxu0 0.0
        %1350 = vmatpush2.msra.mxu0 %v249
        %1351 = vmatprep.subr.mxu0 0.0
        %1352 = vmatpush2.msra.mxu0 %v248
        %1353 = vmatprep.mubr.f32.mxu0 %v1044
        %1354 = vmatmul.mubr.f32.gmra.mxu0 %v1036
        %v1355 = vpop.f32.mrf.mxu0
        %v1356 = vadd.f32 0.0, %v1355
        %v1357 = vpop.f32.mrf.mxu0
        %1358 = vdwg.mxu0
        %1359 = vmatprep.subr.mxu0 0.0
        %1360 = vmatpush1.msra.mxu0 %v279
        %1361 = vmatprep.subr.mxu0 0.0
        %1362 = vmatpush1.msra.mxu0 %v278
        %1363 = vmatprep.subr.mxu0 0.0
        %1364 = vmatpush1.msra.mxu0 %v277
        %1365 = vmatprep.subr.mxu0 0.0
        %1366 = vmatpush1.msra.mxu0 %v276
        %1367 = vmatprep.subr.mxu0 0.0
        %1368 = vmatpush1.msra.mxu0 %v275
        %1369 = vmatprep.subr.mxu0 0.0
        %1370 = vmatpush1.msra.mxu0 %v274
        %1371 = vmatprep.subr.mxu0 0.0
        %1372 = vmatpush1.msra.mxu0 %v273
        %1373 = vmatprep.subr.mxu0 0.0
        %1374 = vmatpush1.msra.mxu0 %v272
        %1375 = vmatprep.subr.mxu0 0.0
        %1376 = vmatpush1.msra.mxu0 %v271
        %1377 = vmatprep.subr.mxu0 0.0
        %1378 = vmatpush1.msra.mxu0 %v270
        %1379 = vmatprep.subr.mxu0 0.0
        %1380 = vmatpush1.msra.mxu0 %v269
        %1381 = vmatprep.subr.mxu0 0.0
        %1382 = vmatpush1.msra.mxu0 %v268
        %1383 = vmatprep.subr.mxu0 0.0
        %1384 = vmatpush1.msra.mxu0 %v267
        %1385 = vmatprep.subr.mxu0 0.0
        %1386 = vmatpush1.msra.mxu0 %v266
        %1387 = vmatprep.subr.mxu0 0.0
        %1388 = vmatpush1.msra.mxu0 %v265
        %1389 = vmatprep.subr.mxu0 0.0
        %1390 = vmatpush1.msra.mxu0 %v264
        %1391 = vmatprep.subr.mxu0 0.0
        %1392 = vmatpush2.msra.mxu0 %v295
        %1393 = vmatprep.subr.mxu0 0.0
        %1394 = vmatpush2.msra.mxu0 %v294
        %1395 = vmatprep.subr.mxu0 0.0
        %1396 = vmatpush2.msra.mxu0 %v293
        %1397 = vmatprep.subr.mxu0 0.0
        %1398 = vmatpush2.msra.mxu0 %v292
        %1399 = vmatprep.subr.mxu0 0.0
        %1400 = vmatpush2.msra.mxu0 %v291
        %1401 = vmatprep.subr.mxu0 0.0
        %1402 = vmatpush2.msra.mxu0 %v290
        %1403 = vmatprep.subr.mxu0 0.0
        %1404 = vmatpush2.msra.mxu0 %v289
        %1405 = vmatprep.subr.mxu0 0.0
        %1406 = vmatpush2.msra.mxu0 %v288
        %1407 = vmatprep.subr.mxu0 0.0
        %1408 = vmatpush2.msra.mxu0 %v287
        %1409 = vmatprep.subr.mxu0 0.0
        %1410 = vmatpush2.msra.mxu0 %v286
        %1411 = vmatprep.subr.mxu0 0.0
        %1412 = vmatpush2.msra.mxu0 %v285
        %1413 = vmatprep.subr.mxu0 0.0
        %1414 = vmatpush2.msra.mxu0 %v284
        %1415 = vmatprep.subr.mxu0 0.0
        %1416 = vmatpush2.msra.mxu0 %v283
        %1417 = vmatprep.subr.mxu0 0.0
        %1418 = vmatpush2.msra.mxu0 %v282
        %1419 = vmatprep.subr.mxu0 0.0
        %1420 = vmatpush2.msra.mxu0 %v281
        %1421 = vmatprep.subr.mxu0 0.0
        %1422 = vmatpush2.msra.mxu0 %v280
        %1423 = vmatprep.mubr.f32.mxu0 %v1045
        %1424 = vmatmul.mubr.f32.gmra.mxu0 %v1043
        %v1425 = vpop.f32.mrf.mxu0
        %v1426 = vadd.f32 %v1356, %v1425
        %v1427 = vpop.f32.mrf.mxu0
        %1428 = vdwg.mxu0
        %1429 = vmatprep.subr.mxu0 0.0
        %1430 = vmatpush1.msra.mxu0 %v311
        %1431 = vmatprep.subr.mxu0 0.0
        %1432 = vmatpush1.msra.mxu0 %v310
        %1433 = vmatprep.subr.mxu0 0.0
        %1434 = vmatpush1.msra.mxu0 %v309
        %1435 = vmatprep.subr.mxu0 0.0
        %1436 = vmatpush1.msra.mxu0 %v308
        %1437 = vmatprep.subr.mxu0 0.0
        %1438 = vmatpush1.msra.mxu0 %v307
        %1439 = vmatprep.subr.mxu0 0.0
        %1440 = vmatpush1.msra.mxu0 %v306
        %1441 = vmatprep.subr.mxu0 0.0
        %1442 = vmatpush1.msra.mxu0 %v305
        %1443 = vmatprep.subr.mxu0 0.0
        %1444 = vmatpush1.msra.mxu0 %v304
        %1445 = vmatprep.subr.mxu0 0.0
        %1446 = vmatpush1.msra.mxu0 %v303
        %1447 = vmatprep.subr.mxu0 0.0
        %1448 = vmatpush1.msra.mxu0 %v302
        %1449 = vmatprep.subr.mxu0 0.0
        %1450 = vmatpush1.msra.mxu0 %v301
        %1451 = vmatprep.subr.mxu0 0.0
        %1452 = vmatpush1.msra.mxu0 %v300
        %1453 = vmatprep.subr.mxu0 0.0
        %1454 = vmatpush1.msra.mxu0 %v299
        %1455 = vmatprep.subr.mxu0 0.0
        %1456 = vmatpush1.msra.mxu0 %v298
        %1457 = vmatprep.subr.mxu0 0.0
        %1458 = vmatpush1.msra.mxu0 %v297
        %1459 = vmatprep.subr.mxu0 0.0
        %1460 = vmatpush1.msra.mxu0 %v296
        %1461 = vmatprep.subr.mxu0 0.0
        %1462 = vmatpush2.msra.mxu0 %v327
        %1463 = vmatprep.subr.mxu0 0.0
        %1464 = vmatpush2.msra.mxu0 %v326
        %1465 = vmatprep.subr.mxu0 0.0
        %1466 = vmatpush2.msra.mxu0 %v325
        %1467 = vmatprep.subr.mxu0 0.0
        %1468 = vmatpush2.msra.mxu0 %v324
        %1469 = vmatprep.subr.mxu0 0.0
        %1470 = vmatpush2.msra.mxu0 %v323
        %1471 = vmatprep.subr.mxu0 0.0
        %1472 = vmatpush2.msra.mxu0 %v322
        %1473 = vmatprep.subr.mxu0 0.0
        %1474 = vmatpush2.msra.mxu0 %v321
        %1475 = vmatprep.subr.mxu0 0.0
        %1476 = vmatpush2.msra.mxu0 %v320
        %1477 = vmatprep.subr.mxu0 0.0
        %1478 = vmatpush2.msra.mxu0 %v319
        %1479 = vmatprep.subr.mxu0 0.0
        %1480 = vmatpush2.msra.mxu0 %v318
        %1481 = vmatprep.subr.mxu0 0.0
        %1482 = vmatpush2.msra.mxu0 %v317
        %1483 = vmatprep.subr.mxu0 0.0
        %1484 = vmatpush2.msra.mxu0 %v316
        %1485 = vmatprep.subr.mxu0 0.0
        %1486 = vmatpush2.msra.mxu0 %v315
        %1487 = vmatprep.subr.mxu0 0.0
        %1488 = vmatpush2.msra.mxu0 %v314
        %1489 = vmatprep.subr.mxu0 0.0
        %1490 = vmatpush2.msra.mxu0 %v313
        %1491 = vmatprep.subr.mxu0 0.0
        %1492 = vmatpush2.msra.mxu0 %v312
        %1493 = vmatprep.mubr.f32.mxu0 %v1061
        %1494 = vmatmul.mubr.f32.gmra.mxu0 %v1053
        %v1495 = vpop.f32.mrf.mxu0
        %v1496 = vadd.f32 %v1426, %v1495
        %v1497 = vpop.f32.mrf.mxu0
        %1498 = vdwg.mxu0
        %1499 = vmatprep.subr.mxu0 0.0
        %1500 = vmatpush1.msra.mxu0 %v343
        %1501 = vmatprep.subr.mxu0 0.0
        %1502 = vmatpush1.msra.mxu0 %v342
        %1503 = vmatprep.subr.mxu0 0.0
        %1504 = vmatpush1.msra.mxu0 %v341
        %1505 = vmatprep.subr.mxu0 0.0
        %1506 = vmatpush1.msra.mxu0 %v340
        %1507 = vmatprep.subr.mxu0 0.0
        %1508 = vmatpush1.msra.mxu0 %v339
        %1509 = vmatprep.subr.mxu0 0.0
        %1510 = vmatpush1.msra.mxu0 %v338
        %1511 = vmatprep.subr.mxu0 0.0
        %1512 = vmatpush1.msra.mxu0 %v337
        %1513 = vmatprep.subr.mxu0 0.0
        %1514 = vmatpush1.msra.mxu0 %v336
        %1515 = vmatprep.subr.mxu0 0.0
        %1516 = vmatpush1.msra.mxu0 %v335
        %1517 = vmatprep.subr.mxu0 0.0
        %1518 = vmatpush1.msra.mxu0 %v334
        %1519 = vmatprep.subr.mxu0 0.0
        %1520 = vmatpush1.msra.mxu0 %v333
        %1521 = vmatprep.subr.mxu0 0.0
        %1522 = vmatpush1.msra.mxu0 %v332
        %1523 = vmatprep.subr.mxu0 0.0
        %1524 = vmatpush1.msra.mxu0 %v331
        %1525 = vmatprep.subr.mxu0 0.0
        %1526 = vmatpush1.msra.mxu0 %v330
        %1527 = vmatprep.subr.mxu0 0.0
        %1528 = vmatpush1.msra.mxu0 %v329
        %1529 = vmatprep.subr.mxu0 0.0
        %1530 = vmatpush1.msra.mxu0 %v328
        %1531 = vmatprep.subr.mxu0 0.0
        %1532 = vmatpush2.msra.mxu0 %v359
        %1533 = vmatprep.subr.mxu0 0.0
        %1534 = vmatpush2.msra.mxu0 %v358
        %1535 = vmatprep.subr.mxu0 0.0
        %1536 = vmatpush2.msra.mxu0 %v357
        %1537 = vmatprep.subr.mxu0 0.0
        %1538 = vmatpush2.msra.mxu0 %v356
        %1539 = vmatprep.subr.mxu0 0.0
        %1540 = vmatpush2.msra.mxu0 %v355
        %1541 = vmatprep.subr.mxu0 0.0
        %1542 = vmatpush2.msra.mxu0 %v354
        %1543 = vmatprep.subr.mxu0 0.0
        %1544 = vmatpush2.msra.mxu0 %v353
        %1545 = vmatprep.subr.mxu0 0.0
        %1546 = vmatpush2.msra.mxu0 %v352
        %1547 = vmatprep.subr.mxu0 0.0
        %1548 = vmatpush2.msra.mxu0 %v351
        %1549 = vmatprep.subr.mxu0 0.0
        %1550 = vmatpush2.msra.mxu0 %v350
        %1551 = vmatprep.subr.mxu0 0.0
        %1552 = vmatpush2.msra.mxu0 %v349
        %1553 = vmatprep.subr.mxu0 0.0
        %1554 = vmatpush2.msra.mxu0 %v348
        %1555 = vmatprep.subr.mxu0 0.0
        %1556 = vmatpush2.msra.mxu0 %v347
        %1557 = vmatprep.subr.mxu0 0.0
        %1558 = vmatpush2.msra.mxu0 %v346
        %1559 = vmatprep.subr.mxu0 0.0
        %1560 = vmatpush2.msra.mxu0 %v345
        %1561 = vmatprep.subr.mxu0 0.0
        %1562 = vmatpush2.msra.mxu0 %v344
        %1563 = vmatprep.mubr.f32.mxu0 %v1062
        %1564 = vmatmul.mubr.f32.gmra.mxu0 %v1060
        %v1565 = vpop.f32.mrf.mxu0
        %v1566 = vadd.f32 %v1496, %v1565
        %v1567 = vpop.f32.mrf.mxu0
        %1568 = vdwg.mxu0
        %1569 = vmatprep.subr.mxu0 0.0
        %1570 = vmatpush1.msra.mxu0 %v375
        %1571 = vmatprep.subr.mxu0 0.0
        %1572 = vmatpush1.msra.mxu0 %v374
        %1573 = vmatprep.subr.mxu0 0.0
        %1574 = vmatpush1.msra.mxu0 %v373
        %1575 = vmatprep.subr.mxu0 0.0
        %1576 = vmatpush1.msra.mxu0 %v372
        %1577 = vmatprep.subr.mxu0 0.0
        %1578 = vmatpush1.msra.mxu0 %v371
        %1579 = vmatprep.subr.mxu0 0.0
        %1580 = vmatpush1.msra.mxu0 %v370
        %1581 = vmatprep.subr.mxu0 0.0
        %1582 = vmatpush1.msra.mxu0 %v369
        %1583 = vmatprep.subr.mxu0 0.0
        %1584 = vmatpush1.msra.mxu0 %v368
        %1585 = vmatprep.subr.mxu0 0.0
        %1586 = vmatpush1.msra.mxu0 %v367
        %1587 = vmatprep.subr.mxu0 0.0
        %1588 = vmatpush1.msra.mxu0 %v366
        %1589 = vmatprep.subr.mxu0 0.0
        %1590 = vmatpush1.msra.mxu0 %v365
        %1591 = vmatprep.subr.mxu0 0.0
        %1592 = vmatpush1.msra.mxu0 %v364
        %1593 = vmatprep.subr.mxu0 0.0
        %1594 = vmatpush1.msra.mxu0 %v363
        %1595 = vmatprep.subr.mxu0 0.0
        %1596 = vmatpush1.msra.mxu0 %v362
        %1597 = vmatprep.subr.mxu0 0.0
        %1598 = vmatpush1.msra.mxu0 %v361
        %1599 = vmatprep.subr.mxu0 0.0
        %1600 = vmatpush1.msra.mxu0 %v360
        %1601 = vmatprep.subr.mxu0 0.0
        %1602 = vmatpush2.msra.mxu0 %v391
        %1603 = vmatprep.subr.mxu0 0.0
        %1604 = vmatpush2.msra.mxu0 %v390
        %1605 = vmatprep.subr.mxu0 0.0
        %1606 = vmatpush2.msra.mxu0 %v389
        %1607 = vmatprep.subr.mxu0 0.0
        %1608 = vmatpush2.msra.mxu0 %v388
        %1609 = vmatprep.subr.mxu0 0.0
        %1610 = vmatpush2.msra.mxu0 %v387
        %1611 = vmatprep.subr.mxu0 0.0
        %1612 = vmatpush2.msra.mxu0 %v386
        %1613 = vmatprep.subr.mxu0 0.0
        %1614 = vmatpush2.msra.mxu0 %v385
        %1615 = vmatprep.subr.mxu0 0.0
        %1616 = vmatpush2.msra.mxu0 %v384
        %1617 = vmatprep.subr.mxu0 0.0
        %1618 = vmatpush2.msra.mxu0 %v383
        %1619 = vmatprep.subr.mxu0 0.0
        %1620 = vmatpush2.msra.mxu0 %v382
        %1621 = vmatprep.subr.mxu0 0.0
        %1622 = vmatpush2.msra.mxu0 %v381
        %1623 = vmatprep.subr.mxu0 0.0
        %1624 = vmatpush2.msra.mxu0 %v380
        %1625 = vmatprep.subr.mxu0 0.0
        %1626 = vmatpush2.msra.mxu0 %v379
        %1627 = vmatprep.subr.mxu0 0.0
        %1628 = vmatpush2.msra.mxu0 %v378
        %1629 = vmatprep.subr.mxu0 0.0
        %1630 = vmatpush2.msra.mxu0 %v377
        %1631 = vmatprep.subr.mxu0 0.0
        %1632 = vmatpush2.msra.mxu0 %v376
        %1633 = vmatprep.mubr.f32.mxu0 %v1078
        %1634 = vmatmul.mubr.f32.gmra.mxu0 %v1070
        %v1635 = vpop.f32.mrf.mxu0
        %v1636 = vadd.f32 %v1566, %v1635
        %v1637 = vpop.f32.mrf.mxu0
        %1638 = vdwg.mxu0
        %1639 = vmatprep.subr.mxu0 0.0
        %1640 = vmatpush1.msra.mxu0 %v407
        %1641 = vmatprep.subr.mxu0 0.0
        %1642 = vmatpush1.msra.mxu0 %v406
        %1643 = vmatprep.subr.mxu0 0.0
        %1644 = vmatpush1.msra.mxu0 %v405
        %1645 = vmatprep.subr.mxu0 0.0
        %1646 = vmatpush1.msra.mxu0 %v404
        %1647 = vmatprep.subr.mxu0 0.0
        %1648 = vmatpush1.msra.mxu0 %v403
        %1649 = vmatprep.subr.mxu0 0.0
        %1650 = vmatpush1.msra.mxu0 %v402
        %1651 = vmatprep.subr.mxu0 0.0
        %1652 = vmatpush1.msra.mxu0 %v401
        %1653 = vmatprep.subr.mxu0 0.0
        %1654 = vmatpush1.msra.mxu0 %v400
        %1655 = vmatprep.subr.mxu0 0.0
        %1656 = vmatpush1.msra.mxu0 %v399
        %1657 = vmatprep.subr.mxu0 0.0
        %1658 = vmatpush1.msra.mxu0 %v398
        %1659 = vmatprep.subr.mxu0 0.0
        %1660 = vmatpush1.msra.mxu0 %v397
        %1661 = vmatprep.subr.mxu0 0.0
        %1662 = vmatpush1.msra.mxu0 %v396
        %1663 = vmatprep.subr.mxu0 0.0
        %1664 = vmatpush1.msra.mxu0 %v395
        %1665 = vmatprep.subr.mxu0 0.0
        %1666 = vmatpush1.msra.mxu0 %v394
        %1667 = vmatprep.subr.mxu0 0.0
        %1668 = vmatpush1.msra.mxu0 %v393
        %1669 = vmatprep.subr.mxu0 0.0
        %1670 = vmatpush1.msra.mxu0 %v392
        %1671 = vmatprep.subr.mxu0 0.0
        %1672 = vmatpush2.msra.mxu0 %v423
        %1673 = vmatprep.subr.mxu0 0.0
        %1674 = vmatpush2.msra.mxu0 %v422
        %1675 = vmatprep.subr.mxu0 0.0
        %1676 = vmatpush2.msra.mxu0 %v421
        %1677 = vmatprep.subr.mxu0 0.0
        %1678 = vmatpush2.msra.mxu0 %v420
        %1679 = vmatprep.subr.mxu0 0.0
        %1680 = vmatpush2.msra.mxu0 %v419
        %1681 = vmatprep.subr.mxu0 0.0
        %1682 = vmatpush2.msra.mxu0 %v418
        %1683 = vmatprep.subr.mxu0 0.0
        %1684 = vmatpush2.msra.mxu0 %v417
        %1685 = vmatprep.subr.mxu0 0.0
        %1686 = vmatpush2.msra.mxu0 %v416
        %1687 = vmatprep.subr.mxu0 0.0
        %1688 = vmatpush2.msra.mxu0 %v415
        %1689 = vmatprep.subr.mxu0 0.0
        %1690 = vmatpush2.msra.mxu0 %v414
        %1691 = vmatprep.subr.mxu0 0.0
        %1692 = vmatpush2.msra.mxu0 %v413
        %1693 = vmatprep.subr.mxu0 0.0
        %1694 = vmatpush2.msra.mxu0 %v412
        %1695 = vmatprep.subr.mxu0 0.0
        %1696 = vmatpush2.msra.mxu0 %v411
        %1697 = vmatprep.subr.mxu0 0.0
        %1698 = vmatpush2.msra.mxu0 %v410
        %1699 = vmatprep.subr.mxu0 0.0
        %1700 = vmatpush2.msra.mxu0 %v409
        %1701 = vmatprep.subr.mxu0 0.0
        %1702 = vmatpush2.msra.mxu0 %v408
        %1703 = vmatprep.mubr.f32.mxu0 %v1079
        %1704 = vmatmul.mubr.f32.gmra.mxu0 %v1077
        %v1705 = vpop.f32.mrf.mxu0
        %v1706 = vadd.f32 %v1636, %v1705
        %v1707 = vpop.f32.mrf.mxu0
        %1708 = vdwg.mxu0
        %1709 = vmatprep.subr.mxu0 0.0
        %1710 = vmatpush1.msra.mxu0 %v439
        %1711 = vmatprep.subr.mxu0 0.0
        %1712 = vmatpush1.msra.mxu0 %v438
        %1713 = vmatprep.subr.mxu0 0.0
        %1714 = vmatpush1.msra.mxu0 %v437
        %1715 = vmatprep.subr.mxu0 0.0
        %1716 = vmatpush1.msra.mxu0 %v436
        %1717 = vmatprep.subr.mxu0 0.0
        %1718 = vmatpush1.msra.mxu0 %v435
        %1719 = vmatprep.subr.mxu0 0.0
        %1720 = vmatpush1.msra.mxu0 %v434
        %1721 = vmatprep.subr.mxu0 0.0
        %1722 = vmatpush1.msra.mxu0 %v433
        %1723 = vmatprep.subr.mxu0 0.0
        %1724 = vmatpush1.msra.mxu0 %v432
        %1725 = vmatprep.subr.mxu0 0.0
        %1726 = vmatpush1.msra.mxu0 %v431
        %1727 = vmatprep.subr.mxu0 0.0
        %1728 = vmatpush1.msra.mxu0 %v430
        %1729 = vmatprep.subr.mxu0 0.0
        %1730 = vmatpush1.msra.mxu0 %v429
        %1731 = vmatprep.subr.mxu0 0.0
        %1732 = vmatpush1.msra.mxu0 %v428
        %1733 = vmatprep.subr.mxu0 0.0
        %1734 = vmatpush1.msra.mxu0 %v427
        %1735 = vmatprep.subr.mxu0 0.0
        %1736 = vmatpush1.msra.mxu0 %v426
        %1737 = vmatprep.subr.mxu0 0.0
        %1738 = vmatpush1.msra.mxu0 %v425
        %1739 = vmatprep.subr.mxu0 0.0
        %1740 = vmatpush1.msra.mxu0 %v424
        %1741 = vmatprep.subr.mxu0 0.0
        %1742 = vmatpush2.msra.mxu0 %v455
        %1743 = vmatprep.subr.mxu0 0.0
        %1744 = vmatpush2.msra.mxu0 %v454
        %1745 = vmatprep.subr.mxu0 0.0
        %1746 = vmatpush2.msra.mxu0 %v453
        %1747 = vmatprep.subr.mxu0 0.0
        %1748 = vmatpush2.msra.mxu0 %v452
        %1749 = vmatprep.subr.mxu0 0.0
        %1750 = vmatpush2.msra.mxu0 %v451
        %1751 = vmatprep.subr.mxu0 0.0
        %1752 = vmatpush2.msra.mxu0 %v450
        %1753 = vmatprep.subr.mxu0 0.0
        %1754 = vmatpush2.msra.mxu0 %v449
        %1755 = vmatprep.subr.mxu0 0.0
        %1756 = vmatpush2.msra.mxu0 %v448
        %1757 = vmatprep.subr.mxu0 0.0
        %1758 = vmatpush2.msra.mxu0 %v447
        %1759 = vmatprep.subr.mxu0 0.0
        %1760 = vmatpush2.msra.mxu0 %v446
        %1761 = vmatprep.subr.mxu0 0.0
        %1762 = vmatpush2.msra.mxu0 %v445
        %1763 = vmatprep.subr.mxu0 0.0
        %1764 = vmatpush2.msra.mxu0 %v444
        %1765 = vmatprep.subr.mxu0 0.0
        %1766 = vmatpush2.msra.mxu0 %v443
        %1767 = vmatprep.subr.mxu0 0.0
        %1768 = vmatpush2.msra.mxu0 %v442
        %1769 = vmatprep.subr.mxu0 0.0
        %1770 = vmatpush2.msra.mxu0 %v441
        %1771 = vmatprep.subr.mxu0 0.0
        %1772 = vmatpush2.msra.mxu0 %v440
        %1773 = vmatprep.mubr.f32.mxu0 %v1095
        %1774 = vmatmul.mubr.f32.gmra.mxu0 %v1087
        %v1775 = vpop.f32.mrf.mxu0
        %v1776 = vadd.f32 %v1706, %v1775
        %v1777 = vpop.f32.mrf.mxu0
        %1778 = vdwg.mxu0
        %1779 = vmatprep.subr.mxu0 0.0
        %1780 = vmatpush1.msra.mxu0 %v471
        %1781 = vmatprep.subr.mxu0 0.0
        %1782 = vmatpush1.msra.mxu0 %v470
        %1783 = vmatprep.subr.mxu0 0.0
        %1784 = vmatpush1.msra.mxu0 %v469
        %1785 = vmatprep.subr.mxu0 0.0
        %1786 = vmatpush1.msra.mxu0 %v468
        %1787 = vmatprep.subr.mxu0 0.0
        %1788 = vmatpush1.msra.mxu0 %v467
        %1789 = vmatprep.subr.mxu0 0.0
        %1790 = vmatpush1.msra.mxu0 %v466
        %1791 = vmatprep.subr.mxu0 0.0
        %1792 = vmatpush1.msra.mxu0 %v465
        %1793 = vmatprep.subr.mxu0 0.0
        %1794 = vmatpush1.msra.mxu0 %v464
        %1795 = vmatprep.subr.mxu0 0.0
        %1796 = vmatpush1.msra.mxu0 %v463
        %1797 = vmatprep.subr.mxu0 0.0
        %1798 = vmatpush1.msra.mxu0 %v462
        %1799 = vmatprep.subr.mxu0 0.0
        %1800 = vmatpush1.msra.mxu0 %v461
        %1801 = vmatprep.subr.mxu0 0.0
        %1802 = vmatpush1.msra.mxu0 %v460
        %1803 = vmatprep.subr.mxu0 0.0
        %1804 = vmatpush1.msra.mxu0 %v459
        %1805 = vmatprep.subr.mxu0 0.0
        %1806 = vmatpush1.msra.mxu0 %v458
        %1807 = vmatprep.subr.mxu0 0.0
        %1808 = vmatpush1.msra.mxu0 %v457
        %1809 = vmatprep.subr.mxu0 0.0
        %1810 = vmatpush1.msra.mxu0 %v456
        %1811 = vmatprep.subr.mxu0 0.0
        %1812 = vmatpush2.msra.mxu0 %v487
        %1813 = vmatprep.subr.mxu0 0.0
        %1814 = vmatpush2.msra.mxu0 %v486
        %1815 = vmatprep.subr.mxu0 0.0
        %1816 = vmatpush2.msra.mxu0 %v485
        %1817 = vmatprep.subr.mxu0 0.0
        %1818 = vmatpush2.msra.mxu0 %v484
        %1819 = vmatprep.subr.mxu0 0.0
        %1820 = vmatpush2.msra.mxu0 %v483
        %1821 = vmatprep.subr.mxu0 0.0
        %1822 = vmatpush2.msra.mxu0 %v482
        %1823 = vmatprep.subr.mxu0 0.0
        %1824 = vmatpush2.msra.mxu0 %v481
        %1825 = vmatprep.subr.mxu0 0.0
        %1826 = vmatpush2.msra.mxu0 %v480
        %1827 = vmatprep.subr.mxu0 0.0
        %1828 = vmatpush2.msra.mxu0 %v479
        %1829 = vmatprep.subr.mxu0 0.0
        %1830 = vmatpush2.msra.mxu0 %v478
        %1831 = vmatprep.subr.mxu0 0.0
        %1832 = vmatpush2.msra.mxu0 %v477
        %1833 = vmatprep.subr.mxu0 0.0
        %1834 = vmatpush2.msra.mxu0 %v476
        %1835 = vmatprep.subr.mxu0 0.0
        %1836 = vmatpush2.msra.mxu0 %v475
        %1837 = vmatprep.subr.mxu0 0.0
        %1838 = vmatpush2.msra.mxu0 %v474
        %1839 = vmatprep.subr.mxu0 0.0
        %1840 = vmatpush2.msra.mxu0 %v473
        %1841 = vmatprep.subr.mxu0 0.0
        %1842 = vmatpush2.msra.mxu0 %v472
        %1843 = vmatprep.mubr.f32.mxu0 %v1096
        %1844 = vmatmul.mubr.f32.gmra.mxu0 %v1094
        %v1845 = vpop.f32.mrf.mxu0
        %v1846 = vadd.f32 %v1776, %v1845
        %v1847 = vpop.f32.mrf.mxu0
        %1848 = vdwg.mxu0
        %1849 = vmatprep.subr.mxu0 0.0
        %1850 = vmatpush1.msra.mxu0 %v503
        %1851 = vmatprep.subr.mxu0 0.0
        %1852 = vmatpush1.msra.mxu0 %v502
        %1853 = vmatprep.subr.mxu0 0.0
        %1854 = vmatpush1.msra.mxu0 %v501
        %1855 = vmatprep.subr.mxu0 0.0
        %1856 = vmatpush1.msra.mxu0 %v500
        %1857 = vmatprep.subr.mxu0 0.0
        %1858 = vmatpush1.msra.mxu0 %v499
        %1859 = vmatprep.subr.mxu0 0.0
        %1860 = vmatpush1.msra.mxu0 %v498
        %1861 = vmatprep.subr.mxu0 0.0
        %1862 = vmatpush1.msra.mxu0 %v497
        %1863 = vmatprep.subr.mxu0 0.0
        %1864 = vmatpush1.msra.mxu0 %v496
        %1865 = vmatprep.subr.mxu0 0.0
        %1866 = vmatpush1.msra.mxu0 %v495
        %1867 = vmatprep.subr.mxu0 0.0
        %1868 = vmatpush1.msra.mxu0 %v494
        %1869 = vmatprep.subr.mxu0 0.0
        %1870 = vmatpush1.msra.mxu0 %v493
        %1871 = vmatprep.subr.mxu0 0.0
        %1872 = vmatpush1.msra.mxu0 %v492
        %1873 = vmatprep.subr.mxu0 0.0
        %1874 = vmatpush1.msra.mxu0 %v491
        %1875 = vmatprep.subr.mxu0 0.0
        %1876 = vmatpush1.msra.mxu0 %v490
        %1877 = vmatprep.subr.mxu0 0.0
        %1878 = vmatpush1.msra.mxu0 %v489
        %1879 = vmatprep.subr.mxu0 0.0
        %1880 = vmatpush1.msra.mxu0 %v488
        %1881 = vmatprep.subr.mxu0 0.0
        %1882 = vmatpush2.msra.mxu0 %v519
        %1883 = vmatprep.subr.mxu0 0.0
        %1884 = vmatpush2.msra.mxu0 %v518
        %1885 = vmatprep.subr.mxu0 0.0
        %1886 = vmatpush2.msra.mxu0 %v517
        %1887 = vmatprep.subr.mxu0 0.0
        %1888 = vmatpush2.msra.mxu0 %v516
        %1889 = vmatprep.subr.mxu0 0.0
        %1890 = vmatpush2.msra.mxu0 %v515
        %1891 = vmatprep.subr.mxu0 0.0
        %1892 = vmatpush2.msra.mxu0 %v514
        %1893 = vmatprep.subr.mxu0 0.0
        %1894 = vmatpush2.msra.mxu0 %v513
        %1895 = vmatprep.subr.mxu0 0.0
        %1896 = vmatpush2.msra.mxu0 %v512
        %1897 = vmatprep.subr.mxu0 0.0
        %1898 = vmatpush2.msra.mxu0 %v511
        %1899 = vmatprep.subr.mxu0 0.0
        %1900 = vmatpush2.msra.mxu0 %v510
        %1901 = vmatprep.subr.mxu0 0.0
        %1902 = vmatpush2.msra.mxu0 %v509
        %1903 = vmatprep.subr.mxu0 0.0
        %1904 = vmatpush2.msra.mxu0 %v508
        %1905 = vmatprep.subr.mxu0 0.0
        %1906 = vmatpush2.msra.mxu0 %v507
        %1907 = vmatprep.subr.mxu0 0.0
        %1908 = vmatpush2.msra.mxu0 %v506
        %1909 = vmatprep.subr.mxu0 0.0
        %1910 = vmatpush2.msra.mxu0 %v505
        %1911 = vmatprep.subr.mxu0 0.0
        %1912 = vmatpush2.msra.mxu0 %v504
        %1913 = vmatprep.mubr.f32.mxu0 %v1112
        %1914 = vmatmul.mubr.f32.gmra.mxu0 %v1104
        %v1915 = vpop.f32.mrf.mxu0
        %v1916 = vadd.f32 %v1846, %v1915
        %v1917 = vpop.f32.mrf.mxu0
        %1918 = vdwg.mxu0
        %1919 = vmatprep.subr.mxu0 0.0
        %1920 = vmatpush1.msra.mxu0 %v535
        %1921 = vmatprep.subr.mxu0 0.0
        %1922 = vmatpush1.msra.mxu0 %v534
        %1923 = vmatprep.subr.mxu0 0.0
        %1924 = vmatpush1.msra.mxu0 %v533
        %1925 = vmatprep.subr.mxu0 0.0
        %1926 = vmatpush1.msra.mxu0 %v532
        %1927 = vmatprep.subr.mxu0 0.0
        %1928 = vmatpush1.msra.mxu0 %v531
        %1929 = vmatprep.subr.mxu0 0.0
        %1930 = vmatpush1.msra.mxu0 %v530
        %1931 = vmatprep.subr.mxu0 0.0
        %1932 = vmatpush1.msra.mxu0 %v529
        %1933 = vmatprep.subr.mxu0 0.0
        %1934 = vmatpush1.msra.mxu0 %v528
        %1935 = vmatprep.subr.mxu0 0.0
        %1936 = vmatpush1.msra.mxu0 %v527
        %1937 = vmatprep.subr.mxu0 0.0
        %1938 = vmatpush1.msra.mxu0 %v526
        %1939 = vmatprep.subr.mxu0 0.0
        %1940 = vmatpush1.msra.mxu0 %v525
        %1941 = vmatprep.subr.mxu0 0.0
        %1942 = vmatpush1.msra.mxu0 %v524
        %1943 = vmatprep.subr.mxu0 0.0
        %1944 = vmatpush1.msra.mxu0 %v523
        %1945 = vmatprep.subr.mxu0 0.0
        %1946 = vmatpush1.msra.mxu0 %v522
        %1947 = vmatprep.subr.mxu0 0.0
        %1948 = vmatpush1.msra.mxu0 %v521
        %1949 = vmatprep.subr.mxu0 0.0
        %1950 = vmatpush1.msra.mxu0 %v520
        %1951 = vmatprep.subr.mxu0 0.0
        %1952 = vmatpush2.msra.mxu0 %v551
        %1953 = vmatprep.subr.mxu0 0.0
        %1954 = vmatpush2.msra.mxu0 %v550
        %1955 = vmatprep.subr.mxu0 0.0
        %1956 = vmatpush2.msra.mxu0 %v549
        %1957 = vmatprep.subr.mxu0 0.0
        %1958 = vmatpush2.msra.mxu0 %v548
        %1959 = vmatprep.subr.mxu0 0.0
        %1960 = vmatpush2.msra.mxu0 %v547
        %1961 = vmatprep.subr.mxu0 0.0
        %1962 = vmatpush2.msra.mxu0 %v546
        %1963 = vmatprep.subr.mxu0 0.0
        %1964 = vmatpush2.msra.mxu0 %v545
        %1965 = vmatprep.subr.mxu0 0.0
        %1966 = vmatpush2.msra.mxu0 %v544
        %1967 = vmatprep.subr.mxu0 0.0
        %1968 = vmatpush2.msra.mxu0 %v543
        %1969 = vmatprep.subr.mxu0 0.0
        %1970 = vmatpush2.msra.mxu0 %v542
        %1971 = vmatprep.subr.mxu0 0.0
        %1972 = vmatpush2.msra.mxu0 %v541
        %1973 = vmatprep.subr.mxu0 0.0
        %1974 = vmatpush2.msra.mxu0 %v540
        %1975 = vmatprep.subr.mxu0 0.0
        %1976 = vmatpush2.msra.mxu0 %v539
        %1977 = vmatprep.subr.mxu0 0.0
        %1978 = vmatpush2.msra.mxu0 %v538
        %1979 = vmatprep.subr.mxu0 0.0
        %1980 = vmatpush2.msra.mxu0 %v537
        %1981 = vmatprep.subr.mxu0 0.0
        %1982 = vmatpush2.msra.mxu0 %v536
        %1983 = vmatprep.mubr.f32.mxu0 %v1113
        %1984 = vmatmul.mubr.f32.gmra.mxu0 %v1111
        %v1985 = vpop.f32.mrf.mxu0
        %v1986 = vadd.f32 %v1916, %v1985
        %v1987 = vpop.f32.mrf.mxu0
        %1988 = vdwg.mxu0
        %1989 = vmatprep.subr.mxu0 0.0
        %1990 = vmatpush1.msra.mxu0 %v567
        %1991 = vmatprep.subr.mxu0 0.0
        %1992 = vmatpush1.msra.mxu0 %v566
        %1993 = vmatprep.subr.mxu0 0.0
        %1994 = vmatpush1.msra.mxu0 %v565
        %1995 = vmatprep.subr.mxu0 0.0
        %1996 = vmatpush1.msra.mxu0 %v564
        %1997 = vmatprep.subr.mxu0 0.0
        %1998 = vmatpush1.msra.mxu0 %v563
        %1999 = vmatprep.subr.mxu0 0.0
        %2000 = vmatpush1.msra.mxu0 %v562
        %2001 = vmatprep.subr.mxu0 0.0
        %2002 = vmatpush1.msra.mxu0 %v561
        %2003 = vmatprep.subr.mxu0 0.0
        %2004 = vmatpush1.msra.mxu0 %v560
        %2005 = vmatprep.subr.mxu0 0.0
        %2006 = vmatpush1.msra.mxu0 %v559
        %2007 = vmatprep.subr.mxu0 0.0
        %2008 = vmatpush1.msra.mxu0 %v558
        %2009 = vmatprep.subr.mxu0 0.0
        %2010 = vmatpush1.msra.mxu0 %v557
        %2011 = vmatprep.subr.mxu0 0.0
        %2012 = vmatpush1.msra.mxu0 %v556
        %2013 = vmatprep.subr.mxu0 0.0
        %2014 = vmatpush1.msra.mxu0 %v555
        %2015 = vmatprep.subr.mxu0 0.0
        %2016 = vmatpush1.msra.mxu0 %v554
        %2017 = vmatprep.subr.mxu0 0.0
        %2018 = vmatpush1.msra.mxu0 %v553
        %2019 = vmatprep.subr.mxu0 0.0
        %2020 = vmatpush1.msra.mxu0 %v552
        %2021 = vmatprep.subr.mxu0 0.0
        %2022 = vmatpush2.msra.mxu0 %v583
        %2023 = vmatprep.subr.mxu0 0.0
        %2024 = vmatpush2.msra.mxu0 %v582
        %2025 = vmatprep.subr.mxu0 0.0
        %2026 = vmatpush2.msra.mxu0 %v581
        %2027 = vmatprep.subr.mxu0 0.0
        %2028 = vmatpush2.msra.mxu0 %v580
        %2029 = vmatprep.subr.mxu0 0.0
        %2030 = vmatpush2.msra.mxu0 %v579
        %2031 = vmatprep.subr.mxu0 0.0
        %2032 = vmatpush2.msra.mxu0 %v578
        %2033 = vmatprep.subr.mxu0 0.0
        %2034 = vmatpush2.msra.mxu0 %v577
        %2035 = vmatprep.subr.mxu0 0.0
        %2036 = vmatpush2.msra.mxu0 %v576
        %2037 = vmatprep.subr.mxu0 0.0
        %2038 = vmatpush2.msra.mxu0 %v575
        %2039 = vmatprep.subr.mxu0 0.0
        %2040 = vmatpush2.msra.mxu0 %v574
        %2041 = vmatprep.subr.mxu0 0.0
        %2042 = vmatpush2.msra.mxu0 %v573
        %2043 = vmatprep.subr.mxu0 0.0
        %2044 = vmatpush2.msra.mxu0 %v572
        %2045 = vmatprep.subr.mxu0 0.0
        %2046 = vmatpush2.msra.mxu0 %v571
        %2047 = vmatprep.subr.mxu0 0.0
        %2048 = vmatpush2.msra.mxu0 %v570
        %2049 = vmatprep.subr.mxu0 0.0
        %2050 = vmatpush2.msra.mxu0 %v569
        %2051 = vmatprep.subr.mxu0 0.0
        %2052 = vmatpush2.msra.mxu0 %v568
        %2053 = vmatprep.mubr.f32.mxu0 %v1129
        %2054 = vmatmul.mubr.f32.gmra.mxu0 %v1121
        %v2055 = vpop.f32.mrf.mxu0
        %v2056 = vadd.f32 %v1986, %v2055
        %v2057 = vpop.f32.mrf.mxu0
        %2058 = vdwg.mxu0
        %2059 = vmatprep.subr.mxu0 0.0
        %2060 = vmatpush1.msra.mxu0 %v599
        %2061 = vmatprep.subr.mxu0 0.0
        %2062 = vmatpush1.msra.mxu0 %v598
        %2063 = vmatprep.subr.mxu0 0.0
        %2064 = vmatpush1.msra.mxu0 %v597
        %2065 = vmatprep.subr.mxu0 0.0
        %2066 = vmatpush1.msra.mxu0 %v596
        %2067 = vmatprep.subr.mxu0 0.0
        %2068 = vmatpush1.msra.mxu0 %v595
        %2069 = vmatprep.subr.mxu0 0.0
        %2070 = vmatpush1.msra.mxu0 %v594
        %2071 = vmatprep.subr.mxu0 0.0
        %2072 = vmatpush1.msra.mxu0 %v593
        %2073 = vmatprep.subr.mxu0 0.0
        %2074 = vmatpush1.msra.mxu0 %v592
        %2075 = vmatprep.subr.mxu0 0.0
        %2076 = vmatpush1.msra.mxu0 %v591
        %2077 = vmatprep.subr.mxu0 0.0
        %2078 = vmatpush1.msra.mxu0 %v590
        %2079 = vmatprep.subr.mxu0 0.0
        %2080 = vmatpush1.msra.mxu0 %v589
        %2081 = vmatprep.subr.mxu0 0.0
        %2082 = vmatpush1.msra.mxu0 %v588
        %2083 = vmatprep.subr.mxu0 0.0
        %2084 = vmatpush1.msra.mxu0 %v587
        %2085 = vmatprep.subr.mxu0 0.0
        %2086 = vmatpush1.msra.mxu0 %v586
        %2087 = vmatprep.subr.mxu0 0.0
        %2088 = vmatpush1.msra.mxu0 %v585
        %2089 = vmatprep.subr.mxu0 0.0
        %2090 = vmatpush1.msra.mxu0 %v584
        %2091 = vmatprep.subr.mxu0 0.0
        %2092 = vmatpush2.msra.mxu0 %v615
        %2093 = vmatprep.subr.mxu0 0.0
        %2094 = vmatpush2.msra.mxu0 %v614
        %2095 = vmatprep.subr.mxu0 0.0
        %2096 = vmatpush2.msra.mxu0 %v613
        %2097 = vmatprep.subr.mxu0 0.0
        %2098 = vmatpush2.msra.mxu0 %v612
        %2099 = vmatprep.subr.mxu0 0.0
        %2100 = vmatpush2.msra.mxu0 %v611
        %2101 = vmatprep.subr.mxu0 0.0
        %2102 = vmatpush2.msra.mxu0 %v610
        %2103 = vmatprep.subr.mxu0 0.0
        %2104 = vmatpush2.msra.mxu0 %v609
        %2105 = vmatprep.subr.mxu0 0.0
        %2106 = vmatpush2.msra.mxu0 %v608
        %2107 = vmatprep.subr.mxu0 0.0
        %2108 = vmatpush2.msra.mxu0 %v607
        %2109 = vmatprep.subr.mxu0 0.0
        %2110 = vmatpush2.msra.mxu0 %v606
        %2111 = vmatprep.subr.mxu0 0.0
        %2112 = vmatpush2.msra.mxu0 %v605
        %2113 = vmatprep.subr.mxu0 0.0
        %2114 = vmatpush2.msra.mxu0 %v604
        %2115 = vmatprep.subr.mxu0 0.0
        %2116 = vmatpush2.msra.mxu0 %v603
        %2117 = vmatprep.subr.mxu0 0.0
        %2118 = vmatpush2.msra.mxu0 %v602
        %2119 = vmatprep.subr.mxu0 0.0
        %2120 = vmatpush2.msra.mxu0 %v601
        %2121 = vmatprep.subr.mxu0 0.0
        %2122 = vmatpush2.msra.mxu0 %v600
        %2123 = vmatprep.mubr.f32.mxu0 %v1130
        %2124 = vmatmul.mubr.f32.gmra.mxu0 %v1128
        %v2125 = vpop.f32.mrf.mxu0
        %v2126 = vadd.f32 %v2056, %v2125
        %v2127 = vpop.f32.mrf.mxu0
        %2128 = vdwg.mxu0
        %2129 = vmatprep.subr.mxu0 0.0
        %2130 = vmatpush1.msra.mxu0 %v631
        %2131 = vmatprep.subr.mxu0 0.0
        %2132 = vmatpush1.msra.mxu0 %v630
        %2133 = vmatprep.subr.mxu0 0.0
        %2134 = vmatpush1.msra.mxu0 %v629
        %2135 = vmatprep.subr.mxu0 0.0
        %2136 = vmatpush1.msra.mxu0 %v628
        %2137 = vmatprep.subr.mxu0 0.0
        %2138 = vmatpush1.msra.mxu0 %v627
        %2139 = vmatprep.subr.mxu0 0.0
        %2140 = vmatpush1.msra.mxu0 %v626
        %2141 = vmatprep.subr.mxu0 0.0
        %2142 = vmatpush1.msra.mxu0 %v625
        %2143 = vmatprep.subr.mxu0 0.0
        %2144 = vmatpush1.msra.mxu0 %v624
        %2145 = vmatprep.subr.mxu0 0.0
        %2146 = vmatpush1.msra.mxu0 %v623
        %2147 = vmatprep.subr.mxu0 0.0
        %2148 = vmatpush1.msra.mxu0 %v622
        %2149 = vmatprep.subr.mxu0 0.0
        %2150 = vmatpush1.msra.mxu0 %v621
        %2151 = vmatprep.subr.mxu0 0.0
        %2152 = vmatpush1.msra.mxu0 %v620
        %2153 = vmatprep.subr.mxu0 0.0
        %2154 = vmatpush1.msra.mxu0 %v619
        %2155 = vmatprep.subr.mxu0 0.0
        %2156 = vmatpush1.msra.mxu0 %v618
        %2157 = vmatprep.subr.mxu0 0.0
        %2158 = vmatpush1.msra.mxu0 %v617
        %2159 = vmatprep.subr.mxu0 0.0
        %2160 = vmatpush1.msra.mxu0 %v616
        %2161 = vmatprep.subr.mxu0 0.0
        %2162 = vmatpush2.msra.mxu0 %v647
        %2163 = vmatprep.subr.mxu0 0.0
        %2164 = vmatpush2.msra.mxu0 %v646
        %2165 = vmatprep.subr.mxu0 0.0
        %2166 = vmatpush2.msra.mxu0 %v645
        %2167 = vmatprep.subr.mxu0 0.0
        %2168 = vmatpush2.msra.mxu0 %v644
        %2169 = vmatprep.subr.mxu0 0.0
        %2170 = vmatpush2.msra.mxu0 %v643
        %2171 = vmatprep.subr.mxu0 0.0
        %2172 = vmatpush2.msra.mxu0 %v642
        %2173 = vmatprep.subr.mxu0 0.0
        %2174 = vmatpush2.msra.mxu0 %v641
        %2175 = vmatprep.subr.mxu0 0.0
        %2176 = vmatpush2.msra.mxu0 %v640
        %2177 = vmatprep.subr.mxu0 0.0
        %2178 = vmatpush2.msra.mxu0 %v639
        %2179 = vmatprep.subr.mxu0 0.0
        %2180 = vmatpush2.msra.mxu0 %v638
        %2181 = vmatprep.subr.mxu0 0.0
        %2182 = vmatpush2.msra.mxu0 %v637
        %2183 = vmatprep.subr.mxu0 0.0
        %2184 = vmatpush2.msra.mxu0 %v636
        %2185 = vmatprep.subr.mxu0 0.0
        %2186 = vmatpush2.msra.mxu0 %v635
        %2187 = vmatprep.subr.mxu0 0.0
        %2188 = vmatpush2.msra.mxu0 %v634
        %2189 = vmatprep.subr.mxu0 0.0
        %2190 = vmatpush2.msra.mxu0 %v633
        %2191 = vmatprep.subr.mxu0 0.0
        %2192 = vmatpush2.msra.mxu0 %v632
        %2193 = vmatprep.mubr.f32.mxu0 %v1146
        %2194 = vmatmul.mubr.f32.gmra.mxu0 %v1138
        %v2195 = vpop.f32.mrf.mxu0
        %v2196 = vadd.f32 %v2126, %v2195
        %v2197 = vpop.f32.mrf.mxu0
        %2198 = vdwg.mxu0
        %2199 = vmatprep.subr.mxu0 0.0
        %2200 = vmatpush1.msra.mxu0 %v663
        %2201 = vmatprep.subr.mxu0 0.0
        %2202 = vmatpush1.msra.mxu0 %v662
        %2203 = vmatprep.subr.mxu0 0.0
        %2204 = vmatpush1.msra.mxu0 %v661
        %2205 = vmatprep.subr.mxu0 0.0
        %2206 = vmatpush1.msra.mxu0 %v660
        %2207 = vmatprep.subr.mxu0 0.0
        %2208 = vmatpush1.msra.mxu0 %v659
        %2209 = vmatprep.subr.mxu0 0.0
        %2210 = vmatpush1.msra.mxu0 %v658
        %2211 = vmatprep.subr.mxu0 0.0
        %2212 = vmatpush1.msra.mxu0 %v657
        %2213 = vmatprep.subr.mxu0 0.0
        %2214 = vmatpush1.msra.mxu0 %v656
        %2215 = vmatprep.subr.mxu0 0.0
        %2216 = vmatpush1.msra.mxu0 %v655
        %2217 = vmatprep.subr.mxu0 0.0
        %2218 = vmatpush1.msra.mxu0 %v654
        %2219 = vmatprep.subr.mxu0 0.0
        %2220 = vmatpush1.msra.mxu0 %v653
        %2221 = vmatprep.subr.mxu0 0.0
        %2222 = vmatpush1.msra.mxu0 %v652
        %2223 = vmatprep.subr.mxu0 0.0
        %2224 = vmatpush1.msra.mxu0 %v651
        %2225 = vmatprep.subr.mxu0 0.0
        %2226 = vmatpush1.msra.mxu0 %v650
        %2227 = vmatprep.subr.mxu0 0.0
        %2228 = vmatpush1.msra.mxu0 %v649
        %2229 = vmatprep.subr.mxu0 0.0
        %2230 = vmatpush1.msra.mxu0 %v648
        %2231 = vmatprep.subr.mxu0 0.0
        %2232 = vmatpush2.msra.mxu0 %v679
        %2233 = vmatprep.subr.mxu0 0.0
        %2234 = vmatpush2.msra.mxu0 %v678
        %2235 = vmatprep.subr.mxu0 0.0
        %2236 = vmatpush2.msra.mxu0 %v677
        %2237 = vmatprep.subr.mxu0 0.0
        %2238 = vmatpush2.msra.mxu0 %v676
        %2239 = vmatprep.subr.mxu0 0.0
        %2240 = vmatpush2.msra.mxu0 %v675
        %2241 = vmatprep.subr.mxu0 0.0
        %2242 = vmatpush2.msra.mxu0 %v674
        %2243 = vmatprep.subr.mxu0 0.0
        %2244 = vmatpush2.msra.mxu0 %v673
        %2245 = vmatprep.subr.mxu0 0.0
        %2246 = vmatpush2.msra.mxu0 %v672
        %2247 = vmatprep.subr.mxu0 0.0
        %2248 = vmatpush2.msra.mxu0 %v671
        %2249 = vmatprep.subr.mxu0 0.0
        %2250 = vmatpush2.msra.mxu0 %v670
        %2251 = vmatprep.subr.mxu0 0.0
        %2252 = vmatpush2.msra.mxu0 %v669
        %2253 = vmatprep.subr.mxu0 0.0
        %2254 = vmatpush2.msra.mxu0 %v668
        %2255 = vmatprep.subr.mxu0 0.0
        %2256 = vmatpush2.msra.mxu0 %v667
        %2257 = vmatprep.subr.mxu0 0.0
        %2258 = vmatpush2.msra.mxu0 %v666
        %2259 = vmatprep.subr.mxu0 0.0
        %2260 = vmatpush2.msra.mxu0 %v665
        %2261 = vmatprep.subr.mxu0 0.0
        %2262 = vmatpush2.msra.mxu0 %v664
        %2263 = vmatprep.mubr.f32.mxu0 %v1147
        %2264 = vmatmul.mubr.f32.gmra.mxu0 %v1145
        %v2265 = vpop.f32.mrf.mxu0
        %v2266 = vadd.f32 %v2196, %v2265
        %v2267 = vpop.f32.mrf.mxu0
        %2268 = vdwg.mxu0
        %2269 = vmatprep.subr.mxu0 0.0
        %2270 = vmatpush1.msra.mxu0 %v695
        %2271 = vmatprep.subr.mxu0 0.0
        %2272 = vmatpush1.msra.mxu0 %v694
        %2273 = vmatprep.subr.mxu0 0.0
        %2274 = vmatpush1.msra.mxu0 %v693
        %2275 = vmatprep.subr.mxu0 0.0
        %2276 = vmatpush1.msra.mxu0 %v692
        %2277 = vmatprep.subr.mxu0 0.0
        %2278 = vmatpush1.msra.mxu0 %v691
        %2279 = vmatprep.subr.mxu0 0.0
        %2280 = vmatpush1.msra.mxu0 %v690
        %2281 = vmatprep.subr.mxu0 0.0
        %2282 = vmatpush1.msra.mxu0 %v689
        %2283 = vmatprep.subr.mxu0 0.0
        %2284 = vmatpush1.msra.mxu0 %v688
        %2285 = vmatprep.subr.mxu0 0.0
        %2286 = vmatpush1.msra.mxu0 %v687
        %2287 = vmatprep.subr.mxu0 0.0
        %2288 = vmatpush1.msra.mxu0 %v686
        %2289 = vmatprep.subr.mxu0 0.0
        %2290 = vmatpush1.msra.mxu0 %v685
        %2291 = vmatprep.subr.mxu0 0.0
        %2292 = vmatpush1.msra.mxu0 %v684
        %2293 = vmatprep.subr.mxu0 0.0
        %2294 = vmatpush1.msra.mxu0 %v683
        %2295 = vmatprep.subr.mxu0 0.0
        %2296 = vmatpush1.msra.mxu0 %v682
        %2297 = vmatprep.subr.mxu0 0.0
        %2298 = vmatpush1.msra.mxu0 %v681
        %2299 = vmatprep.subr.mxu0 0.0
        %2300 = vmatpush1.msra.mxu0 %v680
        %2301 = vmatprep.subr.mxu0 0.0
        %2302 = vmatpush2.msra.mxu0 %v711
        %2303 = vmatprep.subr.mxu0 0.0
        %2304 = vmatpush2.msra.mxu0 %v710
        %2305 = vmatprep.subr.mxu0 0.0
        %2306 = vmatpush2.msra.mxu0 %v709
        %2307 = vmatprep.subr.mxu0 0.0
        %2308 = vmatpush2.msra.mxu0 %v708
        %2309 = vmatprep.subr.mxu0 0.0
        %2310 = vmatpush2.msra.mxu0 %v707
        %2311 = vmatprep.subr.mxu0 0.0
        %2312 = vmatpush2.msra.mxu0 %v706
        %2313 = vmatprep.subr.mxu0 0.0
        %2314 = vmatpush2.msra.mxu0 %v705
        %2315 = vmatprep.subr.mxu0 0.0
        %2316 = vmatpush2.msra.mxu0 %v704
        %2317 = vmatprep.subr.mxu0 0.0
        %2318 = vmatpush2.msra.mxu0 %v703
        %2319 = vmatprep.subr.mxu0 0.0
        %2320 = vmatpush2.msra.mxu0 %v702
        %2321 = vmatprep.subr.mxu0 0.0
        %2322 = vmatpush2.msra.mxu0 %v701
        %2323 = vmatprep.subr.mxu0 0.0
        %2324 = vmatpush2.msra.mxu0 %v700
        %2325 = vmatprep.subr.mxu0 0.0
        %2326 = vmatpush2.msra.mxu0 %v699
        %2327 = vmatprep.subr.mxu0 0.0
        %2328 = vmatpush2.msra.mxu0 %v698
        %2329 = vmatprep.subr.mxu0 0.0
        %2330 = vmatpush2.msra.mxu0 %v697
        %2331 = vmatprep.subr.mxu0 0.0
        %2332 = vmatpush2.msra.mxu0 %v696
        %2333 = vmatprep.mubr.f32.mxu0 %v1163
        %2334 = vmatmul.mubr.f32.gmra.mxu0 %v1155
        %v2335 = vpop.f32.mrf.mxu0
        %v2336 = vadd.f32 %v2266, %v2335
        %v2337 = vpop.f32.mrf.mxu0
        %2338 = vdwg.mxu0
        %2339 = vmatprep.subr.mxu0 0.0
        %2340 = vmatpush1.msra.mxu0 %v727
        %2341 = vmatprep.subr.mxu0 0.0
        %2342 = vmatpush1.msra.mxu0 %v726
        %2343 = vmatprep.subr.mxu0 0.0
        %2344 = vmatpush1.msra.mxu0 %v725
        %2345 = vmatprep.subr.mxu0 0.0
        %2346 = vmatpush1.msra.mxu0 %v724
        %2347 = vmatprep.subr.mxu0 0.0
        %2348 = vmatpush1.msra.mxu0 %v723
        %2349 = vmatprep.subr.mxu0 0.0
        %2350 = vmatpush1.msra.mxu0 %v722
        %2351 = vmatprep.subr.mxu0 0.0
        %2352 = vmatpush1.msra.mxu0 %v721
        %2353 = vmatprep.subr.mxu0 0.0
        %2354 = vmatpush1.msra.mxu0 %v720
        %2355 = vmatprep.subr.mxu0 0.0
        %2356 = vmatpush1.msra.mxu0 %v719
        %2357 = vmatprep.subr.mxu0 0.0
        %2358 = vmatpush1.msra.mxu0 %v718
        %2359 = vmatprep.subr.mxu0 0.0
        %2360 = vmatpush1.msra.mxu0 %v717
        %2361 = vmatprep.subr.mxu0 0.0
        %2362 = vmatpush1.msra.mxu0 %v716
        %2363 = vmatprep.subr.mxu0 0.0
        %2364 = vmatpush1.msra.mxu0 %v715
        %2365 = vmatprep.subr.mxu0 0.0
        %2366 = vmatpush1.msra.mxu0 %v714
        %2367 = vmatprep.subr.mxu0 0.0
        %2368 = vmatpush1.msra.mxu0 %v713
        %2369 = vmatprep.subr.mxu0 0.0
        %2370 = vmatpush1.msra.mxu0 %v712
        %2371 = vmatprep.subr.mxu0 0.0
        %2372 = vmatpush2.msra.mxu0 %v743
        %2373 = vmatprep.subr.mxu0 0.0
        %2374 = vmatpush2.msra.mxu0 %v742
        %2375 = vmatprep.subr.mxu0 0.0
        %2376 = vmatpush2.msra.mxu0 %v741
        %2377 = vmatprep.subr.mxu0 0.0
        %2378 = vmatpush2.msra.mxu0 %v740
        %2379 = vmatprep.subr.mxu0 0.0
        %2380 = vmatpush2.msra.mxu0 %v739
        %2381 = vmatprep.subr.mxu0 0.0
        %2382 = vmatpush2.msra.mxu0 %v738
        %2383 = vmatprep.subr.mxu0 0.0
        %2384 = vmatpush2.msra.mxu0 %v737
        %2385 = vmatprep.subr.mxu0 0.0
        %2386 = vmatpush2.msra.mxu0 %v736
        %2387 = vmatprep.subr.mxu0 0.0
        %2388 = vmatpush2.msra.mxu0 %v735
        %2389 = vmatprep.subr.mxu0 0.0
        %2390 = vmatpush2.msra.mxu0 %v734
        %2391 = vmatprep.subr.mxu0 0.0
        %2392 = vmatpush2.msra.mxu0 %v733
        %2393 = vmatprep.subr.mxu0 0.0
        %2394 = vmatpush2.msra.mxu0 %v732
        %2395 = vmatprep.subr.mxu0 0.0
        %2396 = vmatpush2.msra.mxu0 %v731
        %2397 = vmatprep.subr.mxu0 0.0
        %2398 = vmatpush2.msra.mxu0 %v730
        %2399 = vmatprep.subr.mxu0 0.0
        %2400 = vmatpush2.msra.mxu0 %v729
        %2401 = vmatprep.subr.mxu0 0.0
        %2402 = vmatpush2.msra.mxu0 %v728
        %2403 = vmatprep.mubr.f32.mxu0 %v1164
        %2404 = vmatmul.mubr.f32.gmra.mxu0 %v1162
        %v2405 = vpop.f32.mrf.mxu0
        %v2406 = vadd.f32 %v2336, %v2405
        %v2407 = vpop.f32.mrf.mxu0
        %2408 = vdwg.mxu0
        %2409 = vmatprep.subr.mxu0 0.0
        %2410 = vmatpush1.msra.mxu0 %v759
        %2411 = vmatprep.subr.mxu0 0.0
        %2412 = vmatpush1.msra.mxu0 %v758
        %2413 = vmatprep.subr.mxu0 0.0
        %2414 = vmatpush1.msra.mxu0 %v757
        %2415 = vmatprep.subr.mxu0 0.0
        %2416 = vmatpush1.msra.mxu0 %v756
        %2417 = vmatprep.subr.mxu0 0.0
        %2418 = vmatpush1.msra.mxu0 %v755
        %2419 = vmatprep.subr.mxu0 0.0
        %2420 = vmatpush1.msra.mxu0 %v754
        %2421 = vmatprep.subr.mxu0 0.0
        %2422 = vmatpush1.msra.mxu0 %v753
        %2423 = vmatprep.subr.mxu0 0.0
        %2424 = vmatpush1.msra.mxu0 %v752
        %2425 = vmatprep.subr.mxu0 0.0
        %2426 = vmatpush1.msra.mxu0 %v751
        %2427 = vmatprep.subr.mxu0 0.0
        %2428 = vmatpush1.msra.mxu0 %v750
        %2429 = vmatprep.subr.mxu0 0.0
        %2430 = vmatpush1.msra.mxu0 %v749
        %2431 = vmatprep.subr.mxu0 0.0
        %2432 = vmatpush1.msra.mxu0 %v748
        %2433 = vmatprep.subr.mxu0 0.0
        %2434 = vmatpush1.msra.mxu0 %v747
        %2435 = vmatprep.subr.mxu0 0.0
        %2436 = vmatpush1.msra.mxu0 %v746
        %2437 = vmatprep.subr.mxu0 0.0
        %2438 = vmatpush1.msra.mxu0 %v745
        %2439 = vmatprep.subr.mxu0 0.0
        %2440 = vmatpush1.msra.mxu0 %v744
        %2441 = vmatprep.subr.mxu0 0.0
        %2442 = vmatpush2.msra.mxu0 %v775
        %2443 = vmatprep.subr.mxu0 0.0
        %2444 = vmatpush2.msra.mxu0 %v774
        %2445 = vmatprep.subr.mxu0 0.0
        %2446 = vmatpush2.msra.mxu0 %v773
        %2447 = vmatprep.subr.mxu0 0.0
        %2448 = vmatpush2.msra.mxu0 %v772
        %2449 = vmatprep.subr.mxu0 0.0
        %2450 = vmatpush2.msra.mxu0 %v771
        %2451 = vmatprep.subr.mxu0 0.0
        %2452 = vmatpush2.msra.mxu0 %v770
        %2453 = vmatprep.subr.mxu0 0.0
        %2454 = vmatpush2.msra.mxu0 %v769
        %2455 = vmatprep.subr.mxu0 0.0
        %2456 = vmatpush2.msra.mxu0 %v768
        %2457 = vmatprep.subr.mxu0 0.0
        %2458 = vmatpush2.msra.mxu0 %v767
        %2459 = vmatprep.subr.mxu0 0.0
        %2460 = vmatpush2.msra.mxu0 %v766
        %2461 = vmatprep.subr.mxu0 0.0
        %2462 = vmatpush2.msra.mxu0 %v765
        %2463 = vmatprep.subr.mxu0 0.0
        %2464 = vmatpush2.msra.mxu0 %v764
        %2465 = vmatprep.subr.mxu0 0.0
        %2466 = vmatpush2.msra.mxu0 %v763
        %2467 = vmatprep.subr.mxu0 0.0
        %2468 = vmatpush2.msra.mxu0 %v762
        %2469 = vmatprep.subr.mxu0 0.0
        %2470 = vmatpush2.msra.mxu0 %v761
        %2471 = vmatprep.subr.mxu0 0.0
        %2472 = vmatpush2.msra.mxu0 %v760
        %2473 = vmatprep.mubr.f32.mxu0 %v1180
        %2474 = vmatmul.mubr.f32.gmra.mxu0 %v1172
        %v2475 = vpop.f32.mrf.mxu0
        %v2476 = vadd.f32 %v2406, %v2475
        %v2477 = vpop.f32.mrf.mxu0
        %2478 = vdwg.mxu0
        %2479 = vmatprep.subr.mxu0 0.0
        %2480 = vmatpush1.msra.mxu0 %v791
        %2481 = vmatprep.subr.mxu0 0.0
        %2482 = vmatpush1.msra.mxu0 %v790
        %2483 = vmatprep.subr.mxu0 0.0
        %2484 = vmatpush1.msra.mxu0 %v789
        %2485 = vmatprep.subr.mxu0 0.0
        %2486 = vmatpush1.msra.mxu0 %v788
        %2487 = vmatprep.subr.mxu0 0.0
        %2488 = vmatpush1.msra.mxu0 %v787
        %2489 = vmatprep.subr.mxu0 0.0
        %2490 = vmatpush1.msra.mxu0 %v786
        %2491 = vmatprep.subr.mxu0 0.0
        %2492 = vmatpush1.msra.mxu0 %v785
        %2493 = vmatprep.subr.mxu0 0.0
        %2494 = vmatpush1.msra.mxu0 %v784
        %2495 = vmatprep.subr.mxu0 0.0
        %2496 = vmatpush1.msra.mxu0 %v783
        %2497 = vmatprep.subr.mxu0 0.0
        %2498 = vmatpush1.msra.mxu0 %v782
        %2499 = vmatprep.subr.mxu0 0.0
        %2500 = vmatpush1.msra.mxu0 %v781
        %2501 = vmatprep.subr.mxu0 0.0
        %2502 = vmatpush1.msra.mxu0 %v780
        %2503 = vmatprep.subr.mxu0 0.0
        %2504 = vmatpush1.msra.mxu0 %v779
        %2505 = vmatprep.subr.mxu0 0.0
        %2506 = vmatpush1.msra.mxu0 %v778
        %2507 = vmatprep.subr.mxu0 0.0
        %2508 = vmatpush1.msra.mxu0 %v777
        %2509 = vmatprep.subr.mxu0 0.0
        %2510 = vmatpush1.msra.mxu0 %v776
        %2511 = vmatprep.subr.mxu0 0.0
        %2512 = vmatpush2.msra.mxu0 %v807
        %2513 = vmatprep.subr.mxu0 0.0
        %2514 = vmatpush2.msra.mxu0 %v806
        %2515 = vmatprep.subr.mxu0 0.0
        %2516 = vmatpush2.msra.mxu0 %v805
        %2517 = vmatprep.subr.mxu0 0.0
        %2518 = vmatpush2.msra.mxu0 %v804
        %2519 = vmatprep.subr.mxu0 0.0
        %2520 = vmatpush2.msra.mxu0 %v803
        %2521 = vmatprep.subr.mxu0 0.0
        %2522 = vmatpush2.msra.mxu0 %v802
        %2523 = vmatprep.subr.mxu0 0.0
        %2524 = vmatpush2.msra.mxu0 %v801
        %2525 = vmatprep.subr.mxu0 0.0
        %2526 = vmatpush2.msra.mxu0 %v800
        %2527 = vmatprep.subr.mxu0 0.0
        %2528 = vmatpush2.msra.mxu0 %v799
        %2529 = vmatprep.subr.mxu0 0.0
        %2530 = vmatpush2.msra.mxu0 %v798
        %2531 = vmatprep.subr.mxu0 0.0
        %2532 = vmatpush2.msra.mxu0 %v797
        %2533 = vmatprep.subr.mxu0 0.0
        %2534 = vmatpush2.msra.mxu0 %v796
        %2535 = vmatprep.subr.mxu0 0.0
        %2536 = vmatpush2.msra.mxu0 %v795
        %2537 = vmatprep.subr.mxu0 0.0
        %2538 = vmatpush2.msra.mxu0 %v794
        %2539 = vmatprep.subr.mxu0 0.0
        %2540 = vmatpush2.msra.mxu0 %v793
        %2541 = vmatprep.subr.mxu0 0.0
        %2542 = vmatpush2.msra.mxu0 %v792
        %2543 = vmatprep.mubr.f32.mxu0 %v1181
        %2544 = vmatmul.mubr.f32.gmra.mxu0 %v1179
        %v2545 = vpop.f32.mrf.mxu0
        %v2546 = vadd.f32 %v2476, %v2545
        %v2547 = vpop.f32.mrf.mxu0
        %2548 = vdwg.mxu0
        %2549 = vmatprep.subr.mxu0 0.0
        %2550 = vmatpush1.msra.mxu0 %v823
        %2551 = vmatprep.subr.mxu0 0.0
        %2552 = vmatpush1.msra.mxu0 %v822
        %2553 = vmatprep.subr.mxu0 0.0
        %2554 = vmatpush1.msra.mxu0 %v821
        %2555 = vmatprep.subr.mxu0 0.0
        %2556 = vmatpush1.msra.mxu0 %v820
        %2557 = vmatprep.subr.mxu0 0.0
        %2558 = vmatpush1.msra.mxu0 %v819
        %2559 = vmatprep.subr.mxu0 0.0
        %2560 = vmatpush1.msra.mxu0 %v818
        %2561 = vmatprep.subr.mxu0 0.0
        %2562 = vmatpush1.msra.mxu0 %v817
        %2563 = vmatprep.subr.mxu0 0.0
        %2564 = vmatpush1.msra.mxu0 %v816
        %2565 = vmatprep.subr.mxu0 0.0
        %2566 = vmatpush1.msra.mxu0 %v815
        %2567 = vmatprep.subr.mxu0 0.0
        %2568 = vmatpush1.msra.mxu0 %v814
        %2569 = vmatprep.subr.mxu0 0.0
        %2570 = vmatpush1.msra.mxu0 %v813
        %2571 = vmatprep.subr.mxu0 0.0
        %2572 = vmatpush1.msra.mxu0 %v812
        %2573 = vmatprep.subr.mxu0 0.0
        %2574 = vmatpush1.msra.mxu0 %v811
        %2575 = vmatprep.subr.mxu0 0.0
        %2576 = vmatpush1.msra.mxu0 %v810
        %2577 = vmatprep.subr.mxu0 0.0
        %2578 = vmatpush1.msra.mxu0 %v809
        %2579 = vmatprep.subr.mxu0 0.0
        %2580 = vmatpush1.msra.mxu0 %v808
        %2581 = vmatprep.subr.mxu0 0.0
        %2582 = vmatpush2.msra.mxu0 %v839
        %2583 = vmatprep.subr.mxu0 0.0
        %2584 = vmatpush2.msra.mxu0 %v838
        %2585 = vmatprep.subr.mxu0 0.0
        %2586 = vmatpush2.msra.mxu0 %v837
        %2587 = vmatprep.subr.mxu0 0.0
        %2588 = vmatpush2.msra.mxu0 %v836
        %2589 = vmatprep.subr.mxu0 0.0
        %2590 = vmatpush2.msra.mxu0 %v835
        %2591 = vmatprep.subr.mxu0 0.0
        %2592 = vmatpush2.msra.mxu0 %v834
        %2593 = vmatprep.subr.mxu0 0.0
        %2594 = vmatpush2.msra.mxu0 %v833
        %2595 = vmatprep.subr.mxu0 0.0
        %2596 = vmatpush2.msra.mxu0 %v832
        %2597 = vmatprep.subr.mxu0 0.0
        %2598 = vmatpush2.msra.mxu0 %v831
        %2599 = vmatprep.subr.mxu0 0.0
        %2600 = vmatpush2.msra.mxu0 %v830
        %2601 = vmatprep.subr.mxu0 0.0
        %2602 = vmatpush2.msra.mxu0 %v829
        %2603 = vmatprep.subr.mxu0 0.0
        %2604 = vmatpush2.msra.mxu0 %v828
        %2605 = vmatprep.subr.mxu0 0.0
        %2606 = vmatpush2.msra.mxu0 %v827
        %2607 = vmatprep.subr.mxu0 0.0
        %2608 = vmatpush2.msra.mxu0 %v826
        %2609 = vmatprep.subr.mxu0 0.0
        %2610 = vmatpush2.msra.mxu0 %v825
        %2611 = vmatprep.subr.mxu0 0.0
        %2612 = vmatpush2.msra.mxu0 %v824
        %2613 = vmatprep.mubr.f32.mxu0 %v1197
        %2614 = vmatmul.mubr.f32.gmra.mxu0 %v1189
        %v2615 = vpop.f32.mrf.mxu0
        %v2616 = vadd.f32 %v2546, %v2615
        %v2617 = vpop.f32.mrf.mxu0
        %2618 = vdwg.mxu0
        %2619 = vmatprep.subr.mxu0 0.0
        %2620 = vmatpush1.msra.mxu0 %v855
        %2621 = vmatprep.subr.mxu0 0.0
        %2622 = vmatpush1.msra.mxu0 %v854
        %2623 = vmatprep.subr.mxu0 0.0
        %2624 = vmatpush1.msra.mxu0 %v853
        %2625 = vmatprep.subr.mxu0 0.0
        %2626 = vmatpush1.msra.mxu0 %v852
        %2627 = vmatprep.subr.mxu0 0.0
        %2628 = vmatpush1.msra.mxu0 %v851
        %2629 = vmatprep.subr.mxu0 0.0
        %2630 = vmatpush1.msra.mxu0 %v850
        %2631 = vmatprep.subr.mxu0 0.0
        %2632 = vmatpush1.msra.mxu0 %v849
        %2633 = vmatprep.subr.mxu0 0.0
        %2634 = vmatpush1.msra.mxu0 %v848
        %2635 = vmatprep.subr.mxu0 0.0
        %2636 = vmatpush1.msra.mxu0 %v847
        %2637 = vmatprep.subr.mxu0 0.0
        %2638 = vmatpush1.msra.mxu0 %v846
        %2639 = vmatprep.subr.mxu0 0.0
        %2640 = vmatpush1.msra.mxu0 %v845
        %2641 = vmatprep.subr.mxu0 0.0
        %2642 = vmatpush1.msra.mxu0 %v844
        %2643 = vmatprep.subr.mxu0 0.0
        %2644 = vmatpush1.msra.mxu0 %v843
        %2645 = vmatprep.subr.mxu0 0.0
        %2646 = vmatpush1.msra.mxu0 %v842
        %2647 = vmatprep.subr.mxu0 0.0
        %2648 = vmatpush1.msra.mxu0 %v841
        %2649 = vmatprep.subr.mxu0 0.0
        %2650 = vmatpush1.msra.mxu0 %v840
        %2651 = vmatprep.subr.mxu0 0.0
        %2652 = vmatpush2.msra.mxu0 %v871
        %2653 = vmatprep.subr.mxu0 0.0
        %2654 = vmatpush2.msra.mxu0 %v870
        %2655 = vmatprep.subr.mxu0 0.0
        %2656 = vmatpush2.msra.mxu0 %v869
        %2657 = vmatprep.subr.mxu0 0.0
        %2658 = vmatpush2.msra.mxu0 %v868
        %2659 = vmatprep.subr.mxu0 0.0
        %2660 = vmatpush2.msra.mxu0 %v867
        %2661 = vmatprep.subr.mxu0 0.0
        %2662 = vmatpush2.msra.mxu0 %v866
        %2663 = vmatprep.subr.mxu0 0.0
        %2664 = vmatpush2.msra.mxu0 %v865
        %2665 = vmatprep.subr.mxu0 0.0
        %2666 = vmatpush2.msra.mxu0 %v864
        %2667 = vmatprep.subr.mxu0 0.0
        %2668 = vmatpush2.msra.mxu0 %v863
        %2669 = vmatprep.subr.mxu0 0.0
        %2670 = vmatpush2.msra.mxu0 %v862
        %2671 = vmatprep.subr.mxu0 0.0
        %2672 = vmatpush2.msra.mxu0 %v861
        %2673 = vmatprep.subr.mxu0 0.0
        %2674 = vmatpush2.msra.mxu0 %v860
        %2675 = vmatprep.subr.mxu0 0.0
        %2676 = vmatpush2.msra.mxu0 %v859
        %2677 = vmatprep.subr.mxu0 0.0
        %2678 = vmatpush2.msra.mxu0 %v858
        %2679 = vmatprep.subr.mxu0 0.0
        %2680 = vmatpush2.msra.mxu0 %v857
        %2681 = vmatprep.subr.mxu0 0.0
        %2682 = vmatpush2.msra.mxu0 %v856
        %2683 = vmatprep.mubr.f32.mxu0 %v1198
        %2684 = vmatmul.mubr.f32.gmra.mxu0 %v1196
        %v2685 = vpop.f32.mrf.mxu0
        %v2686 = vadd.f32 %v2616, %v2685
        %v2687 = vpop.f32.mrf.mxu0
        %2688 = vdwg.mxu0
        %2689 = vmatprep.subr.mxu0 0.0
        %2690 = vmatpush1.msra.mxu0 %v887
        %2691 = vmatprep.subr.mxu0 0.0
        %2692 = vmatpush1.msra.mxu0 %v886
        %2693 = vmatprep.subr.mxu0 0.0
        %2694 = vmatpush1.msra.mxu0 %v885
        %2695 = vmatprep.subr.mxu0 0.0
        %2696 = vmatpush1.msra.mxu0 %v884
        %2697 = vmatprep.subr.mxu0 0.0
        %2698 = vmatpush1.msra.mxu0 %v883
        %2699 = vmatprep.subr.mxu0 0.0
        %2700 = vmatpush1.msra.mxu0 %v882
        %2701 = vmatprep.subr.mxu0 0.0
        %2702 = vmatpush1.msra.mxu0 %v881
        %2703 = vmatprep.subr.mxu0 0.0
        %2704 = vmatpush1.msra.mxu0 %v880
        %2705 = vmatprep.subr.mxu0 0.0
        %2706 = vmatpush1.msra.mxu0 %v879
        %2707 = vmatprep.subr.mxu0 0.0
        %2708 = vmatpush1.msra.mxu0 %v878
        %2709 = vmatprep.subr.mxu0 0.0
        %2710 = vmatpush1.msra.mxu0 %v877
        %2711 = vmatprep.subr.mxu0 0.0
        %2712 = vmatpush1.msra.mxu0 %v876
        %2713 = vmatprep.subr.mxu0 0.0
        %2714 = vmatpush1.msra.mxu0 %v875
        %2715 = vmatprep.subr.mxu0 0.0
        %2716 = vmatpush1.msra.mxu0 %v874
        %2717 = vmatprep.subr.mxu0 0.0
        %2718 = vmatpush1.msra.mxu0 %v873
        %2719 = vmatprep.subr.mxu0 0.0
        %2720 = vmatpush1.msra.mxu0 %v872
        %2721 = vmatprep.subr.mxu0 0.0
        %2722 = vmatpush2.msra.mxu0 %v903
        %2723 = vmatprep.subr.mxu0 0.0
        %2724 = vmatpush2.msra.mxu0 %v902
        %2725 = vmatprep.subr.mxu0 0.0
        %2726 = vmatpush2.msra.mxu0 %v901
        %2727 = vmatprep.subr.mxu0 0.0
        %2728 = vmatpush2.msra.mxu0 %v900
        %2729 = vmatprep.subr.mxu0 0.0
        %2730 = vmatpush2.msra.mxu0 %v899
        %2731 = vmatprep.subr.mxu0 0.0
        %2732 = vmatpush2.msra.mxu0 %v898
        %2733 = vmatprep.subr.mxu0 0.0
        %2734 = vmatpush2.msra.mxu0 %v897
        %2735 = vmatprep.subr.mxu0 0.0
        %2736 = vmatpush2.msra.mxu0 %v896
        %2737 = vmatprep.subr.mxu0 0.0
        %2738 = vmatpush2.msra.mxu0 %v895
        %2739 = vmatprep.subr.mxu0 0.0
        %2740 = vmatpush2.msra.mxu0 %v894
        %2741 = vmatprep.subr.mxu0 0.0
        %2742 = vmatpush2.msra.mxu0 %v893
        %2743 = vmatprep.subr.mxu0 0.0
        %2744 = vmatpush2.msra.mxu0 %v892
        %2745 = vmatprep.subr.mxu0 0.0
        %2746 = vmatpush2.msra.mxu0 %v891
        %2747 = vmatprep.subr.mxu0 0.0
        %2748 = vmatpush2.msra.mxu0 %v890
        %2749 = vmatprep.subr.mxu0 0.0
        %2750 = vmatpush2.msra.mxu0 %v889
        %2751 = vmatprep.subr.mxu0 0.0
        %2752 = vmatpush2.msra.mxu0 %v888
        %2753 = vmatprep.mubr.f32.mxu0 %v1214
        %2754 = vmatmul.mubr.f32.gmra.mxu0 %v1206
        %v2755 = vpop.f32.mrf.mxu0
        %v2756 = vadd.f32 %v2686, %v2755
        %v2757 = vpop.f32.mrf.mxu0
        %2758 = vdwg.mxu0
        %2759 = vmatprep.subr.mxu0 0.0
        %2760 = vmatpush1.msra.mxu0 %v919
        %2761 = vmatprep.subr.mxu0 0.0
        %2762 = vmatpush1.msra.mxu0 %v918
        %2763 = vmatprep.subr.mxu0 0.0
        %2764 = vmatpush1.msra.mxu0 %v917
        %2765 = vmatprep.subr.mxu0 0.0
        %2766 = vmatpush1.msra.mxu0 %v916
        %2767 = vmatprep.subr.mxu0 0.0
        %2768 = vmatpush1.msra.mxu0 %v915
        %2769 = vmatprep.subr.mxu0 0.0
        %2770 = vmatpush1.msra.mxu0 %v914
        %2771 = vmatprep.subr.mxu0 0.0
        %2772 = vmatpush1.msra.mxu0 %v913
        %2773 = vmatprep.subr.mxu0 0.0
        %2774 = vmatpush1.msra.mxu0 %v912
        %2775 = vmatprep.subr.mxu0 0.0
        %2776 = vmatpush1.msra.mxu0 %v911
        %2777 = vmatprep.subr.mxu0 0.0
        %2778 = vmatpush1.msra.mxu0 %v910
        %2779 = vmatprep.subr.mxu0 0.0
        %2780 = vmatpush1.msra.mxu0 %v909
        %2781 = vmatprep.subr.mxu0 0.0
        %2782 = vmatpush1.msra.mxu0 %v908
        %2783 = vmatprep.subr.mxu0 0.0
        %2784 = vmatpush1.msra.mxu0 %v907
        %2785 = vmatprep.subr.mxu0 0.0
        %2786 = vmatpush1.msra.mxu0 %v906
        %2787 = vmatprep.subr.mxu0 0.0
        %2788 = vmatpush1.msra.mxu0 %v905
        %2789 = vmatprep.subr.mxu0 0.0
        %2790 = vmatpush1.msra.mxu0 %v904
        %2791 = vmatprep.subr.mxu0 0.0
        %2792 = vmatpush2.msra.mxu0 %v935
        %2793 = vmatprep.subr.mxu0 0.0
        %2794 = vmatpush2.msra.mxu0 %v934
        %2795 = vmatprep.subr.mxu0 0.0
        %2796 = vmatpush2.msra.mxu0 %v933
        %2797 = vmatprep.subr.mxu0 0.0
        %2798 = vmatpush2.msra.mxu0 %v932
        %2799 = vmatprep.subr.mxu0 0.0
        %2800 = vmatpush2.msra.mxu0 %v931
        %2801 = vmatprep.subr.mxu0 0.0
        %2802 = vmatpush2.msra.mxu0 %v930
        %2803 = vmatprep.subr.mxu0 0.0
        %2804 = vmatpush2.msra.mxu0 %v929
        %2805 = vmatprep.subr.mxu0 0.0
        %2806 = vmatpush2.msra.mxu0 %v928
        %2807 = vmatprep.subr.mxu0 0.0
        %2808 = vmatpush2.msra.mxu0 %v927
        %2809 = vmatprep.subr.mxu0 0.0
        %2810 = vmatpush2.msra.mxu0 %v926
        %2811 = vmatprep.subr.mxu0 0.0
        %2812 = vmatpush2.msra.mxu0 %v925
        %2813 = vmatprep.subr.mxu0 0.0
        %2814 = vmatpush2.msra.mxu0 %v924
        %2815 = vmatprep.subr.mxu0 0.0
        %2816 = vmatpush2.msra.mxu0 %v923
        %2817 = vmatprep.subr.mxu0 0.0
        %2818 = vmatpush2.msra.mxu0 %v922
        %2819 = vmatprep.subr.mxu0 0.0
        %2820 = vmatpush2.msra.mxu0 %v921
        %2821 = vmatprep.subr.mxu0 0.0
        %2822 = vmatpush2.msra.mxu0 %v920
        %2823 = vmatprep.mubr.f32.mxu0 %v1215
        %2824 = vmatmul.mubr.f32.gmra.mxu0 %v1213
        %v2825 = vpop.f32.mrf.mxu0
        %v2826 = vadd.f32 %v2756, %v2825
        %v2827 = vpop.f32.mrf.mxu0
        %2828 = vdwg.mxu0
        %2829 = vmatprep.subr.mxu0 0.0
        %2830 = vmatpush1.msra.mxu0 %v951
        %2831 = vmatprep.subr.mxu0 0.0
        %2832 = vmatpush1.msra.mxu0 %v950
        %2833 = vmatprep.subr.mxu0 0.0
        %2834 = vmatpush1.msra.mxu0 %v949
        %2835 = vmatprep.subr.mxu0 0.0
        %2836 = vmatpush1.msra.mxu0 %v948
        %2837 = vmatprep.subr.mxu0 0.0
        %2838 = vmatpush1.msra.mxu0 %v947
        %2839 = vmatprep.subr.mxu0 0.0
        %2840 = vmatpush1.msra.mxu0 %v946
        %2841 = vmatprep.subr.mxu0 0.0
        %2842 = vmatpush1.msra.mxu0 %v945
        %2843 = vmatprep.subr.mxu0 0.0
        %2844 = vmatpush1.msra.mxu0 %v944
        %2845 = vmatprep.subr.mxu0 0.0
        %2846 = vmatpush1.msra.mxu0 %v943
        %2847 = vmatprep.subr.mxu0 0.0
        %2848 = vmatpush1.msra.mxu0 %v942
        %2849 = vmatprep.subr.mxu0 0.0
        %2850 = vmatpush1.msra.mxu0 %v941
        %2851 = vmatprep.subr.mxu0 0.0
        %2852 = vmatpush1.msra.mxu0 %v940
        %2853 = vmatprep.subr.mxu0 0.0
        %2854 = vmatpush1.msra.mxu0 %v939
        %2855 = vmatprep.subr.mxu0 0.0
        %2856 = vmatpush1.msra.mxu0 %v938
        %2857 = vmatprep.subr.mxu0 0.0
        %2858 = vmatpush1.msra.mxu0 %v937
        %2859 = vmatprep.subr.mxu0 0.0
        %2860 = vmatpush1.msra.mxu0 %v936
        %2861 = vmatprep.subr.mxu0 0.0
        %2862 = vmatpush2.msra.mxu0 %v967
        %2863 = vmatprep.subr.mxu0 0.0
        %2864 = vmatpush2.msra.mxu0 %v966
        %2865 = vmatprep.subr.mxu0 0.0
        %2866 = vmatpush2.msra.mxu0 %v965
        %2867 = vmatprep.subr.mxu0 0.0
        %2868 = vmatpush2.msra.mxu0 %v964
        %2869 = vmatprep.subr.mxu0 0.0
        %2870 = vmatpush2.msra.mxu0 %v963
        %2871 = vmatprep.subr.mxu0 0.0
        %2872 = vmatpush2.msra.mxu0 %v962
        %2873 = vmatprep.subr.mxu0 0.0
        %2874 = vmatpush2.msra.mxu0 %v961
        %2875 = vmatprep.subr.mxu0 0.0
        %2876 = vmatpush2.msra.mxu0 %v960
        %2877 = vmatprep.subr.mxu0 0.0
        %2878 = vmatpush2.msra.mxu0 %v959
        %2879 = vmatprep.subr.mxu0 0.0
        %2880 = vmatpush2.msra.mxu0 %v958
        %2881 = vmatprep.subr.mxu0 0.0
        %2882 = vmatpush2.msra.mxu0 %v957
        %2883 = vmatprep.subr.mxu0 0.0
        %2884 = vmatpush2.msra.mxu0 %v956
        %2885 = vmatprep.subr.mxu0 0.0
        %2886 = vmatpush2.msra.mxu0 %v955
        %2887 = vmatprep.subr.mxu0 0.0
        %2888 = vmatpush2.msra.mxu0 %v954
        %2889 = vmatprep.subr.mxu0 0.0
        %2890 = vmatpush2.msra.mxu0 %v953
        %2891 = vmatprep.subr.mxu0 0.0
        %2892 = vmatpush2.msra.mxu0 %v952
        %2893 = vmatprep.mubr.f32.mxu0 %v1231
        %2894 = vmatmul.mubr.f32.gmra.mxu0 %v1223
        %v2895 = vpop.f32.mrf.mxu0
        %v2896 = vadd.f32 %v2826, %v2895
        %v2897 = vpop.f32.mrf.mxu0
        %2898 = vdwg.mxu0
        %2899 = vmatprep.subr.mxu0 0.0
        %2900 = vmatpush1.msra.mxu0 %v983
        %2901 = vmatprep.subr.mxu0 0.0
        %2902 = vmatpush1.msra.mxu0 %v982
        %2903 = vmatprep.subr.mxu0 0.0
        %2904 = vmatpush1.msra.mxu0 %v981
        %2905 = vmatprep.subr.mxu0 0.0
        %2906 = vmatpush1.msra.mxu0 %v980
        %2907 = vmatprep.subr.mxu0 0.0
        %2908 = vmatpush1.msra.mxu0 %v979
        %2909 = vmatprep.subr.mxu0 0.0
        %2910 = vmatpush1.msra.mxu0 %v978
        %2911 = vmatprep.subr.mxu0 0.0
        %2912 = vmatpush1.msra.mxu0 %v977
        %2913 = vmatprep.subr.mxu0 0.0
        %2914 = vmatpush1.msra.mxu0 %v976
        %2915 = vmatprep.subr.mxu0 0.0
        %2916 = vmatpush1.msra.mxu0 %v975
        %2917 = vmatprep.subr.mxu0 0.0
        %2918 = vmatpush1.msra.mxu0 %v974
        %2919 = vmatprep.subr.mxu0 0.0
        %2920 = vmatpush1.msra.mxu0 %v973
        %2921 = vmatprep.subr.mxu0 0.0
        %2922 = vmatpush1.msra.mxu0 %v972
        %2923 = vmatprep.subr.mxu0 0.0
        %2924 = vmatpush1.msra.mxu0 %v971
        %2925 = vmatprep.subr.mxu0 0.0
        %2926 = vmatpush1.msra.mxu0 %v970
        %2927 = vmatprep.subr.mxu0 0.0
        %2928 = vmatpush1.msra.mxu0 %v969
        %2929 = vmatprep.subr.mxu0 0.0
        %2930 = vmatpush1.msra.mxu0 %v968
        %2931 = vmatprep.subr.mxu0 0.0
        %2932 = vmatpush2.msra.mxu0 %v999
        %2933 = vmatprep.subr.mxu0 0.0
        %2934 = vmatpush2.msra.mxu0 %v998
        %2935 = vmatprep.subr.mxu0 0.0
        %2936 = vmatpush2.msra.mxu0 %v997
        %2937 = vmatprep.subr.mxu0 0.0
        %2938 = vmatpush2.msra.mxu0 %v996
        %2939 = vmatprep.subr.mxu0 0.0
        %2940 = vmatpush2.msra.mxu0 %v995
        %2941 = vmatprep.subr.mxu0 0.0
        %2942 = vmatpush2.msra.mxu0 %v994
        %2943 = vmatprep.subr.mxu0 0.0
        %2944 = vmatpush2.msra.mxu0 %v993
        %2945 = vmatprep.subr.mxu0 0.0
        %2946 = vmatpush2.msra.mxu0 %v992
        %2947 = vmatprep.subr.mxu0 0.0
        %2948 = vmatpush2.msra.mxu0 %v991
        %2949 = vmatprep.subr.mxu0 0.0
        %2950 = vmatpush2.msra.mxu0 %v990
        %2951 = vmatprep.subr.mxu0 0.0
        %2952 = vmatpush2.msra.mxu0 %v989
        %2953 = vmatprep.subr.mxu0 0.0
        %2954 = vmatpush2.msra.mxu0 %v988
        %2955 = vmatprep.subr.mxu0 0.0
        %2956 = vmatpush2.msra.mxu0 %v987
        %2957 = vmatprep.subr.mxu0 0.0
        %2958 = vmatpush2.msra.mxu0 %v986
        %2959 = vmatprep.subr.mxu0 0.0
        %2960 = vmatpush2.msra.mxu0 %v985
        %2961 = vmatprep.subr.mxu0 0.0
        %2962 = vmatpush2.msra.mxu0 %v984
        %2963 = vmatprep.mubr.f32.mxu0 %v1232
        %2964 = vmatmul.mubr.f32.gmra.mxu0 %v1230
        %v2965 = vpop.f32.mrf.mxu0
        %v2966 = vadd.f32 %v2896, %v2965
        %v2967 = vpop.f32.mrf.mxu0
        %2968 = vdwg.mxu0
        %2969 = vmatprep.subr.mxu0 0.0
        %2970 = vmatpush1.msra.mxu0 %v1015
        %2971 = vmatprep.subr.mxu0 0.0
        %2972 = vmatpush1.msra.mxu0 %v1014
        %2973 = vmatprep.subr.mxu0 0.0
        %2974 = vmatpush1.msra.mxu0 %v1013
        %2975 = vmatprep.subr.mxu0 0.0
        %2976 = vmatpush1.msra.mxu0 %v1012
        %2977 = vmatprep.subr.mxu0 0.0
        %2978 = vmatpush1.msra.mxu0 %v1011
        %2979 = vmatprep.subr.mxu0 0.0
        %2980 = vmatpush1.msra.mxu0 %v1010
        %2981 = vmatprep.subr.mxu0 0.0
        %2982 = vmatpush1.msra.mxu0 %v1009
        %2983 = vmatprep.subr.mxu0 0.0
        %2984 = vmatpush1.msra.mxu0 %v1008
        %2985 = vmatprep.subr.mxu0 0.0
        %2986 = vmatpush1.msra.mxu0 %v1007
        %2987 = vmatprep.subr.mxu0 0.0
        %2988 = vmatpush1.msra.mxu0 %v1006
        %2989 = vmatprep.subr.mxu0 0.0
        %2990 = vmatpush1.msra.mxu0 %v1005
        %2991 = vmatprep.subr.mxu0 0.0
        %2992 = vmatpush1.msra.mxu0 %v1004
        %2993 = vmatprep.subr.mxu0 0.0
        %2994 = vmatpush1.msra.mxu0 %v1003
        %2995 = vmatprep.subr.mxu0 0.0
        %2996 = vmatpush1.msra.mxu0 %v1002
        %2997 = vmatprep.subr.mxu0 0.0
        %2998 = vmatpush1.msra.mxu0 %v1001
        %2999 = vmatprep.subr.mxu0 0.0
        %3000 = vmatpush1.msra.mxu0 %v1000
        %3001 = vmatprep.subr.mxu0 0.0
        %3002 = vmatpush2.msra.mxu0 0.0
        %3003 = vmatprep.subr.mxu0 0.0
        %3004 = vmatpush2.msra.mxu0 0.0
        %3005 = vmatprep.subr.mxu0 0.0
        %3006 = vmatpush2.msra.mxu0 0.0
        %3007 = vmatprep.subr.mxu0 0.0
        %3008 = vmatpush2.msra.mxu0 0.0
        %3009 = vmatprep.subr.mxu0 0.0
        %3010 = vmatpush2.msra.mxu0 0.0
        %3011 = vmatprep.subr.mxu0 0.0
        %3012 = vmatpush2.msra.mxu0 0.0
        %3013 = vmatprep.subr.mxu0 0.0
        %3014 = vmatpush2.msra.mxu0 0.0
        %3015 = vmatprep.subr.mxu0 0.0
        %3016 = vmatpush2.msra.mxu0 0.0
        %3017 = vmatprep.subr.mxu0 0.0
        %3018 = vmatpush2.msra.mxu0 0.0
        %3019 = vmatprep.subr.mxu0 0.0
        %3020 = vmatpush2.msra.mxu0 0.0
        %3021 = vmatprep.subr.mxu0 0.0
        %3022 = vmatpush2.msra.mxu0 0.0
        %3023 = vmatprep.subr.mxu0 0.0
        %3024 = vmatpush2.msra.mxu0 0.0
        %3025 = vmatprep.subr.mxu0 0.0
        %3026 = vmatpush2.msra.mxu0 0.0
        %3027 = vmatprep.subr.mxu0 0.0
        %3028 = vmatpush2.msra.mxu0 0.0
        %3029 = vmatprep.subr.mxu0 0.0
        %3030 = vmatpush2.msra.mxu0 0.0
        %3031 = vmatprep.subr.mxu0 0.0
        %3032 = vmatpush2.msra.mxu0 0.0
        %3033 = vmatprep.mubr.f32.mxu0 0.0
        %3034 = vmatmul.mubr.f32.gmra.mxu0 %v1239
        %v3035 = vpop.f32.mrf.mxu0
        %v3036 = vadd.f32 %v2966, %v3035
        %v3037 = vpop.f32.mrf.mxu0
        %3038 = vdwg.mxu0
        %v3039 = vadd.f32 %v218, %v3036
        %vm3040 = vcmask 9216
        %3041 = vst.msk [vmem:[#allocation2] sm:$0x3] %vm3040, %v3039
        %p3042 = scmp.eq.s32.totalorder %s20, 3
        // Predicated region
        $region37: #{tpu_custom_call.1} parent=31 // pred_check
          %p3043 = pneg %p3042
        $region38: #{tpu_custom_call.1} parent=31 // pred_check_branch
          %3045 = sbr.rel (%p3043) target = $region40
        $region39: #{tpu_custom_call.1} parent=31 // pred_region
          %v3046 = vld [vmem:[#allocation2] sm:$0x3]
          %v3047 = vld [vmem:[%s2] sm:$0x1]
          %v3049 = vlaneseq
          %v3050 = vshrl.u32 %v3049, 7
          %v3051 = vsub.s32 0, %v3050
          %v3052 = vrot.slane %v3047, %v3051
          %v3054 = vadd.f32 %v3046, %v3052
          %3055 = vst.msk [vmem:[#allocation3] sm:$0x3] %vm3040, %v3054
        $region40: #{tpu_custom_call.1} parent=31 // pred_fallthru
          _
        // Predicated region
        $region41: #{tpu_custom_call.1} parent=31 // pred_check
          %p3056 = pneg %p120
        $region42: #{tpu_custom_call.1} parent=31 // pred_check_branch
          %3058 = sbr.rel (%p3056) target = $region44
        $region43: #{tpu_custom_call.1} parent=31 // pred_region
          %s3060 = ssub.s32 32, 32
          %3061 = vsyncadd [#allocation4], %s3060
          %s3062 = smul.addr %s19, 32
          %s3063 = scalar_lea.hbm %s3, %s3062
          %s3065 = sshll.u32 [#allocation3], 4
          %s3066 = int_to_ptr.vmem [resolvable:$true] %s3065
          %3068 = dma.vmem_to_hbm [thread:$0]  %s3066, 32, %s3063, [#allocation4]
        $region44: #{tpu_custom_call.1} parent=31 // pred_fallthru
          _
        // Predicated region
        $region45: #{tpu_custom_call.1} parent=31 // pred_check
          %p3069 = pneg %p120
        $region46: #{tpu_custom_call.1} parent=31 // pred_check_branch
          %3071 = sbr.rel (%p3069) target = $region48
        $region47: #{tpu_custom_call.1} parent=31 // pred_region
          %3072 = dma.done [#allocation4], 32
        $region48: #{tpu_custom_call.1} parent=31 // pred_fallthru
          _
      $region32: #{tpu_custom_call.1} parent=5 // pred_fallthru
        _
      %p3073 = scmp.le.s32.totalorder 2, %s10
      // Predicated region
      $region49: #{tpu_custom_call.1} parent=5 // pred_check
        %p3074 = pneg %p3073
      $region50: #{tpu_custom_call.1} parent=5 // pred_check_branch
        %3076 = sbr.rel (%p3074) target = $region52
      $region51: #{tpu_custom_call.1} parent=5 // pred_region
        %s3077 = ssub.s32 %s10, 2
      $region52: #{tpu_custom_call.1} parent=5 // pred_fallthru
        _
    $region6: #{tpu_custom_call.1} parent=1 // loop_footer
      %s14 = sadd.s32 1, %s10
    $region7: #{tpu_custom_call.1} parent=1 // loop_footer_branch
      %9 = sbr.rel target = $region3
    $region8: #{tpu_custom_call.1} parent=1 // loop_exit
      _
    %3078 = vsyncpa [#allocation4], 1
    %s3079 = scalar_lea.sflag [#allocation4], 1
    %3080 = vsyncpa %s3079, 1

</llo_original>
